<compile_context>
chip_gen: v7x
topology: tpu7x:2x2x1
jax: 0.10.0
libtpu: 0.0.40
codegen_flags: <defaults>
</compile_context>

<pallas_src>
import functools

import numpy as np
import jax
import jax.numpy as jnp
from jax.experimental import pallas as pl
from jax.experimental.pallas import tpu as pltpu


# PyTorch LSTM gate order along the 4H axis is [i, f, g, o]; the kernel uses the
# gate-type-grouped order [i, f, o, g] (sigmoid gates contiguous, tanh gate last).
_PT_GATE_TO_GROUP = (0, 1, 3, 2)


# ----------------------------------------------------------------------------
# Fused kernel.
#   inputs : x2d (T*Bp, I),
#            layer 0: wx0 (I, 16H), wh0 (2H, 8H), b0 (1, 16H)
#            layer l>=1: wxt (H, 16H), wxb (H, 16H), wh (2H, 8H), b (1, 16H)
#            attn: w1t (H, H), w1b (H, H), b1 (1, H), w2 (1, H), b2 (1, 1)
#            fc:   fcwt (H, O), fcwb (H, O), fcb (1, O)
#   output : (Bp, O)
#   scratch: xg (T*Bp, 16H), seq_f (T*Bp, H), seq_b (T*Bp, H)   [VMEM]
# ----------------------------------------------------------------------------
def _fused_bilstm_kernel(*refs, num_layers, Bp, T, H):
    H2, H4, H6, H8 = 2 * H, 4 * H, 6 * H, 8 * H
    n_in = 1 + 3 + 4 * (num_layers - 1) + 8

    x_ref = refs[0]
    idx = 1
    layer_refs = []
    for l in range(num_layers):
        n = 3 if l == 0 else 4
        layer_refs.append(refs[idx:idx + n])
        idx += n
    (w1t_ref, w1b_ref, b1_ref, w2_ref, b2_ref,
     fcwt_ref, fcwb_ref, fcb_ref) = refs[idx:idx + 8]
    out_ref = refs[n_in]
    xg_ref, seqf_ref, seqb_ref = refs[n_in + 1:n_in + 4]

    for l in range(num_layers):
        # Time-parallel input projection for BOTH directions (off the serial
        # chain). Columns 0:8H carry the forward-direction gates, 8H:16H the
        # backward-direction gates (each half zero elsewhere). Stored to VMEM
        # scratch so the unrolled loop streams (Bp, 8H) slices.
        if l == 0:
            wx_ref, wh_ref, b_ref = layer_refs[0]
            xg_ref[...] = (jnp.dot(x_ref[...], wx_ref[...],
                                   preferred_element_type=jnp.float32)
                           + b_ref[...])
        else:
            wxt_ref, wxb_ref, wh_ref, b_ref = layer_refs[l]
            # Split contraction over the previous layer's fwd / bwd buffers
            # (replaces the lane-axis concatenate of the old version).
            xg_ref[...] = (jnp.dot(seqf_ref[...], wxt_ref[...],
                                   preferred_element_type=jnp.float32)
                           + jnp.dot(seqb_ref[...], wxb_ref[...],
                                     preferred_element_type=jnp.float32)
                           + b_ref[...])

        wh = wh_ref[...]                                      # (2H, 8H) block-diag
        hcat = jnp.zeros((Bp, H2), jnp.float32)               # [h_f | h_b]
        ccat = jnp.zeros((Bp, H2), jnp.float32)               # [c_f | c_b]

        for s in range(T):              # fully unrolled; state stays in vregs
            rs = T - 1 - s
            # fwd gates use x(t=s), bwd gates use x(t=T-1-s); both slices are
            # 128-lane aligned full tiles of the zero-padded projection, so the
            # assembly is a single VPU add (no lane interleaving).
            gx = (xg_ref[s * Bp:(s + 1) * Bp, :H8]
                  + xg_ref[rs * Bp:(rs + 1) * Bp, H8:])
            # ONE merged recurrent matmul for both directions per step.
            g = gx + jnp.dot(hcat, wh, preferred_element_type=jnp.float32)
            # Gate-type-grouped columns: [i | f | o | g], each group [fwd|bwd].
            sig = jax.nn.sigmoid(g[:, :H6])     # one wide sigmoid (i, f, o)
            gg = jnp.tanh(g[:, H6:])            # one wide tanh   (g)
            ccat = sig[:, H2:H4] * ccat + sig[:, :H2] * gg
            hcat = sig[:, H4:H6] * jnp.tanh(ccat)
            # Aligned per-step stores into the per-direction sequence buffers.
            seqf_ref[s * Bp:(s + 1) * Bp, :] = hcat[:, :H]
            seqb_ref[rs * Bp:(rs + 1) * Bp, :] = hcat[:, H:]
        # TODO(synk): nn.LSTM inter-layer dropout is train-mode only; inference
        # semantics (no dropout) are implemented here.

    # ---- additive attention (split contraction, no concat) + final fc -------
    seq_f = seqf_ref[...]                                     # (T*Bp, H)
    seq_b = seqb_ref[...]
    a = jnp.tanh(jnp.dot(seq_f, w1t_ref[...], preferred_element_type=jnp.float32)
                 + jnp.dot(seq_b, w1b_ref[...], preferred_element_type=jnp.float32)
                 + b1_ref[...])                                # (T*Bp, H)
    scores = jnp.sum(a * w2_ref[...], axis=-1, keepdims=True) + b2_ref[...]

    # Softmax over the T time steps of each (padded) batch row; padded rows are
    # independent so they never mix with real rows.
    s_t = [scores[t * Bp:(t + 1) * Bp, :] for t in range(T)]   # (Bp, 1) each
    m = s_t[0]
    for t in range(1, T):
        m = jnp.maximum(m, s_t[t])
    e_t = [jnp.exp(s - m) for s in s_t]
    denom = e_t[0]
    for t in range(1, T):
        denom = denom + e_t[t]
    inv = pl.reciprocal(denom, approx=False)                   # exact (off chain)

    ctx_f = jnp.zeros((Bp, H), jnp.float32)
    ctx_b = jnp.zeros((Bp, H), jnp.float32)
    for t in range(T):
        w_t = e_t[t] * inv
        ctx_f = ctx_f + seq_f[t * Bp:(t + 1) * Bp, :] * w_t
        ctx_b = ctx_b + seq_b[t * Bp:(t + 1) * Bp, :] * w_t

    out_ref[...] = (jnp.dot(ctx_f, fcwt_ref[...], preferred_element_type=jnp.float32)
                    + jnp.dot(ctx_b, fcwb_ref[...], preferred_element_type=jnp.float32)
                    + fcb_ref[...])


# ----------------------------------------------------------------------------
# Wrapper: pad batch to a sublane tile, flatten time-major, single fused call.
# ----------------------------------------------------------------------------
def bilstm_forward(x, packed, *, num_layers, hidden_size, output_size):
    B, T, I = x.shape
    H = hidden_size
    Bp = ((B + 7) // 8) * 8                      # pad batch to a full (8, .) tile
    xp = jnp.zeros((T, Bp, I), jnp.float32)
    xp = xp.at[:, :B, :].set(jnp.transpose(x.astype(jnp.float32), (1, 0, 2)))
    x2d = xp.reshape(T * Bp, I)                  # time-major rows: t*Bp + b

    kernel = functools.partial(_fused_bilstm_kernel, num_layers=num_layers,
                               Bp=Bp, T=T, H=H)
    n_inputs = 1 + 3 + 4 * (num_layers - 1) + 8

    flops = int(2 * T * Bp * (I * 16 * H + (num_layers - 1) * 2 * H * 16 * H
                              + num_layers * 2 * H * 8 * H + 2 * H * H)
                + 2 * Bp * 2 * H * output_size)
    transcendentals = int(num_layers * T * Bp * 10 * H + T * Bp * (H + 1))
    bytes_accessed = int(4 * (x2d.size
                              + sum(int(np.prod(p.shape)) for p in packed)
                              + Bp * output_size))

    out = pl.pallas_call(
        kernel,
        out_shape=jax.ShapeDtypeStruct((Bp, output_size), jnp.float32),
        in_specs=[pl.BlockSpec(memory_space=pltpu.MemorySpace.VMEM)] * n_inputs,
        out_specs=pl.BlockSpec(memory_space=pltpu.MemorySpace.VMEM),
        scratch_shapes=[pltpu.VMEM((T * Bp, 16 * H), jnp.float32),  # xg
                        pltpu.VMEM((T * Bp, H), jnp.float32),       # seq_f
                        pltpu.VMEM((T * Bp, H), jnp.float32)],      # seq_b
        cost_estimate=pl.CostEstimate(flops=flops,
                                      transcendentals=transcendentals,
                                      bytes_accessed=bytes_accessed),
    )(x2d, *packed)
    return out[:B]


# ----------------------------------------------------------------------------
# Parameter init (PyTorch-style uniform bounds), raw PyTorch-layout params.
# ----------------------------------------------------------------------------
def init_params(key, input_size, hidden_size, num_layers, output_size):
    H = hidden_size

    def uni(k, shape, bound):
        return jax.random.uniform(k, shape, jnp.float32, -bound, bound)

    params = {}
    keys = iter(jax.random.split(key, num_layers * 2 * 4 + 6))
    bnd = 1.0 / np.sqrt(H)
    for l in range(num_layers):
        layer_in = input_size if l == 0 else 2 * H
        for suf in ('f', 'b'):
            w_ih = uni(next(keys), (4 * H, layer_in), bnd)   # PyTorch (4H, Din)
            w_hh = uni(next(keys), (4 * H, H), bnd)          # PyTorch (4H, H)
            b_ih = uni(next(keys), (4 * H,), bnd)
            b_hh = uni(next(keys), (4 * H,), bnd)
            params[f'w_ih_{l}_{suf}'] = w_ih
            params[f'w_hh_{l}_{suf}'] = w_hh
            params[f'b_{l}_{suf}'] = b_ih + b_hh
    bnd1 = 1.0 / np.sqrt(2 * H)
    bnd2 = 1.0 / np.sqrt(H)
    params['attn_w1'] = uni(next(keys), (H, 2 * H), bnd1)    # nn.Linear (out, in)
    params['attn_b1'] = uni(next(keys), (H,), bnd1)
    params['attn_w2'] = uni(next(keys), (1, H), bnd2)
    params['attn_b2'] = uni(next(keys), (1,), bnd2)
    params['fc_w'] = uni(next(keys), (output_size, 2 * H), bnd1)
    params['fc_b'] = uni(next(keys), (output_size,), bnd1)
    return params


def _scatter_gate_cols(w_t, H, direction):
    """w_t: (..., 4H) with PyTorch gate order [i f g o] on the last axis.
    Returns (..., 8H) in gate-type-grouped layout [i | f | o | g], each group =
    [fwd H | bwd H]; the other direction's sub-columns are zero."""
    out = jnp.zeros(w_t.shape[:-1] + (8 * H,), w_t.dtype)
    for pg in range(4):
        grp = _PT_GATE_TO_GROUP[pg]
        col = grp * 2 * H + direction * H
        out = out.at[..., col:col + H].set(w_t[..., pg * H:(pg + 1) * H])
    return out


def pack_params(params, *, num_layers, hidden_size):
    """Reorder / zero-pad weights into the kernel layout (done once, off-line)."""
    H = hidden_size
    packed = []
    for l in range(num_layers):
        whf = _scatter_gate_cols(params[f'w_hh_{l}_f'].T, H, 0)     # (H, 8H)
        whb = _scatter_gate_cols(params[f'w_hh_{l}_b'].T, H, 1)     # (H, 8H)
        wh_bd = jnp.concatenate([whf, whb], axis=0)                 # (2H, 8H)
        bf = _scatter_gate_cols(params[f'b_{l}_f'].reshape(1, -1), H, 0)
        bb = _scatter_gate_cols(params[f'b_{l}_b'].reshape(1, -1), H, 1)
        b_cat = jnp.concatenate([bf, bb], axis=1)                   # (1, 16H)
        wxf = _scatter_gate_cols(params[f'w_ih_{l}_f'].T, H, 0)     # (Din, 8H)
        wxb = _scatter_gate_cols(params[f'w_ih_{l}_b'].T, H, 1)     # (Din, 8H)
        wx_cat = jnp.concatenate([wxf, wxb], axis=1)                # (Din, 16H)
        if l == 0:
            packed += [wx_cat, wh_bd, b_cat]
        else:  # split the 2H input rows: top H multiply seq_f, bottom H seq_b
            packed += [wx_cat[:H, :], wx_cat[H:, :], wh_bd, b_cat]

    w1 = params['attn_w1'].T                                        # (2H, H)
    packed += [w1[:H, :], w1[H:, :], params['attn_b1'].reshape(1, -1),
               params['attn_w2'].reshape(1, -1), params['attn_b2'].reshape(1, 1)]
    fw = params['fc_w'].T                                           # (2H, O)
    packed += [fw[:H, :], fw[H:, :], params['fc_b'].reshape(1, -1)]
    return tuple(packed)


# ----------------------------------------------------------------------------
# Pure-JAX reference (PyTorch semantics, raw params) for the correctness check.
# ----------------------------------------------------------------------------
def ref_forward(x, params, *, num_layers, hidden_size):
    B, T, _ = x.shape
    H = hidden_size
    inp = x.astype(jnp.float32)
    for l in range(num_layers):
        outs = []
        for suf, rev in (('f', False), ('b', True)):
            w_ih = params[f'w_ih_{l}_{suf}']
            w_hh = params[f'w_hh_{l}_{suf}']
            bb = params[f'b_{l}_{suf}']
            h = jnp.zeros((B, H), jnp.float32)
            c = jnp.zeros((B, H), jnp.float32)
            ys = [None] * T
            order = range(T - 1, -1, -1) if rev else range(T)
            for t in order:
                g = inp[:, t, :] @ w_ih.T + h @ w_hh.T + bb
                i = jax.nn.sigmoid(g[:, :H])
                f = jax.nn.sigmoid(g[:, H:2 * H])
                gg = jnp.tanh(g[:, 2 * H:3 * H])
                o = jax.nn.sigmoid(g[:, 3 * H:])
                c = f * c + i * gg
                h = o * jnp.tanh(c)
                ys[t] = h
            outs.append(jnp.stack(ys, axis=1))
        inp = jnp.concatenate(outs, axis=-1)
    a = jnp.tanh(inp @ params['attn_w1'].T + params['attn_b1'])     # (B, T, H)
    s = a @ params['attn_w2'].T + params['attn_b2']                 # (B, T, 1)
    w = jax.nn.softmax(s, axis=1)
    ctx = jnp.sum(inp * w, axis=1)
    return ctx @ params['fc_w'].T + params['fc_b']


if __name__ == "__main__":
    # batch=2, seq=8, input_size=8, hidden_size=32, num_layers=2, output_size=1
    B, T, I, H, L, O = 2, 8, 8, 32, 2, 1
    key = jax.random.PRNGKey(0)
    kx, kp = jax.random.split(key)
    x = jax.random.normal(kx, (B, T, I), jnp.float32)
    params = init_params(kp, I, H, L, O)
    packed = pack_params(params, num_layers=L, hidden_size=H)

    fwd = jax.jit(functools.partial(bilstm_forward, num_layers=L,
                                    hidden_size=H, output_size=O))
    out = jax.block_until_ready(fwd(x, packed))
    assert out.shape == (B, O)

    with jax.default_matmul_precision("highest"):
        ref = jax.block_until_ready(ref_forward(x, params, num_layers=L,
                                                hidden_size=H))
    np.testing.assert_allclose(np.asarray(out), np.asarray(ref),
                               rtol=2e-3, atol=2e-3)
    print("KERNEL_OK")
</pallas_src>

<mosaic_0001>
module attributes {stable_mosaic.version = 11 : i64} {
  func.func @_fused_bilstm_kernel(%arg0: memref<64x8xf32, #tpu.memory_space<vmem>>, %arg1: memref<8x512xf32, #tpu.memory_space<vmem>>, %arg2: memref<64x256xf32, #tpu.memory_space<vmem>>, %arg3: memref<1x512xf32, #tpu.memory_space<vmem>>, %arg4: memref<32x512xf32, #tpu.memory_space<vmem>>, %arg5: memref<32x512xf32, #tpu.memory_space<vmem>>, %arg6: memref<64x256xf32, #tpu.memory_space<vmem>>, %arg7: memref<1x512xf32, #tpu.memory_space<vmem>>, %arg8: memref<32x32xf32, #tpu.memory_space<vmem>>, %arg9: memref<32x32xf32, #tpu.memory_space<vmem>>, %arg10: memref<1x32xf32, #tpu.memory_space<vmem>>, %arg11: memref<1x32xf32, #tpu.memory_space<vmem>>, %arg12: memref<1x1xf32, #tpu.memory_space<vmem>>, %arg13: memref<32x1xf32, #tpu.memory_space<vmem>>, %arg14: memref<32x1xf32, #tpu.memory_space<vmem>>, %arg15: memref<1x1xf32, #tpu.memory_space<vmem>>, %arg16: memref<8x1xf32, #tpu.memory_space<vmem>>, %arg17: memref<64x512xf32, #tpu.memory_space<vmem>>, %arg18: memref<64x32xf32, #tpu.memory_space<vmem>>, %arg19: memref<64x32xf32, #tpu.memory_space<vmem>>) attributes {dimension_semantics = [], scalar_prefetch = 0 : i64, scratch_operands = 3 : i64, tpu.core_type = #tpu.core_type<tc>} {
    %c0 = arith.constant 0 : index
    %c0_0 = arith.constant 0 : index
    %0 = vector.load %arg0[%c0, %c0_0] : memref<64x8xf32, #tpu.memory_space<vmem>>, vector<64x8xf32>
    %c0_1 = arith.constant 0 : index
    %c0_2 = arith.constant 0 : index
    %1 = vector.load %arg1[%c0_1, %c0_2] : memref<8x512xf32, #tpu.memory_space<vmem>>, vector<8x512xf32>
    %cst = arith.constant dense<0.000000e+00> : vector<64x512xf32>
    %2 = tpu.matmul %0, %1, %cst {dimension_numbers = #tpu.dot_dimension_numbers<[1], [0], [0], [1], [0, 0, 1, 1], [], []>} : vector<64x8xf32>, vector<8x512xf32>, vector<64x512xf32> -> vector<64x512xf32>
    %c0_3 = arith.constant 0 : index
    %c0_4 = arith.constant 0 : index
    %3 = vector.load %arg3[%c0_3, %c0_4] : memref<1x512xf32, #tpu.memory_space<vmem>>, vector<1x512xf32>
    %4 = vector.broadcast %3 : vector<1x512xf32> to vector<64x512xf32>
    %5 = arith.addf %2, %4 : vector<64x512xf32>
    %c0_5 = arith.constant 0 : index
    %c0_6 = arith.constant 0 : index
    %6 = vector.load %arg17[%c0_5, %c0_6] : memref<64x512xf32, #tpu.memory_space<vmem>>, vector<64x512xf32>
    tpu.vector_store %arg17[%c0_5, %c0_6], %5 {strides = array<i32>} : memref<64x512xf32, #tpu.memory_space<vmem>>, vector<64x512xf32>,
    %c0_7 = arith.constant 0 : index
    %c0_8 = arith.constant 0 : index
    %7 = vector.load %arg2[%c0_7, %c0_8] : memref<64x256xf32, #tpu.memory_space<vmem>>, vector<64x256xf32>
    %cst_9 = arith.constant 0.000000e+00 : f32
    %8 = vector.broadcast %cst_9 : f32 to vector<8x64xf32>
    %cst_10 = arith.constant 0.000000e+00 : f32
    %9 = vector.broadcast %cst_10 : f32 to vector<8x64xf32>
    %c0_11 = arith.constant 0 : index
    %c0_12 = arith.constant 0 : index
    %10 = vector.load %arg17[%c0_11, %c0_12] : memref<64x512xf32, #tpu.memory_space<vmem>>, vector<8x256xf32>
    %c56 = arith.constant 56 : index
    %c256 = arith.constant 256 : index
    %11 = vector.load %arg17[%c56, %c256] : memref<64x512xf32, #tpu.memory_space<vmem>>, vector<8x256xf32>
    %12 = arith.addf %10, %11 : vector<8x256xf32>
    %cst_13 = arith.constant dense<0.000000e+00> : vector<8x256xf32>
    %13 = tpu.matmul %8, %7, %cst_13 {dimension_numbers = #tpu.dot_dimension_numbers<[1], [0], [0], [1], [0, 0, 1, 1], [], []>} : vector<8x64xf32>, vector<64x256xf32>, vector<8x256xf32> -> vector<8x256xf32>
    %14 = arith.addf %12, %13 : vector<8x256xf32>
    %15 = vector.extract_strided_slice %14 {offsets = [0, 0], sizes = [8, 192], strides = [1, 1]} : vector<8x256xf32> to vector<8x192xf32>
    %16 = arith.negf %15 : vector<8x192xf32>
    %17 = math.exp %16 : vector<8x192xf32>
    %cst_14 = arith.constant 1.000000e+00 : f32
    %18 = vector.broadcast %cst_14 : f32 to vector<8x192xf32>
    %19 = arith.addf %18, %17 : vector<8x192xf32>
    %20 = arith.divf %18, %19 : vector<8x192xf32>
    %21 = vector.extract_strided_slice %14 {offsets = [0, 192], sizes = [8, 64], strides = [1, 1]} : vector<8x256xf32> to vector<8x64xf32>
    %22 = math.tanh %21 : vector<8x64xf32>
    %23 = vector.extract_strided_slice %20 {offsets = [0, 64], sizes = [8, 64], strides = [1, 1]} : vector<8x192xf32> to vector<8x64xf32>
    %24 = arith.mulf %23, %9 : vector<8x64xf32>
    %25 = vector.extract_strided_slice %20 {offsets = [0, 0], sizes = [8, 64], strides = [1, 1]} : vector<8x192xf32> to vector<8x64xf32>
    %26 = arith.mulf %25, %22 : vector<8x64xf32>
    %27 = arith.addf %24, %26 : vector<8x64xf32>
    %28 = vector.extract_strided_slice %20 {offsets = [0, 128], sizes = [8, 64], strides = [1, 1]} : vector<8x192xf32> to vector<8x64xf32>
    %29 = math.tanh %27 : vector<8x64xf32>
    %30 = arith.mulf %28, %29 : vector<8x64xf32>
    %31 = vector.extract_strided_slice %30 {offsets = [0, 0], sizes = [8, 32], strides = [1, 1]} : vector<8x64xf32> to vector<8x32xf32>
    %c0_15 = arith.constant 0 : index
    %c0_16 = arith.constant 0 : index
    %32 = vector.load %arg18[%c0_15, %c0_16] : memref<64x32xf32, #tpu.memory_space<vmem>>, vector<8x32xf32>
    tpu.vector_store %arg18[%c0_15, %c0_16], %31 {strides = array<i32>} : memref<64x32xf32, #tpu.memory_space<vmem>>, vector<8x32xf32>,
    %33 = vector.extract_strided_slice %30 {offsets = [0, 32], sizes = [8, 32], strides = [1, 1]} : vector<8x64xf32> to vector<8x32xf32>
    %c56_17 = arith.constant 56 : index
    %c0_18 = arith.constant 0 : index
    %34 = vector.load %arg19[%c56_17, %c0_18] : memref<64x32xf32, #tpu.memory_space<vmem>>, vector<8x32xf32>
    tpu.vector_store %arg19[%c56_17, %c0_18], %33 {strides = array<i32>} : memref<64x32xf32, #tpu.memory_space<vmem>>, vector<8x32xf32>,
    %c8 = arith.constant 8 : index
    %c0_19 = arith.constant 0 : index
    %35 = vector.load %arg17[%c8, %c0_19] : memref<64x512xf32, #tpu.memory_space<vmem>>, vector<8x256xf32>
    %c48 = arith.constant 48 : index
    %c256_20 = arith.constant 256 : index
    %36 = vector.load %arg17[%c48, %c256_20] : memref<64x512xf32, #tpu.memory_space<vmem>>, vector<8x256xf32>
    %37 = arith.addf %35, %36 : vector<8x256xf32>
    %cst_21 = arith.constant dense<0.000000e+00> : vector<8x256xf32>
    %38 = tpu.matmul %30, %7, %cst_21 {dimension_numbers = #tpu.dot_dimension_numbers<[1], [0], [0], [1], [0, 0, 1, 1], [], []>} : vector<8x64xf32>, vector<64x256xf32>, vector<8x256xf32> -> vector<8x256xf32>
    %39 = arith.addf %37, %38 : vector<8x256xf32>
    %40 = vector.extract_strided_slice %39 {offsets = [0, 0], sizes = [8, 192], strides = [1, 1]} : vector<8x256xf32> to vector<8x192xf32>
    %41 = arith.negf %40 : vector<8x192xf32>
    %42 = math.exp %41 : vector<8x192xf32>
    %cst_22 = arith.constant 1.000000e+00 : f32
    %43 = vector.broadcast %cst_22 : f32 to vector<8x192xf32>
    %44 = arith.addf %43, %42 : vector<8x192xf32>
    %45 = arith.divf %43, %44 : vector<8x192xf32>
    %46 = vector.extract_strided_slice %39 {offsets = [0, 192], sizes = [8, 64], strides = [1, 1]} : vector<8x256xf32> to vector<8x64xf32>
    %47 = math.tanh %46 : vector<8x64xf32>
    %48 = vector.extract_strided_slice %45 {offsets = [0, 64], sizes = [8, 64], strides = [1, 1]} : vector<8x192xf32> to vector<8x64xf32>
    %49 = arith.mulf %48, %27 : vector<8x64xf32>
    %50 = vector.extract_strided_slice %45 {offsets = [0, 0], sizes = [8, 64], strides = [1, 1]} : vector<8x192xf32> to vector<8x64xf32>
    %51 = arith.mulf %50, %47 : vector<8x64xf32>
    %52 = arith.addf %49, %51 : vector<8x64xf32>
    %53 = vector.extract_strided_slice %45 {offsets = [0, 128], sizes = [8, 64], strides = [1, 1]} : vector<8x192xf32> to vector<8x64xf32>
    %54 = math.tanh %52 : vector<8x64xf32>
    %55 = arith.mulf %53, %54 : vector<8x64xf32>
    %56 = vector.extract_strided_slice %55 {offsets = [0, 0], sizes = [8, 32], strides = [1, 1]} : vector<8x64xf32> to vector<8x32xf32>
    %c8_23 = arith.constant 8 : index
    %c0_24 = arith.constant 0 : index
    %57 = vector.load %arg18[%c8_23, %c0_24] : memref<64x32xf32, #tpu.memory_space<vmem>>, vector<8x32xf32>
    tpu.vector_store %arg18[%c8_23, %c0_24], %56 {strides = array<i32>} : memref<64x32xf32, #tpu.memory_space<vmem>>, vector<8x32xf32>,
    %58 = vector.extract_strided_slice %55 {offsets = [0, 32], sizes = [8, 32], strides = [1, 1]} : vector<8x64xf32> to vector<8x32xf32>
    %c48_25 = arith.constant 48 : index
    %c0_26 = arith.constant 0 : index
    %59 = vector.load %arg19[%c48_25, %c0_26] : memref<64x32xf32, #tpu.memory_space<vmem>>, vector<8x32xf32>
    tpu.vector_store %arg19[%c48_25, %c0_26], %58 {strides = array<i32>} : memref<64x32xf32, #tpu.memory_space<vmem>>, vector<8x32xf32>,
    %c16 = arith.constant 16 : index
    %c0_27 = arith.constant 0 : index
    %60 = vector.load %arg17[%c16, %c0_27] : memref<64x512xf32, #tpu.memory_space<vmem>>, vector<8x256xf32>
    %c40 = arith.constant 40 : index
    %c256_28 = arith.constant 256 : index
    %61 = vector.load %arg17[%c40, %c256_28] : memref<64x512xf32, #tpu.memory_space<vmem>>, vector<8x256xf32>
    %62 = arith.addf %60, %61 : vector<8x256xf32>
    %cst_29 = arith.constant dense<0.000000e+00> : vector<8x256xf32>
    %63 = tpu.matmul %55, %7, %cst_29 {dimension_numbers = #tpu.dot_dimension_numbers<[1], [0], [0], [1], [0, 0, 1, 1], [], []>} : vector<8x64xf32>, vector<64x256xf32>, vector<8x256xf32> -> vector<8x256xf32>
    %64 = arith.addf %62, %63 : vector<8x256xf32>
    %65 = vector.extract_strided_slice %64 {offsets = [0, 0], sizes = [8, 192], strides = [1, 1]} : vector<8x256xf32> to vector<8x192xf32>
    %66 = arith.negf %65 : vector<8x192xf32>
    %67 = math.exp %66 : vector<8x192xf32>
    %cst_30 = arith.constant 1.000000e+00 : f32
    %68 = vector.broadcast %cst_30 : f32 to vector<8x192xf32>
    %69 = arith.addf %68, %67 : vector<8x192xf32>
    %70 = arith.divf %68, %69 : vector<8x192xf32>
    %71 = vector.extract_strided_slice %64 {offsets = [0, 192], sizes = [8, 64], strides = [1, 1]} : vector<8x256xf32> to vector<8x64xf32>
    %72 = math.tanh %71 : vector<8x64xf32>
    %73 = vector.extract_strided_slice %70 {offsets = [0, 64], sizes = [8, 64], strides = [1, 1]} : vector<8x192xf32> to vector<8x64xf32>
    %74 = arith.mulf %73, %52 : vector<8x64xf32>
    %75 = vector.extract_strided_slice %70 {offsets = [0, 0], sizes = [8, 64], strides = [1, 1]} : vector<8x192xf32> to vector<8x64xf32>
    %76 = arith.mulf %75, %72 : vector<8x64xf32>
    %77 = arith.addf %74, %76 : vector<8x64xf32>
    %78 = vector.extract_strided_slice %70 {offsets = [0, 128], sizes = [8, 64], strides = [1, 1]} : vector<8x192xf32> to vector<8x64xf32>
    %79 = math.tanh %77 : vector<8x64xf32>
    %80 = arith.mulf %78, %79 : vector<8x64xf32>
    %81 = vector.extract_strided_slice %80 {offsets = [0, 0], sizes = [8, 32], strides = [1, 1]} : vector<8x64xf32> to vector<8x32xf32>
    %c16_31 = arith.constant 16 : index
    %c0_32 = arith.constant 0 : index
    %82 = vector.load %arg18[%c16_31, %c0_32] : memref<64x32xf32, #tpu.memory_space<vmem>>, vector<8x32xf32>
    tpu.vector_store %arg18[%c16_31, %c0_32], %81 {strides = array<i32>} : memref<64x32xf32, #tpu.memory_space<vmem>>, vector<8x32xf32>,
    %83 = vector.extract_strided_slice %80 {offsets = [0, 32], sizes = [8, 32], strides = [1, 1]} : vector<8x64xf32> to vector<8x32xf32>
    %c40_33 = arith.constant 40 : index
    %c0_34 = arith.constant 0 : index
    %84 = vector.load %arg19[%c40_33, %c0_34] : memref<64x32xf32, #tpu.memory_space<vmem>>, vector<8x32xf32>
    tpu.vector_store %arg19[%c40_33, %c0_34], %83 {strides = array<i32>} : memref<64x32xf32, #tpu.memory_space<vmem>>, vector<8x32xf32>,
    %c24 = arith.constant 24 : index
    %c0_35 = arith.constant 0 : index
    %85 = vector.load %arg17[%c24, %c0_35] : memref<64x512xf32, #tpu.memory_space<vmem>>, vector<8x256xf32>
    %c32 = arith.constant 32 : index
    %c256_36 = arith.constant 256 : index
    %86 = vector.load %arg17[%c32, %c256_36] : memref<64x512xf32, #tpu.memory_space<vmem>>, vector<8x256xf32>
    %87 = arith.addf %85, %86 : vector<8x256xf32>
    %cst_37 = arith.constant dense<0.000000e+00> : vector<8x256xf32>
    %88 = tpu.matmul %80, %7, %cst_37 {dimension_numbers = #tpu.dot_dimension_numbers<[1], [0], [0], [1], [0, 0, 1, 1], [], []>} : vector<8x64xf32>, vector<64x256xf32>, vector<8x256xf32> -> vector<8x256xf32>
    %89 = arith.addf %87, %88 : vector<8x256xf32>
    %90 = vector.extract_strided_slice %89 {offsets = [0, 0], sizes = [8, 192], strides = [1, 1]} : vector<8x256xf32> to vector<8x192xf32>
    %91 = arith.negf %90 : vector<8x192xf32>
    %92 = math.exp %91 : vector<8x192xf32>
    %cst_38 = arith.constant 1.000000e+00 : f32
    %93 = vector.broadcast %cst_38 : f32 to vector<8x192xf32>
    %94 = arith.addf %93, %92 : vector<8x192xf32>
    %95 = arith.divf %93, %94 : vector<8x192xf32>
    %96 = vector.extract_strided_slice %89 {offsets = [0, 192], sizes = [8, 64], strides = [1, 1]} : vector<8x256xf32> to vector<8x64xf32>
    %97 = math.tanh %96 : vector<8x64xf32>
    %98 = vector.extract_strided_slice %95 {offsets = [0, 64], sizes = [8, 64], strides = [1, 1]} : vector<8x192xf32> to vector<8x64xf32>
    %99 = arith.mulf %98, %77 : vector<8x64xf32>
    %100 = vector.extract_strided_slice %95 {offsets = [0, 0], sizes = [8, 64], strides = [1, 1]} : vector<8x192xf32> to vector<8x64xf32>
    %101 = arith.mulf %100, %97 : vector<8x64xf32>
    %102 = arith.addf %99, %101 : vector<8x64xf32>
    %103 = vector.extract_strided_slice %95 {offsets = [0, 128], sizes = [8, 64], strides = [1, 1]} : vector<8x192xf32> to vector<8x64xf32>
    %104 = math.tanh %102 : vector<8x64xf32>
    %105 = arith.mulf %103, %104 : vector<8x64xf32>
    %106 = vector.extract_strided_slice %105 {offsets = [0, 0], sizes = [8, 32], strides = [1, 1]} : vector<8x64xf32> to vector<8x32xf32>
    %c24_39 = arith.constant 24 : index
    %c0_40 = arith.constant 0 : index
    %107 = vector.load %arg18[%c24_39, %c0_40] : memref<64x32xf32, #tpu.memory_space<vmem>>, vector<8x32xf32>
    tpu.vector_store %arg18[%c24_39, %c0_40], %106 {strides = array<i32>} : memref<64x32xf32, #tpu.memory_space<vmem>>, vector<8x32xf32>,
    %108 = vector.extract_strided_slice %105 {offsets = [0, 32], sizes = [8, 32], strides = [1, 1]} : vector<8x64xf32> to vector<8x32xf32>
    %c32_41 = arith.constant 32 : index
    %c0_42 = arith.constant 0 : index
    %109 = vector.load %arg19[%c32_41, %c0_42] : memref<64x32xf32, #tpu.memory_space<vmem>>, vector<8x32xf32>
    tpu.vector_store %arg19[%c32_41, %c0_42], %108 {strides = array<i32>} : memref<64x32xf32, #tpu.memory_space<vmem>>, vector<8x32xf32>,
    %c32_43 = arith.constant 32 : index
    %c0_44 = arith.constant 0 : index
    %110 = vector.load %arg17[%c32_43, %c0_44] : memref<64x512xf32, #tpu.memory_space<vmem>>, vector<8x256xf32>
    %c24_45 = arith.constant 24 : index
    %c256_46 = arith.constant 256 : index
    %111 = vector.load %arg17[%c24_45, %c256_46] : memref<64x512xf32, #tpu.memory_space<vmem>>, vector<8x256xf32>
    %112 = arith.addf %110, %111 : vector<8x256xf32>
    %cst_47 = arith.constant dense<0.000000e+00> : vector<8x256xf32>
    %113 = tpu.matmul %105, %7, %cst_47 {dimension_numbers = #tpu.dot_dimension_numbers<[1], [0], [0], [1], [0, 0, 1, 1], [], []>} : vector<8x64xf32>, vector<64x256xf32>, vector<8x256xf32> -> vector<8x256xf32>
    %114 = arith.addf %112, %113 : vector<8x256xf32>
    %115 = vector.extract_strided_slice %114 {offsets = [0, 0], sizes = [8, 192], strides = [1, 1]} : vector<8x256xf32> to vector<8x192xf32>
    %116 = arith.negf %115 : vector<8x192xf32>
    %117 = math.exp %116 : vector<8x192xf32>
    %cst_48 = arith.constant 1.000000e+00 : f32
    %118 = vector.broadcast %cst_48 : f32 to vector<8x192xf32>
    %119 = arith.addf %118, %117 : vector<8x192xf32>
    %120 = arith.divf %118, %119 : vector<8x192xf32>
    %121 = vector.extract_strided_slice %114 {offsets = [0, 192], sizes = [8, 64], strides = [1, 1]} : vector<8x256xf32> to vector<8x64xf32>
    %122 = math.tanh %121 : vector<8x64xf32>
    %123 = vector.extract_strided_slice %120 {offsets = [0, 64], sizes = [8, 64], strides = [1, 1]} : vector<8x192xf32> to vector<8x64xf32>
    %124 = arith.mulf %123, %102 : vector<8x64xf32>
    %125 = vector.extract_strided_slice %120 {offsets = [0, 0], sizes = [8, 64], strides = [1, 1]} : vector<8x192xf32> to vector<8x64xf32>
    %126 = arith.mulf %125, %122 : vector<8x64xf32>
    %127 = arith.addf %124, %126 : vector<8x64xf32>
    %128 = vector.extract_strided_slice %120 {offsets = [0, 128], sizes = [8, 64], strides = [1, 1]} : vector<8x192xf32> to vector<8x64xf32>
    %129 = math.tanh %127 : vector<8x64xf32>
    %130 = arith.mulf %128, %129 : vector<8x64xf32>
    %131 = vector.extract_strided_slice %130 {offsets = [0, 0], sizes = [8, 32], strides = [1, 1]} : vector<8x64xf32> to vector<8x32xf32>
    %c32_49 = arith.constant 32 : index
    %c0_50 = arith.constant 0 : index
    %132 = vector.load %arg18[%c32_49, %c0_50] : memref<64x32xf32, #tpu.memory_space<vmem>>, vector<8x32xf32>
    tpu.vector_store %arg18[%c32_49, %c0_50], %131 {strides = array<i32>} : memref<64x32xf32, #tpu.memory_space<vmem>>, vector<8x32xf32>,
    %133 = vector.extract_strided_slice %130 {offsets = [0, 32], sizes = [8, 32], strides = [1, 1]} : vector<8x64xf32> to vector<8x32xf32>
    %c24_51 = arith.constant 24 : index
    %c0_52 = arith.constant 0 : index
    %134 = vector.load %arg19[%c24_51, %c0_52] : memref<64x32xf32, #tpu.memory_space<vmem>>, vector<8x32xf32>
    tpu.vector_store %arg19[%c24_51, %c0_52], %133 {strides = array<i32>} : memref<64x32xf32, #tpu.memory_space<vmem>>, vector<8x32xf32>,
    %c40_53 = arith.constant 40 : index
    %c0_54 = arith.constant 0 : index
    %135 = vector.load %arg17[%c40_53, %c0_54] : memref<64x512xf32, #tpu.memory_space<vmem>>, vector<8x256xf32>
    %c16_55 = arith.constant 16 : index
    %c256_56 = arith.constant 256 : index
    %136 = vector.load %arg17[%c16_55, %c256_56] : memref<64x512xf32, #tpu.memory_space<vmem>>, vector<8x256xf32>
    %137 = arith.addf %135, %136 : vector<8x256xf32>
    %cst_57 = arith.constant dense<0.000000e+00> : vector<8x256xf32>
    %138 = tpu.matmul %130, %7, %cst_57 {dimension_numbers = #tpu.dot_dimension_numbers<[1], [0], [0], [1], [0, 0, 1, 1], [], []>} : vector<8x64xf32>, vector<64x256xf32>, vector<8x256xf32> -> vector<8x256xf32>
    %139 = arith.addf %137, %138 : vector<8x256xf32>
    %140 = vector.extract_strided_slice %139 {offsets = [0, 0], sizes = [8, 192], strides = [1, 1]} : vector<8x256xf32> to vector<8x192xf32>
    %141 = arith.negf %140 : vector<8x192xf32>
    %142 = math.exp %141 : vector<8x192xf32>
    %cst_58 = arith.constant 1.000000e+00 : f32
    %143 = vector.broadcast %cst_58 : f32 to vector<8x192xf32>
    %144 = arith.addf %143, %142 : vector<8x192xf32>
    %145 = arith.divf %143, %144 : vector<8x192xf32>
    %146 = vector.extract_strided_slice %139 {offsets = [0, 192], sizes = [8, 64], strides = [1, 1]} : vector<8x256xf32> to vector<8x64xf32>
    %147 = math.tanh %146 : vector<8x64xf32>
    %148 = vector.extract_strided_slice %145 {offsets = [0, 64], sizes = [8, 64], strides = [1, 1]} : vector<8x192xf32> to vector<8x64xf32>
    %149 = arith.mulf %148, %127 : vector<8x64xf32>
    %150 = vector.extract_strided_slice %145 {offsets = [0, 0], sizes = [8, 64], strides = [1, 1]} : vector<8x192xf32> to vector<8x64xf32>
    %151 = arith.mulf %150, %147 : vector<8x64xf32>
    %152 = arith.addf %149, %151 : vector<8x64xf32>
    %153 = vector.extract_strided_slice %145 {offsets = [0, 128], sizes = [8, 64], strides = [1, 1]} : vector<8x192xf32> to vector<8x64xf32>
    %154 = math.tanh %152 : vector<8x64xf32>
    %155 = arith.mulf %153, %154 : vector<8x64xf32>
    %156 = vector.extract_strided_slice %155 {offsets = [0, 0], sizes = [8, 32], strides = [1, 1]} : vector<8x64xf32> to vector<8x32xf32>
    %c40_59 = arith.constant 40 : index
    %c0_60 = arith.constant 0 : index
    %157 = vector.load %arg18[%c40_59, %c0_60] : memref<64x32xf32, #tpu.memory_space<vmem>>, vector<8x32xf32>
    tpu.vector_store %arg18[%c40_59, %c0_60], %156 {strides = array<i32>} : memref<64x32xf32, #tpu.memory_space<vmem>>, vector<8x32xf32>,
    %158 = vector.extract_strided_slice %155 {offsets = [0, 32], sizes = [8, 32], strides = [1, 1]} : vector<8x64xf32> to vector<8x32xf32>
    %c16_61 = arith.constant 16 : index
    %c0_62 = arith.constant 0 : index
    %159 = vector.load %arg19[%c16_61, %c0_62] : memref<64x32xf32, #tpu.memory_space<vmem>>, vector<8x32xf32>
    tpu.vector_store %arg19[%c16_61, %c0_62], %158 {strides = array<i32>} : memref<64x32xf32, #tpu.memory_space<vmem>>, vector<8x32xf32>,
    %c48_63 = arith.constant 48 : index
    %c0_64 = arith.constant 0 : index
    %160 = vector.load %arg17[%c48_63, %c0_64] : memref<64x512xf32, #tpu.memory_space<vmem>>, vector<8x256xf32>
    %c8_65 = arith.constant 8 : index
    %c256_66 = arith.constant 256 : index
    %161 = vector.load %arg17[%c8_65, %c256_66] : memref<64x512xf32, #tpu.memory_space<vmem>>, vector<8x256xf32>
    %162 = arith.addf %160, %161 : vector<8x256xf32>
    %cst_67 = arith.constant dense<0.000000e+00> : vector<8x256xf32>
    %163 = tpu.matmul %155, %7, %cst_67 {dimension_numbers = #tpu.dot_dimension_numbers<[1], [0], [0], [1], [0, 0, 1, 1], [], []>} : vector<8x64xf32>, vector<64x256xf32>, vector<8x256xf32> -> vector<8x256xf32>
    %164 = arith.addf %162, %163 : vector<8x256xf32>
    %165 = vector.extract_strided_slice %164 {offsets = [0, 0], sizes = [8, 192], strides = [1, 1]} : vector<8x256xf32> to vector<8x192xf32>
    %166 = arith.negf %165 : vector<8x192xf32>
    %167 = math.exp %166 : vector<8x192xf32>
    %cst_68 = arith.constant 1.000000e+00 : f32
    %168 = vector.broadcast %cst_68 : f32 to vector<8x192xf32>
    %169 = arith.addf %168, %167 : vector<8x192xf32>
    %170 = arith.divf %168, %169 : vector<8x192xf32>
    %171 = vector.extract_strided_slice %164 {offsets = [0, 192], sizes = [8, 64], strides = [1, 1]} : vector<8x256xf32> to vector<8x64xf32>
    %172 = math.tanh %171 : vector<8x64xf32>
    %173 = vector.extract_strided_slice %170 {offsets = [0, 64], sizes = [8, 64], strides = [1, 1]} : vector<8x192xf32> to vector<8x64xf32>
    %174 = arith.mulf %173, %152 : vector<8x64xf32>
    %175 = vector.extract_strided_slice %170 {offsets = [0, 0], sizes = [8, 64], strides = [1, 1]} : vector<8x192xf32> to vector<8x64xf32>
    %176 = arith.mulf %175, %172 : vector<8x64xf32>
    %177 = arith.addf %174, %176 : vector<8x64xf32>
    %178 = vector.extract_strided_slice %170 {offsets = [0, 128], sizes = [8, 64], strides = [1, 1]} : vector<8x192xf32> to vector<8x64xf32>
    %179 = math.tanh %177 : vector<8x64xf32>
    %180 = arith.mulf %178, %179 : vector<8x64xf32>
    %181 = vector.extract_strided_slice %180 {offsets = [0, 0], sizes = [8, 32], strides = [1, 1]} : vector<8x64xf32> to vector<8x32xf32>
    %c48_69 = arith.constant 48 : index
    %c0_70 = arith.constant 0 : index
    %182 = vector.load %arg18[%c48_69, %c0_70] : memref<64x32xf32, #tpu.memory_space<vmem>>, vector<8x32xf32>
    tpu.vector_store %arg18[%c48_69, %c0_70], %181 {strides = array<i32>} : memref<64x32xf32, #tpu.memory_space<vmem>>, vector<8x32xf32>,
    %183 = vector.extract_strided_slice %180 {offsets = [0, 32], sizes = [8, 32], strides = [1, 1]} : vector<8x64xf32> to vector<8x32xf32>
    %c8_71 = arith.constant 8 : index
    %c0_72 = arith.constant 0 : index
    %184 = vector.load %arg19[%c8_71, %c0_72] : memref<64x32xf32, #tpu.memory_space<vmem>>, vector<8x32xf32>
    tpu.vector_store %arg19[%c8_71, %c0_72], %183 {strides = array<i32>} : memref<64x32xf32, #tpu.memory_space<vmem>>, vector<8x32xf32>,
    %c56_73 = arith.constant 56 : index
    %c0_74 = arith.constant 0 : index
    %185 = vector.load %arg17[%c56_73, %c0_74] : memref<64x512xf32, #tpu.memory_space<vmem>>, vector<8x256xf32>
    %c0_75 = arith.constant 0 : index
    %c256_76 = arith.constant 256 : index
    %186 = vector.load %arg17[%c0_75, %c256_76] : memref<64x512xf32, #tpu.memory_space<vmem>>, vector<8x256xf32>
    %187 = arith.addf %185, %186 : vector<8x256xf32>
    %cst_77 = arith.constant dense<0.000000e+00> : vector<8x256xf32>
    %188 = tpu.matmul %180, %7, %cst_77 {dimension_numbers = #tpu.dot_dimension_numbers<[1], [0], [0], [1], [0, 0, 1, 1], [], []>} : vector<8x64xf32>, vector<64x256xf32>, vector<8x256xf32> -> vector<8x256xf32>
    %189 = arith.addf %187, %188 : vector<8x256xf32>
    %190 = vector.extract_strided_slice %189 {offsets = [0, 0], sizes = [8, 192], strides = [1, 1]} : vector<8x256xf32> to vector<8x192xf32>
    %191 = arith.negf %190 : vector<8x192xf32>
    %192 = math.exp %191 : vector<8x192xf32>
    %cst_78 = arith.constant 1.000000e+00 : f32
    %193 = vector.broadcast %cst_78 : f32 to vector<8x192xf32>
    %194 = arith.addf %193, %192 : vector<8x192xf32>
    %195 = arith.divf %193, %194 : vector<8x192xf32>
    %196 = vector.extract_strided_slice %189 {offsets = [0, 192], sizes = [8, 64], strides = [1, 1]} : vector<8x256xf32> to vector<8x64xf32>
    %197 = math.tanh %196 : vector<8x64xf32>
    %198 = vector.extract_strided_slice %195 {offsets = [0, 64], sizes = [8, 64], strides = [1, 1]} : vector<8x192xf32> to vector<8x64xf32>
    %199 = arith.mulf %198, %177 : vector<8x64xf32>
    %200 = vector.extract_strided_slice %195 {offsets = [0, 0], sizes = [8, 64], strides = [1, 1]} : vector<8x192xf32> to vector<8x64xf32>
    %201 = arith.mulf %200, %197 : vector<8x64xf32>
    %202 = arith.addf %199, %201 : vector<8x64xf32>
    %203 = vector.extract_strided_slice %195 {offsets = [0, 128], sizes = [8, 64], strides = [1, 1]} : vector<8x192xf32> to vector<8x64xf32>
    %204 = math.tanh %202 : vector<8x64xf32>
    %205 = arith.mulf %203, %204 : vector<8x64xf32>
    %206 = vector.extract_strided_slice %205 {offsets = [0, 0], sizes = [8, 32], strides = [1, 1]} : vector<8x64xf32> to vector<8x32xf32>
    %c56_79 = arith.constant 56 : index
    %c0_80 = arith.constant 0 : index
    %207 = vector.load %arg18[%c56_79, %c0_80] : memref<64x32xf32, #tpu.memory_space<vmem>>, vector<8x32xf32>
    tpu.vector_store %arg18[%c56_79, %c0_80], %206 {strides = array<i32>} : memref<64x32xf32, #tpu.memory_space<vmem>>, vector<8x32xf32>,
    %208 = vector.extract_strided_slice %205 {offsets = [0, 32], sizes = [8, 32], strides = [1, 1]} : vector<8x64xf32> to vector<8x32xf32>
    %c0_81 = arith.constant 0 : index
    %c0_82 = arith.constant 0 : index
    %209 = vector.load %arg19[%c0_81, %c0_82] : memref<64x32xf32, #tpu.memory_space<vmem>>, vector<8x32xf32>
    tpu.vector_store %arg19[%c0_81, %c0_82], %208 {strides = array<i32>} : memref<64x32xf32, #tpu.memory_space<vmem>>, vector<8x32xf32>,
    %c0_83 = arith.constant 0 : index
    %c0_84 = arith.constant 0 : index
    %210 = vector.load %arg18[%c0_83, %c0_84] : memref<64x32xf32, #tpu.memory_space<vmem>>, vector<64x32xf32>
    %c0_85 = arith.constant 0 : index
    %c0_86 = arith.constant 0 : index
    %211 = vector.load %arg4[%c0_85, %c0_86] : memref<32x512xf32, #tpu.memory_space<vmem>>, vector<32x512xf32>
    %cst_87 = arith.constant dense<0.000000e+00> : vector<64x512xf32>
    %212 = tpu.matmul %210, %211, %cst_87 {dimension_numbers = #tpu.dot_dimension_numbers<[1], [0], [0], [1], [0, 0, 1, 1], [], []>} : vector<64x32xf32>, vector<32x512xf32>, vector<64x512xf32> -> vector<64x512xf32>
    %c0_88 = arith.constant 0 : index
    %c0_89 = arith.constant 0 : index
    %213 = vector.load %arg19[%c0_88, %c0_89] : memref<64x32xf32, #tpu.memory_space<vmem>>, vector<64x32xf32>
    %c0_90 = arith.constant 0 : index
    %c0_91 = arith.constant 0 : index
    %214 = vector.load %arg5[%c0_90, %c0_91] : memref<32x512xf32, #tpu.memory_space<vmem>>, vector<32x512xf32>
    %cst_92 = arith.constant dense<0.000000e+00> : vector<64x512xf32>
    %215 = tpu.matmul %213, %214, %cst_92 {dimension_numbers = #tpu.dot_dimension_numbers<[1], [0], [0], [1], [0, 0, 1, 1], [], []>} : vector<64x32xf32>, vector<32x512xf32>, vector<64x512xf32> -> vector<64x512xf32>
    %216 = arith.addf %212, %215 : vector<64x512xf32>
    %c0_93 = arith.constant 0 : index
    %c0_94 = arith.constant 0 : index
    %217 = vector.load %arg7[%c0_93, %c0_94] : memref<1x512xf32, #tpu.memory_space<vmem>>, vector<1x512xf32>
    %218 = vector.broadcast %217 : vector<1x512xf32> to vector<64x512xf32>
    %219 = arith.addf %216, %218 : vector<64x512xf32>
    %c0_95 = arith.constant 0 : index
    %c0_96 = arith.constant 0 : index
    %220 = vector.load %arg17[%c0_95, %c0_96] : memref<64x512xf32, #tpu.memory_space<vmem>>, vector<64x512xf32>
    tpu.vector_store %arg17[%c0_95, %c0_96], %219 {strides = array<i32>} : memref<64x512xf32, #tpu.memory_space<vmem>>, vector<64x512xf32>,
    %c0_97 = arith.constant 0 : index
    %c0_98 = arith.constant 0 : index
    %221 = vector.load %arg6[%c0_97, %c0_98] : memref<64x256xf32, #tpu.memory_space<vmem>>, vector<64x256xf32>
    %cst_99 = arith.constant 0.000000e+00 : f32
    %222 = vector.broadcast %cst_99 : f32 to vector<8x64xf32>
    %cst_100 = arith.constant 0.000000e+00 : f32
    %223 = vector.broadcast %cst_100 : f32 to vector<8x64xf32>
    %c0_101 = arith.constant 0 : index
    %c0_102 = arith.constant 0 : index
    %224 = vector.load %arg17[%c0_101, %c0_102] : memref<64x512xf32, #tpu.memory_space<vmem>>, vector<8x256xf32>
    %c56_103 = arith.constant 56 : index
    %c256_104 = arith.constant 256 : index
    %225 = vector.load %arg17[%c56_103, %c256_104] : memref<64x512xf32, #tpu.memory_space<vmem>>, vector<8x256xf32>
    %226 = arith.addf %224, %225 : vector<8x256xf32>
    %cst_105 = arith.constant dense<0.000000e+00> : vector<8x256xf32>
    %227 = tpu.matmul %222, %221, %cst_105 {dimension_numbers = #tpu.dot_dimension_numbers<[1], [0], [0], [1], [0, 0, 1, 1], [], []>} : vector<8x64xf32>, vector<64x256xf32>, vector<8x256xf32> -> vector<8x256xf32>
    %228 = arith.addf %226, %227 : vector<8x256xf32>
    %229 = vector.extract_strided_slice %228 {offsets = [0, 0], sizes = [8, 192], strides = [1, 1]} : vector<8x256xf32> to vector<8x192xf32>
    %230 = arith.negf %229 : vector<8x192xf32>
    %231 = math.exp %230 : vector<8x192xf32>
    %cst_106 = arith.constant 1.000000e+00 : f32
    %232 = vector.broadcast %cst_106 : f32 to vector<8x192xf32>
    %233 = arith.addf %232, %231 : vector<8x192xf32>
    %234 = arith.divf %232, %233 : vector<8x192xf32>
    %235 = vector.extract_strided_slice %228 {offsets = [0, 192], sizes = [8, 64], strides = [1, 1]} : vector<8x256xf32> to vector<8x64xf32>
    %236 = math.tanh %235 : vector<8x64xf32>
    %237 = vector.extract_strided_slice %234 {offsets = [0, 64], sizes = [8, 64], strides = [1, 1]} : vector<8x192xf32> to vector<8x64xf32>
    %238 = arith.mulf %237, %223 : vector<8x64xf32>
    %239 = vector.extract_strided_slice %234 {offsets = [0, 0], sizes = [8, 64], strides = [1, 1]} : vector<8x192xf32> to vector<8x64xf32>
    %240 = arith.mulf %239, %236 : vector<8x64xf32>
    %241 = arith.addf %238, %240 : vector<8x64xf32>
    %242 = vector.extract_strided_slice %234 {offsets = [0, 128], sizes = [8, 64], strides = [1, 1]} : vector<8x192xf32> to vector<8x64xf32>
    %243 = math.tanh %241 : vector<8x64xf32>
    %244 = arith.mulf %242, %243 : vector<8x64xf32>
    %245 = vector.extract_strided_slice %244 {offsets = [0, 0], sizes = [8, 32], strides = [1, 1]} : vector<8x64xf32> to vector<8x32xf32>
    %c0_107 = arith.constant 0 : index
    %c0_108 = arith.constant 0 : index
    %246 = vector.load %arg18[%c0_107, %c0_108] : memref<64x32xf32, #tpu.memory_space<vmem>>, vector<8x32xf32>
    tpu.vector_store %arg18[%c0_107, %c0_108], %245 {strides = array<i32>} : memref<64x32xf32, #tpu.memory_space<vmem>>, vector<8x32xf32>,
    %247 = vector.extract_strided_slice %244 {offsets = [0, 32], sizes = [8, 32], strides = [1, 1]} : vector<8x64xf32> to vector<8x32xf32>
    %c56_109 = arith.constant 56 : index
    %c0_110 = arith.constant 0 : index
    %248 = vector.load %arg19[%c56_109, %c0_110] : memref<64x32xf32, #tpu.memory_space<vmem>>, vector<8x32xf32>
    tpu.vector_store %arg19[%c56_109, %c0_110], %247 {strides = array<i32>} : memref<64x32xf32, #tpu.memory_space<vmem>>, vector<8x32xf32>,
    %c8_111 = arith.constant 8 : index
    %c0_112 = arith.constant 0 : index
    %249 = vector.load %arg17[%c8_111, %c0_112] : memref<64x512xf32, #tpu.memory_space<vmem>>, vector<8x256xf32>
    %c48_113 = arith.constant 48 : index
    %c256_114 = arith.constant 256 : index
    %250 = vector.load %arg17[%c48_113, %c256_114] : memref<64x512xf32, #tpu.memory_space<vmem>>, vector<8x256xf32>
    %251 = arith.addf %249, %250 : vector<8x256xf32>
    %cst_115 = arith.constant dense<0.000000e+00> : vector<8x256xf32>
    %252 = tpu.matmul %244, %221, %cst_115 {dimension_numbers = #tpu.dot_dimension_numbers<[1], [0], [0], [1], [0, 0, 1, 1], [], []>} : vector<8x64xf32>, vector<64x256xf32>, vector<8x256xf32> -> vector<8x256xf32>
    %253 = arith.addf %251, %252 : vector<8x256xf32>
    %254 = vector.extract_strided_slice %253 {offsets = [0, 0], sizes = [8, 192], strides = [1, 1]} : vector<8x256xf32> to vector<8x192xf32>
    %255 = arith.negf %254 : vector<8x192xf32>
    %256 = math.exp %255 : vector<8x192xf32>
    %cst_116 = arith.constant 1.000000e+00 : f32
    %257 = vector.broadcast %cst_116 : f32 to vector<8x192xf32>
    %258 = arith.addf %257, %256 : vector<8x192xf32>
    %259 = arith.divf %257, %258 : vector<8x192xf32>
    %260 = vector.extract_strided_slice %253 {offsets = [0, 192], sizes = [8, 64], strides = [1, 1]} : vector<8x256xf32> to vector<8x64xf32>
    %261 = math.tanh %260 : vector<8x64xf32>
    %262 = vector.extract_strided_slice %259 {offsets = [0, 64], sizes = [8, 64], strides = [1, 1]} : vector<8x192xf32> to vector<8x64xf32>
    %263 = arith.mulf %262, %241 : vector<8x64xf32>
    %264 = vector.extract_strided_slice %259 {offsets = [0, 0], sizes = [8, 64], strides = [1, 1]} : vector<8x192xf32> to vector<8x64xf32>
    %265 = arith.mulf %264, %261 : vector<8x64xf32>
    %266 = arith.addf %263, %265 : vector<8x64xf32>
    %267 = vector.extract_strided_slice %259 {offsets = [0, 128], sizes = [8, 64], strides = [1, 1]} : vector<8x192xf32> to vector<8x64xf32>
    %268 = math.tanh %266 : vector<8x64xf32>
    %269 = arith.mulf %267, %268 : vector<8x64xf32>
    %270 = vector.extract_strided_slice %269 {offsets = [0, 0], sizes = [8, 32], strides = [1, 1]} : vector<8x64xf32> to vector<8x32xf32>
    %c8_117 = arith.constant 8 : index
    %c0_118 = arith.constant 0 : index
    %271 = vector.load %arg18[%c8_117, %c0_118] : memref<64x32xf32, #tpu.memory_space<vmem>>, vector<8x32xf32>
    tpu.vector_store %arg18[%c8_117, %c0_118], %270 {strides = array<i32>} : memref<64x32xf32, #tpu.memory_space<vmem>>, vector<8x32xf32>,
    %272 = vector.extract_strided_slice %269 {offsets = [0, 32], sizes = [8, 32], strides = [1, 1]} : vector<8x64xf32> to vector<8x32xf32>
    %c48_119 = arith.constant 48 : index
    %c0_120 = arith.constant 0 : index
    %273 = vector.load %arg19[%c48_119, %c0_120] : memref<64x32xf32, #tpu.memory_space<vmem>>, vector<8x32xf32>
    tpu.vector_store %arg19[%c48_119, %c0_120], %272 {strides = array<i32>} : memref<64x32xf32, #tpu.memory_space<vmem>>, vector<8x32xf32>,
    %c16_121 = arith.constant 16 : index
    %c0_122 = arith.constant 0 : index
    %274 = vector.load %arg17[%c16_121, %c0_122] : memref<64x512xf32, #tpu.memory_space<vmem>>, vector<8x256xf32>
    %c40_123 = arith.constant 40 : index
    %c256_124 = arith.constant 256 : index
    %275 = vector.load %arg17[%c40_123, %c256_124] : memref<64x512xf32, #tpu.memory_space<vmem>>, vector<8x256xf32>
    %276 = arith.addf %274, %275 : vector<8x256xf32>
    %cst_125 = arith.constant dense<0.000000e+00> : vector<8x256xf32>
    %277 = tpu.matmul %269, %221, %cst_125 {dimension_numbers = #tpu.dot_dimension_numbers<[1], [0], [0], [1], [0, 0, 1, 1], [], []>} : vector<8x64xf32>, vector<64x256xf32>, vector<8x256xf32> -> vector<8x256xf32>
    %278 = arith.addf %276, %277 : vector<8x256xf32>
    %279 = vector.extract_strided_slice %278 {offsets = [0, 0], sizes = [8, 192], strides = [1, 1]} : vector<8x256xf32> to vector<8x192xf32>
    %280 = arith.negf %279 : vector<8x192xf32>
    %281 = math.exp %280 : vector<8x192xf32>
    %cst_126 = arith.constant 1.000000e+00 : f32
    %282 = vector.broadcast %cst_126 : f32 to vector<8x192xf32>
    %283 = arith.addf %282, %281 : vector<8x192xf32>
    %284 = arith.divf %282, %283 : vector<8x192xf32>
    %285 = vector.extract_strided_slice %278 {offsets = [0, 192], sizes = [8, 64], strides = [1, 1]} : vector<8x256xf32> to vector<8x64xf32>
    %286 = math.tanh %285 : vector<8x64xf32>
    %287 = vector.extract_strided_slice %284 {offsets = [0, 64], sizes = [8, 64], strides = [1, 1]} : vector<8x192xf32> to vector<8x64xf32>
    %288 = arith.mulf %287, %266 : vector<8x64xf32>
    %289 = vector.extract_strided_slice %284 {offsets = [0, 0], sizes = [8, 64], strides = [1, 1]} : vector<8x192xf32> to vector<8x64xf32>
    %290 = arith.mulf %289, %286 : vector<8x64xf32>
    %291 = arith.addf %288, %290 : vector<8x64xf32>
    %292 = vector.extract_strided_slice %284 {offsets = [0, 128], sizes = [8, 64], strides = [1, 1]} : vector<8x192xf32> to vector<8x64xf32>
    %293 = math.tanh %291 : vector<8x64xf32>
    %294 = arith.mulf %292, %293 : vector<8x64xf32>
    %295 = vector.extract_strided_slice %294 {offsets = [0, 0], sizes = [8, 32], strides = [1, 1]} : vector<8x64xf32> to vector<8x32xf32>
    %c16_127 = arith.constant 16 : index
    %c0_128 = arith.constant 0 : index
    %296 = vector.load %arg18[%c16_127, %c0_128] : memref<64x32xf32, #tpu.memory_space<vmem>>, vector<8x32xf32>
    tpu.vector_store %arg18[%c16_127, %c0_128], %295 {strides = array<i32>} : memref<64x32xf32, #tpu.memory_space<vmem>>, vector<8x32xf32>,
    %297 = vector.extract_strided_slice %294 {offsets = [0, 32], sizes = [8, 32], strides = [1, 1]} : vector<8x64xf32> to vector<8x32xf32>
    %c40_129 = arith.constant 40 : index
    %c0_130 = arith.constant 0 : index
    %298 = vector.load %arg19[%c40_129, %c0_130] : memref<64x32xf32, #tpu.memory_space<vmem>>, vector<8x32xf32>
    tpu.vector_store %arg19[%c40_129, %c0_130], %297 {strides = array<i32>} : memref<64x32xf32, #tpu.memory_space<vmem>>, vector<8x32xf32>,
    %c24_131 = arith.constant 24 : index
    %c0_132 = arith.constant 0 : index
    %299 = vector.load %arg17[%c24_131, %c0_132] : memref<64x512xf32, #tpu.memory_space<vmem>>, vector<8x256xf32>
    %c32_133 = arith.constant 32 : index
    %c256_134 = arith.constant 256 : index
    %300 = vector.load %arg17[%c32_133, %c256_134] : memref<64x512xf32, #tpu.memory_space<vmem>>, vector<8x256xf32>
    %301 = arith.addf %299, %300 : vector<8x256xf32>
    %cst_135 = arith.constant dense<0.000000e+00> : vector<8x256xf32>
    %302 = tpu.matmul %294, %221, %cst_135 {dimension_numbers = #tpu.dot_dimension_numbers<[1], [0], [0], [1], [0, 0, 1, 1], [], []>} : vector<8x64xf32>, vector<64x256xf32>, vector<8x256xf32> -> vector<8x256xf32>
    %303 = arith.addf %301, %302 : vector<8x256xf32>
    %304 = vector.extract_strided_slice %303 {offsets = [0, 0], sizes = [8, 192], strides = [1, 1]} : vector<8x256xf32> to vector<8x192xf32>
    %305 = arith.negf %304 : vector<8x192xf32>
    %306 = math.exp %305 : vector<8x192xf32>
    %cst_136 = arith.constant 1.000000e+00 : f32
    %307 = vector.broadcast %cst_136 : f32 to vector<8x192xf32>
    %308 = arith.addf %307, %306 : vector<8x192xf32>
    %309 = arith.divf %307, %308 : vector<8x192xf32>
    %310 = vector.extract_strided_slice %303 {offsets = [0, 192], sizes = [8, 64], strides = [1, 1]} : vector<8x256xf32> to vector<8x64xf32>
    %311 = math.tanh %310 : vector<8x64xf32>
    %312 = vector.extract_strided_slice %309 {offsets = [0, 64], sizes = [8, 64], strides = [1, 1]} : vector<8x192xf32> to vector<8x64xf32>
    %313 = arith.mulf %312, %291 : vector<8x64xf32>
    %314 = vector.extract_strided_slice %309 {offsets = [0, 0], sizes = [8, 64], strides = [1, 1]} : vector<8x192xf32> to vector<8x64xf32>
    %315 = arith.mulf %314, %311 : vector<8x64xf32>
    %316 = arith.addf %313, %315 : vector<8x64xf32>
    %317 = vector.extract_strided_slice %309 {offsets = [0, 128], sizes = [8, 64], strides = [1, 1]} : vector<8x192xf32> to vector<8x64xf32>
    %318 = math.tanh %316 : vector<8x64xf32>
    %319 = arith.mulf %317, %318 : vector<8x64xf32>
    %320 = vector.extract_strided_slice %319 {offsets = [0, 0], sizes = [8, 32], strides = [1, 1]} : vector<8x64xf32> to vector<8x32xf32>
    %c24_137 = arith.constant 24 : index
    %c0_138 = arith.constant 0 : index
    %321 = vector.load %arg18[%c24_137, %c0_138] : memref<64x32xf32, #tpu.memory_space<vmem>>, vector<8x32xf32>
    tpu.vector_store %arg18[%c24_137, %c0_138], %320 {strides = array<i32>} : memref<64x32xf32, #tpu.memory_space<vmem>>, vector<8x32xf32>,
    %322 = vector.extract_strided_slice %319 {offsets = [0, 32], sizes = [8, 32], strides = [1, 1]} : vector<8x64xf32> to vector<8x32xf32>
    %c32_139 = arith.constant 32 : index
    %c0_140 = arith.constant 0 : index
    %323 = vector.load %arg19[%c32_139, %c0_140] : memref<64x32xf32, #tpu.memory_space<vmem>>, vector<8x32xf32>
    tpu.vector_store %arg19[%c32_139, %c0_140], %322 {strides = array<i32>} : memref<64x32xf32, #tpu.memory_space<vmem>>, vector<8x32xf32>,
    %c32_141 = arith.constant 32 : index
    %c0_142 = arith.constant 0 : index
    %324 = vector.load %arg17[%c32_141, %c0_142] : memref<64x512xf32, #tpu.memory_space<vmem>>, vector<8x256xf32>
    %c24_143 = arith.constant 24 : index
    %c256_144 = arith.constant 256 : index
    %325 = vector.load %arg17[%c24_143, %c256_144] : memref<64x512xf32, #tpu.memory_space<vmem>>, vector<8x256xf32>
    %326 = arith.addf %324, %325 : vector<8x256xf32>
    %cst_145 = arith.constant dense<0.000000e+00> : vector<8x256xf32>
    %327 = tpu.matmul %319, %221, %cst_145 {dimension_numbers = #tpu.dot_dimension_numbers<[1], [0], [0], [1], [0, 0, 1, 1], [], []>} : vector<8x64xf32>, vector<64x256xf32>, vector<8x256xf32> -> vector<8x256xf32>
    %328 = arith.addf %326, %327 : vector<8x256xf32>
    %329 = vector.extract_strided_slice %328 {offsets = [0, 0], sizes = [8, 192], strides = [1, 1]} : vector<8x256xf32> to vector<8x192xf32>
    %330 = arith.negf %329 : vector<8x192xf32>
    %331 = math.exp %330 : vector<8x192xf32>
    %cst_146 = arith.constant 1.000000e+00 : f32
    %332 = vector.broadcast %cst_146 : f32 to vector<8x192xf32>
    %333 = arith.addf %332, %331 : vector<8x192xf32>
    %334 = arith.divf %332, %333 : vector<8x192xf32>
    %335 = vector.extract_strided_slice %328 {offsets = [0, 192], sizes = [8, 64], strides = [1, 1]} : vector<8x256xf32> to vector<8x64xf32>
    %336 = math.tanh %335 : vector<8x64xf32>
    %337 = vector.extract_strided_slice %334 {offsets = [0, 64], sizes = [8, 64], strides = [1, 1]} : vector<8x192xf32> to vector<8x64xf32>
    %338 = arith.mulf %337, %316 : vector<8x64xf32>
    %339 = vector.extract_strided_slice %334 {offsets = [0, 0], sizes = [8, 64], strides = [1, 1]} : vector<8x192xf32> to vector<8x64xf32>
    %340 = arith.mulf %339, %336 : vector<8x64xf32>
    %341 = arith.addf %338, %340 : vector<8x64xf32>
    %342 = vector.extract_strided_slice %334 {offsets = [0, 128], sizes = [8, 64], strides = [1, 1]} : vector<8x192xf32> to vector<8x64xf32>
    %343 = math.tanh %341 : vector<8x64xf32>
    %344 = arith.mulf %342, %343 : vector<8x64xf32>
    %345 = vector.extract_strided_slice %344 {offsets = [0, 0], sizes = [8, 32], strides = [1, 1]} : vector<8x64xf32> to vector<8x32xf32>
    %c32_147 = arith.constant 32 : index
    %c0_148 = arith.constant 0 : index
    %346 = vector.load %arg18[%c32_147, %c0_148] : memref<64x32xf32, #tpu.memory_space<vmem>>, vector<8x32xf32>
    tpu.vector_store %arg18[%c32_147, %c0_148], %345 {strides = array<i32>} : memref<64x32xf32, #tpu.memory_space<vmem>>, vector<8x32xf32>,
    %347 = vector.extract_strided_slice %344 {offsets = [0, 32], sizes = [8, 32], strides = [1, 1]} : vector<8x64xf32> to vector<8x32xf32>
    %c24_149 = arith.constant 24 : index
    %c0_150 = arith.constant 0 : index
    %348 = vector.load %arg19[%c24_149, %c0_150] : memref<64x32xf32, #tpu.memory_space<vmem>>, vector<8x32xf32>
    tpu.vector_store %arg19[%c24_149, %c0_150], %347 {strides = array<i32>} : memref<64x32xf32, #tpu.memory_space<vmem>>, vector<8x32xf32>,
    %c40_151 = arith.constant 40 : index
    %c0_152 = arith.constant 0 : index
    %349 = vector.load %arg17[%c40_151, %c0_152] : memref<64x512xf32, #tpu.memory_space<vmem>>, vector<8x256xf32>
    %c16_153 = arith.constant 16 : index
    %c256_154 = arith.constant 256 : index
    %350 = vector.load %arg17[%c16_153, %c256_154] : memref<64x512xf32, #tpu.memory_space<vmem>>, vector<8x256xf32>
    %351 = arith.addf %349, %350 : vector<8x256xf32>
    %cst_155 = arith.constant dense<0.000000e+00> : vector<8x256xf32>
    %352 = tpu.matmul %344, %221, %cst_155 {dimension_numbers = #tpu.dot_dimension_numbers<[1], [0], [0], [1], [0, 0, 1, 1], [], []>} : vector<8x64xf32>, vector<64x256xf32>, vector<8x256xf32> -> vector<8x256xf32>
    %353 = arith.addf %351, %352 : vector<8x256xf32>
    %354 = vector.extract_strided_slice %353 {offsets = [0, 0], sizes = [8, 192], strides = [1, 1]} : vector<8x256xf32> to vector<8x192xf32>
    %355 = arith.negf %354 : vector<8x192xf32>
    %356 = math.exp %355 : vector<8x192xf32>
    %cst_156 = arith.constant 1.000000e+00 : f32
    %357 = vector.broadcast %cst_156 : f32 to vector<8x192xf32>
    %358 = arith.addf %357, %356 : vector<8x192xf32>
    %359 = arith.divf %357, %358 : vector<8x192xf32>
    %360 = vector.extract_strided_slice %353 {offsets = [0, 192], sizes = [8, 64], strides = [1, 1]} : vector<8x256xf32> to vector<8x64xf32>
    %361 = math.tanh %360 : vector<8x64xf32>
    %362 = vector.extract_strided_slice %359 {offsets = [0, 64], sizes = [8, 64], strides = [1, 1]} : vector<8x192xf32> to vector<8x64xf32>
    %363 = arith.mulf %362, %341 : vector<8x64xf32>
    %364 = vector.extract_strided_slice %359 {offsets = [0, 0], sizes = [8, 64], strides = [1, 1]} : vector<8x192xf32> to vector<8x64xf32>
    %365 = arith.mulf %364, %361 : vector<8x64xf32>
    %366 = arith.addf %363, %365 : vector<8x64xf32>
    %367 = vector.extract_strided_slice %359 {offsets = [0, 128], sizes = [8, 64], strides = [1, 1]} : vector<8x192xf32> to vector<8x64xf32>
    %368 = math.tanh %366 : vector<8x64xf32>
    %369 = arith.mulf %367, %368 : vector<8x64xf32>
    %370 = vector.extract_strided_slice %369 {offsets = [0, 0], sizes = [8, 32], strides = [1, 1]} : vector<8x64xf32> to vector<8x32xf32>
    %c40_157 = arith.constant 40 : index
    %c0_158 = arith.constant 0 : index
    %371 = vector.load %arg18[%c40_157, %c0_158] : memref<64x32xf32, #tpu.memory_space<vmem>>, vector<8x32xf32>
    tpu.vector_store %arg18[%c40_157, %c0_158], %370 {strides = array<i32>} : memref<64x32xf32, #tpu.memory_space<vmem>>, vector<8x32xf32>,
    %372 = vector.extract_strided_slice %369 {offsets = [0, 32], sizes = [8, 32], strides = [1, 1]} : vector<8x64xf32> to vector<8x32xf32>
    %c16_159 = arith.constant 16 : index
    %c0_160 = arith.constant 0 : index
    %373 = vector.load %arg19[%c16_159, %c0_160] : memref<64x32xf32, #tpu.memory_space<vmem>>, vector<8x32xf32>
    tpu.vector_store %arg19[%c16_159, %c0_160], %372 {strides = array<i32>} : memref<64x32xf32, #tpu.memory_space<vmem>>, vector<8x32xf32>,
    %c48_161 = arith.constant 48 : index
    %c0_162 = arith.constant 0 : index
    %374 = vector.load %arg17[%c48_161, %c0_162] : memref<64x512xf32, #tpu.memory_space<vmem>>, vector<8x256xf32>
    %c8_163 = arith.constant 8 : index
    %c256_164 = arith.constant 256 : index
    %375 = vector.load %arg17[%c8_163, %c256_164] : memref<64x512xf32, #tpu.memory_space<vmem>>, vector<8x256xf32>
    %376 = arith.addf %374, %375 : vector<8x256xf32>
    %cst_165 = arith.constant dense<0.000000e+00> : vector<8x256xf32>
    %377 = tpu.matmul %369, %221, %cst_165 {dimension_numbers = #tpu.dot_dimension_numbers<[1], [0], [0], [1], [0, 0, 1, 1], [], []>} : vector<8x64xf32>, vector<64x256xf32>, vector<8x256xf32> -> vector<8x256xf32>
    %378 = arith.addf %376, %377 : vector<8x256xf32>
    %379 = vector.extract_strided_slice %378 {offsets = [0, 0], sizes = [8, 192], strides = [1, 1]} : vector<8x256xf32> to vector<8x192xf32>
    %380 = arith.negf %379 : vector<8x192xf32>
    %381 = math.exp %380 : vector<8x192xf32>
    %cst_166 = arith.constant 1.000000e+00 : f32
    %382 = vector.broadcast %cst_166 : f32 to vector<8x192xf32>
    %383 = arith.addf %382, %381 : vector<8x192xf32>
    %384 = arith.divf %382, %383 : vector<8x192xf32>
    %385 = vector.extract_strided_slice %378 {offsets = [0, 192], sizes = [8, 64], strides = [1, 1]} : vector<8x256xf32> to vector<8x64xf32>
    %386 = math.tanh %385 : vector<8x64xf32>
    %387 = vector.extract_strided_slice %384 {offsets = [0, 64], sizes = [8, 64], strides = [1, 1]} : vector<8x192xf32> to vector<8x64xf32>
    %388 = arith.mulf %387, %366 : vector<8x64xf32>
    %389 = vector.extract_strided_slice %384 {offsets = [0, 0], sizes = [8, 64], strides = [1, 1]} : vector<8x192xf32> to vector<8x64xf32>
    %390 = arith.mulf %389, %386 : vector<8x64xf32>
    %391 = arith.addf %388, %390 : vector<8x64xf32>
    %392 = vector.extract_strided_slice %384 {offsets = [0, 128], sizes = [8, 64], strides = [1, 1]} : vector<8x192xf32> to vector<8x64xf32>
    %393 = math.tanh %391 : vector<8x64xf32>
    %394 = arith.mulf %392, %393 : vector<8x64xf32>
    %395 = vector.extract_strided_slice %394 {offsets = [0, 0], sizes = [8, 32], strides = [1, 1]} : vector<8x64xf32> to vector<8x32xf32>
    %c48_167 = arith.constant 48 : index
    %c0_168 = arith.constant 0 : index
    %396 = vector.load %arg18[%c48_167, %c0_168] : memref<64x32xf32, #tpu.memory_space<vmem>>, vector<8x32xf32>
    tpu.vector_store %arg18[%c48_167, %c0_168], %395 {strides = array<i32>} : memref<64x32xf32, #tpu.memory_space<vmem>>, vector<8x32xf32>,
    %397 = vector.extract_strided_slice %394 {offsets = [0, 32], sizes = [8, 32], strides = [1, 1]} : vector<8x64xf32> to vector<8x32xf32>
    %c8_169 = arith.constant 8 : index
    %c0_170 = arith.constant 0 : index
    %398 = vector.load %arg19[%c8_169, %c0_170] : memref<64x32xf32, #tpu.memory_space<vmem>>, vector<8x32xf32>
    tpu.vector_store %arg19[%c8_169, %c0_170], %397 {strides = array<i32>} : memref<64x32xf32, #tpu.memory_space<vmem>>, vector<8x32xf32>,
    %c56_171 = arith.constant 56 : index
    %c0_172 = arith.constant 0 : index
    %399 = vector.load %arg17[%c56_171, %c0_172] : memref<64x512xf32, #tpu.memory_space<vmem>>, vector<8x256xf32>
    %c0_173 = arith.constant 0 : index
    %c256_174 = arith.constant 256 : index
    %400 = vector.load %arg17[%c0_173, %c256_174] : memref<64x512xf32, #tpu.memory_space<vmem>>, vector<8x256xf32>
    %401 = arith.addf %399, %400 : vector<8x256xf32>
    %cst_175 = arith.constant dense<0.000000e+00> : vector<8x256xf32>
    %402 = tpu.matmul %394, %221, %cst_175 {dimension_numbers = #tpu.dot_dimension_numbers<[1], [0], [0], [1], [0, 0, 1, 1], [], []>} : vector<8x64xf32>, vector<64x256xf32>, vector<8x256xf32> -> vector<8x256xf32>
    %403 = arith.addf %401, %402 : vector<8x256xf32>
    %404 = vector.extract_strided_slice %403 {offsets = [0, 0], sizes = [8, 192], strides = [1, 1]} : vector<8x256xf32> to vector<8x192xf32>
    %405 = arith.negf %404 : vector<8x192xf32>
    %406 = math.exp %405 : vector<8x192xf32>
    %cst_176 = arith.constant 1.000000e+00 : f32
    %407 = vector.broadcast %cst_176 : f32 to vector<8x192xf32>
    %408 = arith.addf %407, %406 : vector<8x192xf32>
    %409 = arith.divf %407, %408 : vector<8x192xf32>
    %410 = vector.extract_strided_slice %403 {offsets = [0, 192], sizes = [8, 64], strides = [1, 1]} : vector<8x256xf32> to vector<8x64xf32>
    %411 = math.tanh %410 : vector<8x64xf32>
    %412 = vector.extract_strided_slice %409 {offsets = [0, 64], sizes = [8, 64], strides = [1, 1]} : vector<8x192xf32> to vector<8x64xf32>
    %413 = arith.mulf %412, %391 : vector<8x64xf32>
    %414 = vector.extract_strided_slice %409 {offsets = [0, 0], sizes = [8, 64], strides = [1, 1]} : vector<8x192xf32> to vector<8x64xf32>
    %415 = arith.mulf %414, %411 : vector<8x64xf32>
    %416 = arith.addf %413, %415 : vector<8x64xf32>
    %417 = vector.extract_strided_slice %409 {offsets = [0, 128], sizes = [8, 64], strides = [1, 1]} : vector<8x192xf32> to vector<8x64xf32>
    %418 = math.tanh %416 : vector<8x64xf32>
    %419 = arith.mulf %417, %418 : vector<8x64xf32>
    %420 = vector.extract_strided_slice %419 {offsets = [0, 0], sizes = [8, 32], strides = [1, 1]} : vector<8x64xf32> to vector<8x32xf32>
    %c56_177 = arith.constant 56 : index
    %c0_178 = arith.constant 0 : index
    %421 = vector.load %arg18[%c56_177, %c0_178] : memref<64x32xf32, #tpu.memory_space<vmem>>, vector<8x32xf32>
    tpu.vector_store %arg18[%c56_177, %c0_178], %420 {strides = array<i32>} : memref<64x32xf32, #tpu.memory_space<vmem>>, vector<8x32xf32>,
    %422 = vector.extract_strided_slice %419 {offsets = [0, 32], sizes = [8, 32], strides = [1, 1]} : vector<8x64xf32> to vector<8x32xf32>
    %c0_179 = arith.constant 0 : index
    %c0_180 = arith.constant 0 : index
    %423 = vector.load %arg19[%c0_179, %c0_180] : memref<64x32xf32, #tpu.memory_space<vmem>>, vector<8x32xf32>
    tpu.vector_store %arg19[%c0_179, %c0_180], %422 {strides = array<i32>} : memref<64x32xf32, #tpu.memory_space<vmem>>, vector<8x32xf32>,
    %c0_181 = arith.constant 0 : index
    %c0_182 = arith.constant 0 : index
    %424 = vector.load %arg18[%c0_181, %c0_182] : memref<64x32xf32, #tpu.memory_space<vmem>>, vector<64x32xf32>
    %c0_183 = arith.constant 0 : index
    %c0_184 = arith.constant 0 : index
    %425 = vector.load %arg19[%c0_183, %c0_184] : memref<64x32xf32, #tpu.memory_space<vmem>>, vector<64x32xf32>
    %c0_185 = arith.constant 0 : index
    %c0_186 = arith.constant 0 : index
    %426 = vector.load %arg8[%c0_185, %c0_186] : memref<32x32xf32, #tpu.memory_space<vmem>>, vector<32x32xf32>
    %cst_187 = arith.constant dense<0.000000e+00> : vector<64x32xf32>
    %427 = tpu.matmul %424, %426, %cst_187 {dimension_numbers = #tpu.dot_dimension_numbers<[1], [0], [0], [1], [0, 0, 1, 1], [], []>} : vector<64x32xf32>, vector<32x32xf32>, vector<64x32xf32> -> vector<64x32xf32>
    %c0_188 = arith.constant 0 : index
    %c0_189 = arith.constant 0 : index
    %428 = vector.load %arg9[%c0_188, %c0_189] : memref<32x32xf32, #tpu.memory_space<vmem>>, vector<32x32xf32>
    %cst_190 = arith.constant dense<0.000000e+00> : vector<64x32xf32>
    %429 = tpu.matmul %425, %428, %cst_190 {dimension_numbers = #tpu.dot_dimension_numbers<[1], [0], [0], [1], [0, 0, 1, 1], [], []>} : vector<64x32xf32>, vector<32x32xf32>, vector<64x32xf32> -> vector<64x32xf32>
    %430 = arith.addf %427, %429 : vector<64x32xf32>
    %c0_191 = arith.constant 0 : index
    %c0_192 = arith.constant 0 : index
    %431 = vector.load %arg10[%c0_191, %c0_192] : memref<1x32xf32, #tpu.memory_space<vmem>>, vector<1x32xf32>
    %432 = vector.broadcast %431 : vector<1x32xf32> to vector<64x32xf32>
    %433 = arith.addf %430, %432 : vector<64x32xf32>
    %434 = math.tanh %433 : vector<64x32xf32>
    %c0_193 = arith.constant 0 : index
    %c0_194 = arith.constant 0 : index
    %435 = vector.load %arg11[%c0_193, %c0_194] : memref<1x32xf32, #tpu.memory_space<vmem>>, vector<1x32xf32>
    %436 = vector.broadcast %435 : vector<1x32xf32> to vector<64x32xf32>
    %437 = arith.mulf %434, %436 : vector<64x32xf32>
    %cst_195 = arith.constant dense<0.000000e+00> : vector<64xf32>
    %438 = vector.multi_reduction <add>, %437, %cst_195 [1] : vector<64x32xf32> to vector<64xf32>
    %439 = vector.shape_cast %438 : vector<64xf32> to vector<64x1xf32>
    %c0_196 = arith.constant 0 : index
    %c0_197 = arith.constant 0 : index
    %440 = vector.load %arg12[%c0_196, %c0_197] : memref<1x1xf32, #tpu.memory_space<vmem>>, vector<1x1xf32>
    %441 = vector.broadcast %440 : vector<1x1xf32> to vector<64x1xf32>
    %442 = arith.addf %439, %441 : vector<64x1xf32>
    %443 = vector.extract_strided_slice %442 {offsets = [0, 0], sizes = [8, 1], strides = [1, 1]} : vector<64x1xf32> to vector<8x1xf32>
    %444 = vector.extract_strided_slice %442 {offsets = [8, 0], sizes = [8, 1], strides = [1, 1]} : vector<64x1xf32> to vector<8x1xf32>
    %445 = vector.extract_strided_slice %442 {offsets = [16, 0], sizes = [8, 1], strides = [1, 1]} : vector<64x1xf32> to vector<8x1xf32>
    %446 = vector.extract_strided_slice %442 {offsets = [24, 0], sizes = [8, 1], strides = [1, 1]} : vector<64x1xf32> to vector<8x1xf32>
    %447 = vector.extract_strided_slice %442 {offsets = [32, 0], sizes = [8, 1], strides = [1, 1]} : vector<64x1xf32> to vector<8x1xf32>
    %448 = vector.extract_strided_slice %442 {offsets = [40, 0], sizes = [8, 1], strides = [1, 1]} : vector<64x1xf32> to vector<8x1xf32>
    %449 = vector.extract_strided_slice %442 {offsets = [48, 0], sizes = [8, 1], strides = [1, 1]} : vector<64x1xf32> to vector<8x1xf32>
    %450 = vector.extract_strided_slice %442 {offsets = [56, 0], sizes = [8, 1], strides = [1, 1]} : vector<64x1xf32> to vector<8x1xf32>
    %451 = arith.maximumf %443, %444 : vector<8x1xf32>
    %452 = arith.maximumf %451, %445 : vector<8x1xf32>
    %453 = arith.maximumf %452, %446 : vector<8x1xf32>
    %454 = arith.maximumf %453, %447 : vector<8x1xf32>
    %455 = arith.maximumf %454, %448 : vector<8x1xf32>
    %456 = arith.maximumf %455, %449 : vector<8x1xf32>
    %457 = arith.maximumf %456, %450 : vector<8x1xf32>
    %458 = arith.subf %443, %457 : vector<8x1xf32>
    %459 = math.exp %458 : vector<8x1xf32>
    %460 = arith.subf %444, %457 : vector<8x1xf32>
    %461 = math.exp %460 : vector<8x1xf32>
    %462 = arith.subf %445, %457 : vector<8x1xf32>
    %463 = math.exp %462 : vector<8x1xf32>
    %464 = arith.subf %446, %457 : vector<8x1xf32>
    %465 = math.exp %464 : vector<8x1xf32>
    %466 = arith.subf %447, %457 : vector<8x1xf32>
    %467 = math.exp %466 : vector<8x1xf32>
    %468 = arith.subf %448, %457 : vector<8x1xf32>
    %469 = math.exp %468 : vector<8x1xf32>
    %470 = arith.subf %449, %457 : vector<8x1xf32>
    %471 = math.exp %470 : vector<8x1xf32>
    %472 = arith.subf %450, %457 : vector<8x1xf32>
    %473 = math.exp %472 : vector<8x1xf32>
    %474 = arith.addf %459, %461 : vector<8x1xf32>
    %475 = arith.addf %474, %463 : vector<8x1xf32>
    %476 = arith.addf %475, %465 : vector<8x1xf32>
    %477 = arith.addf %476, %467 : vector<8x1xf32>
    %478 = arith.addf %477, %469 : vector<8x1xf32>
    %479 = arith.addf %478, %471 : vector<8x1xf32>
    %480 = arith.addf %479, %473 : vector<8x1xf32>
    %481 = tpu.reciprocal %480 : vector<8x1xf32> -> vector<8x1xf32>
    %cst_198 = arith.constant 0.000000e+00 : f32
    %482 = vector.broadcast %cst_198 : f32 to vector<8x32xf32>
    %cst_199 = arith.constant 0.000000e+00 : f32
    %483 = vector.broadcast %cst_199 : f32 to vector<8x32xf32>
    %484 = arith.mulf %459, %481 : vector<8x1xf32>
    %485 = vector.extract_strided_slice %424 {offsets = [0, 0], sizes = [8, 32], strides = [1, 1]} : vector<64x32xf32> to vector<8x32xf32>
    %486 = vector.broadcast %484 : vector<8x1xf32> to vector<8x32xf32>
    %487 = arith.mulf %485, %486 : vector<8x32xf32>
    %488 = arith.addf %482, %487 : vector<8x32xf32>
    %489 = vector.extract_strided_slice %425 {offsets = [0, 0], sizes = [8, 32], strides = [1, 1]} : vector<64x32xf32> to vector<8x32xf32>
    %490 = vector.broadcast %484 : vector<8x1xf32> to vector<8x32xf32>
    %491 = arith.mulf %489, %490 : vector<8x32xf32>
    %492 = arith.addf %483, %491 : vector<8x32xf32>
    %493 = arith.mulf %461, %481 : vector<8x1xf32>
    %494 = vector.extract_strided_slice %424 {offsets = [8, 0], sizes = [8, 32], strides = [1, 1]} : vector<64x32xf32> to vector<8x32xf32>
    %495 = vector.broadcast %493 : vector<8x1xf32> to vector<8x32xf32>
    %496 = arith.mulf %494, %495 : vector<8x32xf32>
    %497 = arith.addf %488, %496 : vector<8x32xf32>
    %498 = vector.extract_strided_slice %425 {offsets = [8, 0], sizes = [8, 32], strides = [1, 1]} : vector<64x32xf32> to vector<8x32xf32>
    %499 = vector.broadcast %493 : vector<8x1xf32> to vector<8x32xf32>
    %500 = arith.mulf %498, %499 : vector<8x32xf32>
    %501 = arith.addf %492, %500 : vector<8x32xf32>
    %502 = arith.mulf %463, %481 : vector<8x1xf32>
    %503 = vector.extract_strided_slice %424 {offsets = [16, 0], sizes = [8, 32], strides = [1, 1]} : vector<64x32xf32> to vector<8x32xf32>
    %504 = vector.broadcast %502 : vector<8x1xf32> to vector<8x32xf32>
    %505 = arith.mulf %503, %504 : vector<8x32xf32>
    %506 = arith.addf %497, %505 : vector<8x32xf32>
    %507 = vector.extract_strided_slice %425 {offsets = [16, 0], sizes = [8, 32], strides = [1, 1]} : vector<64x32xf32> to vector<8x32xf32>
    %508 = vector.broadcast %502 : vector<8x1xf32> to vector<8x32xf32>
    %509 = arith.mulf %507, %508 : vector<8x32xf32>
    %510 = arith.addf %501, %509 : vector<8x32xf32>
    %511 = arith.mulf %465, %481 : vector<8x1xf32>
    %512 = vector.extract_strided_slice %424 {offsets = [24, 0], sizes = [8, 32], strides = [1, 1]} : vector<64x32xf32> to vector<8x32xf32>
    %513 = vector.broadcast %511 : vector<8x1xf32> to vector<8x32xf32>
    %514 = arith.mulf %512, %513 : vector<8x32xf32>
    %515 = arith.addf %506, %514 : vector<8x32xf32>
    %516 = vector.extract_strided_slice %425 {offsets = [24, 0], sizes = [8, 32], strides = [1, 1]} : vector<64x32xf32> to vector<8x32xf32>
    %517 = vector.broadcast %511 : vector<8x1xf32> to vector<8x32xf32>
    %518 = arith.mulf %516, %517 : vector<8x32xf32>
    %519 = arith.addf %510, %518 : vector<8x32xf32>
    %520 = arith.mulf %467, %481 : vector<8x1xf32>
    %521 = vector.extract_strided_slice %424 {offsets = [32, 0], sizes = [8, 32], strides = [1, 1]} : vector<64x32xf32> to vector<8x32xf32>
    %522 = vector.broadcast %520 : vector<8x1xf32> to vector<8x32xf32>
    %523 = arith.mulf %521, %522 : vector<8x32xf32>
    %524 = arith.addf %515, %523 : vector<8x32xf32>
    %525 = vector.extract_strided_slice %425 {offsets = [32, 0], sizes = [8, 32], strides = [1, 1]} : vector<64x32xf32> to vector<8x32xf32>
    %526 = vector.broadcast %520 : vector<8x1xf32> to vector<8x32xf32>
    %527 = arith.mulf %525, %526 : vector<8x32xf32>
    %528 = arith.addf %519, %527 : vector<8x32xf32>
    %529 = arith.mulf %469, %481 : vector<8x1xf32>
    %530 = vector.extract_strided_slice %424 {offsets = [40, 0], sizes = [8, 32], strides = [1, 1]} : vector<64x32xf32> to vector<8x32xf32>
    %531 = vector.broadcast %529 : vector<8x1xf32> to vector<8x32xf32>
    %532 = arith.mulf %530, %531 : vector<8x32xf32>
    %533 = arith.addf %524, %532 : vector<8x32xf32>
    %534 = vector.extract_strided_slice %425 {offsets = [40, 0], sizes = [8, 32], strides = [1, 1]} : vector<64x32xf32> to vector<8x32xf32>
    %535 = vector.broadcast %529 : vector<8x1xf32> to vector<8x32xf32>
    %536 = arith.mulf %534, %535 : vector<8x32xf32>
    %537 = arith.addf %528, %536 : vector<8x32xf32>
    %538 = arith.mulf %471, %481 : vector<8x1xf32>
    %539 = vector.extract_strided_slice %424 {offsets = [48, 0], sizes = [8, 32], strides = [1, 1]} : vector<64x32xf32> to vector<8x32xf32>
    %540 = vector.broadcast %538 : vector<8x1xf32> to vector<8x32xf32>
    %541 = arith.mulf %539, %540 : vector<8x32xf32>
    %542 = arith.addf %533, %541 : vector<8x32xf32>
    %543 = vector.extract_strided_slice %425 {offsets = [48, 0], sizes = [8, 32], strides = [1, 1]} : vector<64x32xf32> to vector<8x32xf32>
    %544 = vector.broadcast %538 : vector<8x1xf32> to vector<8x32xf32>
    %545 = arith.mulf %543, %544 : vector<8x32xf32>
    %546 = arith.addf %537, %545 : vector<8x32xf32>
    %547 = arith.mulf %473, %481 : vector<8x1xf32>
    %548 = vector.extract_strided_slice %424 {offsets = [56, 0], sizes = [8, 32], strides = [1, 1]} : vector<64x32xf32> to vector<8x32xf32>
    %549 = vector.broadcast %547 : vector<8x1xf32> to vector<8x32xf32>
    %550 = arith.mulf %548, %549 : vector<8x32xf32>
    %551 = arith.addf %542, %550 : vector<8x32xf32>
    %552 = vector.extract_strided_slice %425 {offsets = [56, 0], sizes = [8, 32], strides = [1, 1]} : vector<64x32xf32> to vector<8x32xf32>
    %553 = vector.broadcast %547 : vector<8x1xf32> to vector<8x32xf32>
    %554 = arith.mulf %552, %553 : vector<8x32xf32>
    %555 = arith.addf %546, %554 : vector<8x32xf32>
    %c0_200 = arith.constant 0 : index
    %c0_201 = arith.constant 0 : index
    %556 = vector.load %arg13[%c0_200, %c0_201] : memref<32x1xf32, #tpu.memory_space<vmem>>, vector<32x1xf32>
    %cst_202 = arith.constant dense<0.000000e+00> : vector<8x1xf32>
    %557 = tpu.matmul %551, %556, %cst_202 {dimension_numbers = #tpu.dot_dimension_numbers<[1], [0], [0], [1], [0, 0, 1, 1], [], []>} : vector<8x32xf32>, vector<32x1xf32>, vector<8x1xf32> -> vector<8x1xf32>
    %c0_203 = arith.constant 0 : index
    %c0_204 = arith.constant 0 : index
    %558 = vector.load %arg14[%c0_203, %c0_204] : memref<32x1xf32, #tpu.memory_space<vmem>>, vector<32x1xf32>
    %cst_205 = arith.constant dense<0.000000e+00> : vector<8x1xf32>
    %559 = tpu.matmul %555, %558, %cst_205 {dimension_numbers = #tpu.dot_dimension_numbers<[1], [0], [0], [1], [0, 0, 1, 1], [], []>} : vector<8x32xf32>, vector<32x1xf32>, vector<8x1xf32> -> vector<8x1xf32>
    %560 = arith.addf %557, %559 : vector<8x1xf32>
    %c0_206 = arith.constant 0 : index
    %c0_207 = arith.constant 0 : index
    %561 = vector.load %arg15[%c0_206, %c0_207] : memref<1x1xf32, #tpu.memory_space<vmem>>, vector<1x1xf32>
    %562 = vector.broadcast %561 : vector<1x1xf32> to vector<8x1xf32>
    %563 = arith.addf %560, %562 : vector<8x1xf32>
    %c0_208 = arith.constant 0 : index
    %c0_209 = arith.constant 0 : index
    %564 = vector.load %arg16[%c0_208, %c0_209] : memref<8x1xf32, #tpu.memory_space<vmem>>, vector<8x1xf32>
    tpu.vector_store %arg16[%c0_208, %c0_209], %563 {strides = array<i32>} : memref<8x1xf32, #tpu.memory_space<vmem>>, vector<8x1xf32>,
    return
  }
}

</mosaic_0001>

<llo_original>
// kernel: bilstm_forward.1
$region0: #{bilstm_forward.1}
  #allocation0 [shape = 'u32[]', space=smem, size = 0x4, offset = 0x4, fixed_abs, tag = 'smem constant byte address 0x4 - core index']
  #allocation1 [shape = 'u32[144,128]{1,0:T(1,128)}', space=vmem, size = 0x12000, scoped, tag = 'internal scratch']
  #allocation2 [shape = 'f32[64,512]{1,0:T(8,128)}', space=vmem, size = 0x20000, scoped, tag = 'scratch operand']
  #allocation3 [shape = 'f32[64,32]{1,0:T(8,128)}', space=vmem, size = 0x8000, scoped, tag = 'scratch operand']
  #allocation4 [shape = 'f32[64,32]{1,0:T(8,128)}', space=vmem, size = 0x8000, scoped, tag = 'scratch operand']
  #allocation5 [shape = 'f32[1,1]{1,0:T(1,128)S(1)}', space=vmem, size = 0x200, scoped, tag = 'scoped memory for bilstm_forward.1']
  #allocation6 [shape = 'f32[1,1]{1,0:T(1,128)S(1)}', space=vmem, size = 0x200, scoped, tag = 'scoped memory for bilstm_forward.1']
  %s0 = inlined_call_operand.vmem [shape: f32[64,8], index: 0, kind: input, shape index: {}]
  %s1 = inlined_call_operand.vmem [shape: f32[8,512], index: 1, kind: input, shape index: {}]
  %s2 = inlined_call_operand.vmem [shape: f32[64,256], index: 2, kind: input, shape index: {}]
  %s3 = inlined_call_operand.vmem [shape: f32[1,512], index: 3, kind: input, shape index: {}]
  %s4 = inlined_call_operand.hbm [shape: f32[32,512], index: 4, kind: input, shape index: {}]
  %s5 = inlined_call_operand.hbm [shape: f32[32,512], index: 5, kind: input, shape index: {}]
  %s6 = inlined_call_operand.hbm [shape: f32[64,256], index: 6, kind: input, shape index: {}]
  %s7 = inlined_call_operand.vmem [shape: f32[1,512], index: 7, kind: input, shape index: {}]
  %s8 = inlined_call_operand.vmem [shape: f32[32,32], index: 8, kind: input, shape index: {}]
  %s9 = inlined_call_operand.hbm [shape: f32[32,32], index: 9, kind: input, shape index: {}]
  %s10 = inlined_call_operand.vmem [shape: f32[1,32], index: 10, kind: input, shape index: {}]
  %s11 = inlined_call_operand.vmem [shape: f32[1,32], index: 11, kind: input, shape index: {}]
  %s12 = inlined_call_operand.<no memory space> [shape: f32[1,1], index: 12, kind: input, shape index: {}]
  %s13 = inlined_call_operand.vmem [shape: f32[32,1], index: 13, kind: input, shape index: {}]
  %s14 = inlined_call_operand.vmem [shape: f32[32,1], index: 14, kind: input, shape index: {}]
  %s15 = inlined_call_operand.<no memory space> [shape: f32[1,1], index: 15, kind: input, shape index: {}]
  %s16 = inlined_call_operand.vmem [shape: f32[8,1], index: 16, kind: output, shape index: {}]
  %s17 = sld [smem:[#allocation0]]
  $region90: #{bilstm_forward.1} parent=0
    _
  %s19 = ssub.s32 1, %s17
  %s20 = scalar_select 0, %s19, %s17
  %v21 = vstv %s12
  %22 = vst [vmem:[#allocation5] sm:$0x1] %v21
  %v23 = vstv %s15
  %24 = vst [vmem:[#allocation6] sm:$0x1] %v23
  $region1: #{bilstm_forward.1} parent=0
    #allocation7 [shape = 'u8[65536]{0}', space=vmem, size = 0x10000, scoped, tag = 'input window, operand 4, single buffered']
    #allocation8 [shape = 's32[1]{0}', space=sflag, size = 0x4, scoped, tag = 'scoped memory for bilstm_forward.1']
    #allocation9 [shape = 'u8[65536]{0}', space=vmem, size = 0x10000, scoped, tag = 'input window, operand 5, single buffered']
    #allocation10 [shape = 's32[1]{0}', space=sflag, size = 0x4, scoped, tag = 'scoped memory for bilstm_forward.1']
    #allocation11 [shape = 'u8[65536]{0}', space=vmem, size = 0x10000, scoped, tag = 'input window, operand 6, single buffered']
    #allocation12 [shape = 'u8[16384]{0}', space=vmem, size = 0x4000, scoped, tag = 'input window, operand 9, single buffered']
    #allocation13 [shape = 's32[1]{0}', space=sflag, size = 0x4, scoped, tag = 'scoped memory for bilstm_forward.1']
    %25 = vsyncpa [#allocation8], 0
    %26 = vsyncpa [#allocation10], 0
    %27 = vsyncpa [#allocation13], 0
    // Predicated region
    $region2: #{bilstm_forward.1} parent=1 // pred_check
      _
    $region3: #{bilstm_forward.1} parent=1 // pred_check_branch
      %29 = sbr.rel (0) target = $region5
    $region4: #{bilstm_forward.1} parent=1 // pred_region
      _
    $region5: #{bilstm_forward.1} parent=1 // pred_fallthru
      _
    // Predicated region
    $region6: #{bilstm_forward.1} parent=1 // pred_check
      _
    $region7: #{bilstm_forward.1} parent=1 // pred_check_branch
      %31 = sbr.rel (0) target = $region9
    $region8: #{bilstm_forward.1} parent=1 // pred_region
      _
    $region9: #{bilstm_forward.1} parent=1 // pred_fallthru
      _
    // Predicated region
    $region10: #{bilstm_forward.1} parent=1 // pred_check
      _
    $region11: #{bilstm_forward.1} parent=1 // pred_check_branch
      %33 = sbr.rel (0) target = $region13
    $region12: #{bilstm_forward.1} parent=1 // pred_region
      _
    $region13: #{bilstm_forward.1} parent=1 // pred_fallthru
      _
    // Predicated region
    $region14: #{bilstm_forward.1} parent=1 // pred_check
      _
    $region15: #{bilstm_forward.1} parent=1 // pred_check_branch
      %35 = sbr.rel (0) target = $region17
    $region16: #{bilstm_forward.1} parent=1 // pred_region
      _
    $region17: #{bilstm_forward.1} parent=1 // pred_fallthru
      _
    // Predicated region
    $region18: #{bilstm_forward.1} parent=1 // pred_check
      _
    $region19: #{bilstm_forward.1} parent=1 // pred_check_branch
      %37 = sbr.rel (0) target = $region21
    $region20: #{bilstm_forward.1} parent=1 // pred_region
      %s39 = ssub.s32 2048, 2048
      %40 = vsyncadd [#allocation8], %s39
      %s41 = sshll.u32 [#allocation7], 4
      %s42 = int_to_ptr.vmem [resolvable:$true] %s41
      %47 = dma.hbm_to_vmem [thread:$0]  %s4, 2048, %s42, [#allocation8], 512, 512, 32
    $region21: #{bilstm_forward.1} parent=1 // pred_fallthru
      _
    // Predicated region
    $region22: #{bilstm_forward.1} parent=1 // pred_check
      _
    $region23: #{bilstm_forward.1} parent=1 // pred_check_branch
      %49 = sbr.rel (0) target = $region25
    $region24: #{bilstm_forward.1} parent=1 // pred_region
      %s51 = ssub.s32 2048, 2048
      %52 = vsyncadd [#allocation10], %s51
      %s53 = sshll.u32 [#allocation9], 4
      %s54 = int_to_ptr.vmem [resolvable:$true] %s53
      %59 = dma.hbm_to_vmem [thread:$0]  %s5, 2048, %s54, [#allocation10], 512, 512, 32
    $region25: #{bilstm_forward.1} parent=1 // pred_fallthru
      _
    // Predicated region
    $region26: #{bilstm_forward.1} parent=1 // pred_check
      _
    $region27: #{bilstm_forward.1} parent=1 // pred_check_branch
      %61 = sbr.rel (0) target = $region29
    $region28: #{bilstm_forward.1} parent=1 // pred_region
      %s63 = ssub.s32 2048, 2048
      %64 = vsyncadd [#allocation10], %s63
      %s65 = sshll.u32 [#allocation11], 4
      %s66 = int_to_ptr.vmem [resolvable:$true] %s65
      %71 = dma.hbm_to_vmem [thread:$0]  %s6, 2048, %s66, [#allocation10], 256, 256, 16
    $region29: #{bilstm_forward.1} parent=1 // pred_fallthru
      _
    // Predicated region
    $region30: #{bilstm_forward.1} parent=1 // pred_check
      _
    $region31: #{bilstm_forward.1} parent=1 // pred_check_branch
      %73 = sbr.rel (0) target = $region33
    $region32: #{bilstm_forward.1} parent=1 // pred_region
      _
    $region33: #{bilstm_forward.1} parent=1 // pred_fallthru
      _
    // Predicated region
    $region34: #{bilstm_forward.1} parent=1 // pred_check
      _
    $region35: #{bilstm_forward.1} parent=1 // pred_check_branch
      %75 = sbr.rel (0) target = $region37
    $region36: #{bilstm_forward.1} parent=1 // pred_region
      _
    $region37: #{bilstm_forward.1} parent=1 // pred_fallthru
      _
    // Predicated region
    $region38: #{bilstm_forward.1} parent=1 // pred_check
      _
    $region39: #{bilstm_forward.1} parent=1 // pred_check_branch
      %77 = sbr.rel (0) target = $region41
    $region40: #{bilstm_forward.1} parent=1 // pred_region
      %s79 = ssub.s32 512, 512
      %80 = vsyncadd [#allocation13], %s79
      %s81 = sshll.u32 [#allocation12], 4
      %s82 = int_to_ptr.vmem [resolvable:$true] %s81
      %87 = dma.hbm_to_vmem [thread:$0]  %s9, 512, %s82, [#allocation13], 128, 128, 8
    $region41: #{bilstm_forward.1} parent=1 // pred_fallthru
      _
    // Predicated region
    $region42: #{bilstm_forward.1} parent=1 // pred_check
      _
    $region43: #{bilstm_forward.1} parent=1 // pred_check_branch
      %89 = sbr.rel (0) target = $region45
    $region44: #{bilstm_forward.1} parent=1 // pred_region
      _
    $region45: #{bilstm_forward.1} parent=1 // pred_fallthru
      _
    // Predicated region
    $region46: #{bilstm_forward.1} parent=1 // pred_check
      _
    $region47: #{bilstm_forward.1} parent=1 // pred_check_branch
      %91 = sbr.rel (0) target = $region49
    $region48: #{bilstm_forward.1} parent=1 // pred_region
      _
    $region49: #{bilstm_forward.1} parent=1 // pred_fallthru
      _
    // Predicated region
    $region50: #{bilstm_forward.1} parent=1 // pred_check
      _
    $region51: #{bilstm_forward.1} parent=1 // pred_check_branch
      %93 = sbr.rel (0) target = $region53
    $region52: #{bilstm_forward.1} parent=1 // pred_region
      _
    $region53: #{bilstm_forward.1} parent=1 // pred_fallthru
      _
    // Predicated region
    $region54: #{bilstm_forward.1} parent=1 // pred_check
      _
    $region55: #{bilstm_forward.1} parent=1 // pred_check_branch
      %95 = sbr.rel (0) target = $region57
    $region56: #{bilstm_forward.1} parent=1 // pred_region
      _
    $region57: #{bilstm_forward.1} parent=1 // pred_fallthru
      _
    // Predicated region
    $region58: #{bilstm_forward.1} parent=1 // pred_check
      _
    $region59: #{bilstm_forward.1} parent=1 // pred_check_branch
      %97 = sbr.rel (0) target = $region61
    $region60: #{bilstm_forward.1} parent=1 // pred_region
      _
    $region61: #{bilstm_forward.1} parent=1 // pred_fallthru
      _
    // Predicated region
    $region62: #{bilstm_forward.1} parent=1 // pred_check
      _
    $region63: #{bilstm_forward.1} parent=1 // pred_check_branch
      %99 = sbr.rel (0) target = $region65
    $region64: #{bilstm_forward.1} parent=1 // pred_region
      _
    $region65: #{bilstm_forward.1} parent=1 // pred_fallthru
      _
    // Predicated region
    $region66: #{bilstm_forward.1} parent=1 // pred_check
      _
    $region67: #{bilstm_forward.1} parent=1 // pred_check_branch
      %101 = sbr.rel (0) target = $region69
    $region68: #{bilstm_forward.1} parent=1 // pred_region
      %102 = dma.done [#allocation8], 2048
    $region69: #{bilstm_forward.1} parent=1 // pred_fallthru
      _
    // Predicated region
    $region70: #{bilstm_forward.1} parent=1 // pred_check
      _
    $region71: #{bilstm_forward.1} parent=1 // pred_check_branch
      %104 = sbr.rel (0) target = $region73
    $region72: #{bilstm_forward.1} parent=1 // pred_region
      %105 = dma.done [#allocation10], 2048
    $region73: #{bilstm_forward.1} parent=1 // pred_fallthru
      _
    // Predicated region
    $region74: #{bilstm_forward.1} parent=1 // pred_check
      _
    $region75: #{bilstm_forward.1} parent=1 // pred_check_branch
      %107 = sbr.rel (0) target = $region77
    $region76: #{bilstm_forward.1} parent=1 // pred_region
      %108 = dma.done [#allocation10], 2048
    $region77: #{bilstm_forward.1} parent=1 // pred_fallthru
      _
    // Predicated region
    $region78: #{bilstm_forward.1} parent=1 // pred_check
      _
    $region79: #{bilstm_forward.1} parent=1 // pred_check_branch
      %110 = sbr.rel (0) target = $region81
    $region80: #{bilstm_forward.1} parent=1 // pred_region
      %111 = dma.done [#allocation13], 512
    $region81: #{bilstm_forward.1} parent=1 // pred_fallthru
      _
    %v112 = vld [vmem:[%s0] sm:$0xff]
    %v113 = vld [vmem:[%s0 + $0x8] sm:$0xff]
    %v114 = vld [vmem:[%s0 + $0x10] sm:$0xff]
    %v115 = vld [vmem:[%s0 + $0x18] sm:$0xff]
    %v116 = vld [vmem:[%s0 + $0x20] sm:$0xff]
    %v117 = vld [vmem:[%s0 + $0x28] sm:$0xff]
    %v118 = vld [vmem:[%s0 + $0x30] sm:$0xff]
    %v119 = vld [vmem:[%s0 + $0x38] sm:$0xff]
    %v120 = vld [vmem:[%s1] sm:$0xff]
    %v121 = vld [vmem:[%s1 + $0x8] sm:$0xff]
    %v122 = vld [vmem:[%s1 + $0x10] sm:$0xff]
    %v123 = vld [vmem:[%s1 + $0x18] sm:$0xff]
    %v124 = vld [vmem:[%s3] sm:$0xf]
    %v126 = vlaneseq
    %v127 = vshrl.u32 %v126, 7
    %v128 = vsub.s32 0, %v127
    %v129 = vrot.slane %v124, %v128
    %v130 = vlaneseq
    %v131 = vshrl.u32 %v130, 7
    %v132 = vsub.s32 1, %v131
    %v133 = vrot.slane %v124, %v132
    %v134 = vlaneseq
    %v135 = vshrl.u32 %v134, 7
    %v136 = vsub.s32 2, %v135
    %v137 = vrot.slane %v124, %v136
    %v138 = vlaneseq
    %v139 = vshrl.u32 %v138, 7
    %v140 = vsub.s32 3, %v139
    %v141 = vrot.slane %v124, %v140
    %vm146 = vcmask 64512
    %v148 = vsel %vm146, %v112, 0
    %v151 = vsel %vm146, %v113, 0
    %v154 = vsel %vm146, %v114, 0
    %v157 = vsel %vm146, %v115, 0
    %v160 = vsel %vm146, %v116, 0
    %v163 = vsel %vm146, %v117, 0
    %v166 = vsel %vm146, %v118, 0
    %v169 = vsel %vm146, %v119, 0
    %171 = vmatprep.subr.mxu0 %v121
    %172 = vmatpush1.msra.mxu0 %v120
    %173 = vmatprep.subr.mxu0 0.0
    %174 = vmatpush1.msra.mxu0 0.0
    %175 = vmatprep.subr.mxu0 0.0
    %176 = vmatpush1.msra.mxu0 0.0
    %177 = vmatprep.subr.mxu0 0.0
    %178 = vmatpush1.msra.mxu0 0.0
    %179 = vmatprep.subr.mxu0 0.0
    %180 = vmatpush1.msra.mxu0 0.0
    %181 = vmatprep.subr.mxu0 0.0
    %182 = vmatpush1.msra.mxu0 0.0
    %183 = vmatprep.subr.mxu0 0.0
    %184 = vmatpush1.msra.mxu0 0.0
    %185 = vmatprep.subr.mxu0 0.0
    %186 = vmatpush1.msra.mxu0 0.0
    %187 = vmatprep.subr.mxu0 0.0
    %188 = vmatpush1.msra.mxu0 0.0
    %189 = vmatprep.subr.mxu0 0.0
    %190 = vmatpush1.msra.mxu0 0.0
    %191 = vmatprep.subr.mxu0 0.0
    %192 = vmatpush1.msra.mxu0 0.0
    %193 = vmatprep.subr.mxu0 0.0
    %194 = vmatpush1.msra.mxu0 0.0
    %195 = vmatprep.subr.mxu0 0.0
    %196 = vmatpush1.msra.mxu0 0.0
    %197 = vmatprep.subr.mxu0 0.0
    %198 = vmatpush1.msra.mxu0 0.0
    %199 = vmatprep.subr.mxu0 0.0
    %200 = vmatpush1.msra.mxu0 0.0
    %201 = vmatprep.subr.mxu0 0.0
    %202 = vmatpush1.msra.mxu0 0.0
    %203 = vmatprep.subr.mxu0 0.0
    %204 = vmatpush1.msra.mxu0 0.0
    %205 = vmatprep.subr.mxu0 0.0
    %206 = vmatpush1.msra.mxu0 0.0
    %207 = vmatprep.subr.mxu0 0.0
    %208 = vmatpush1.msra.mxu0 0.0
    %209 = vmatprep.subr.mxu0 0.0
    %210 = vmatpush1.msra.mxu0 0.0
    %211 = vmatprep.subr.mxu0 0.0
    %212 = vmatpush1.msra.mxu0 0.0
    %213 = vmatprep.subr.mxu0 0.0
    %214 = vmatpush1.msra.mxu0 0.0
    %215 = vmatprep.subr.mxu0 0.0
    %216 = vmatpush1.msra.mxu0 0.0
    %217 = vmatprep.subr.mxu0 0.0
    %218 = vmatpush1.msra.mxu0 0.0
    %219 = vmatprep.subr.mxu0 0.0
    %220 = vmatpush1.msra.mxu0 0.0
    %221 = vmatprep.subr.mxu0 0.0
    %222 = vmatpush1.msra.mxu0 0.0
    %223 = vmatprep.subr.mxu0 0.0
    %224 = vmatpush1.msra.mxu0 0.0
    %225 = vmatprep.subr.mxu0 0.0
    %226 = vmatpush1.msra.mxu0 0.0
    %227 = vmatprep.subr.mxu0 0.0
    %228 = vmatpush1.msra.mxu0 0.0
    %229 = vmatprep.subr.mxu0 0.0
    %230 = vmatpush1.msra.mxu0 0.0
    %231 = vmatprep.subr.mxu0 0.0
    %232 = vmatpush1.msra.mxu0 0.0
    %233 = vmatprep.subr.mxu0 0.0
    %234 = vmatpush1.msra.mxu0 0.0
    %235 = vmatprep.mubr.f32.mxu0 0.0
    %236 = vmatmul.mubr.f32.gmra.mrb[0].mxu0 %v148
    %v237 = vpop.f32.mrb[0].mxu0
    %v238 = vadd.f32 %v129, %v237
    %v239 = vpop.f32.mrb[0].mxu0
    %v240 = vadd.f32 %v133, %v239
    %241 = vmatprep.mubr.f32.mxu0 0.0
    %242 = vmatmul.mubr.f32.gmra.mrb[0].mxu0 %v151
    %v243 = vpop.f32.mrb[0].mxu0
    %v244 = vadd.f32 %v129, %v243
    %v245 = vpop.f32.mrb[0].mxu0
    %v246 = vadd.f32 %v133, %v245
    %247 = vmatprep.mubr.f32.mxu0 0.0
    %248 = vmatmul.mubr.f32.gmra.mrb[0].mxu0 %v154
    %v249 = vpop.f32.mrb[0].mxu0
    %v250 = vadd.f32 %v129, %v249
    %v251 = vpop.f32.mrb[0].mxu0
    %v252 = vadd.f32 %v133, %v251
    %253 = vmatprep.mubr.f32.mxu0 0.0
    %254 = vmatmul.mubr.f32.gmra.mrb[0].mxu0 %v157
    %v255 = vpop.f32.mrb[0].mxu0
    %v256 = vadd.f32 %v129, %v255
    %v257 = vpop.f32.mrb[0].mxu0
    %v258 = vadd.f32 %v133, %v257
    %259 = vmatprep.mubr.f32.mxu0 0.0
    %260 = vmatmul.mubr.f32.gmra.mrb[0].mxu0 %v160
    %v261 = vpop.f32.mrb[0].mxu0
    %v262 = vadd.f32 %v129, %v261
    %v263 = vpop.f32.mrb[0].mxu0
    %v264 = vadd.f32 %v133, %v263
    %265 = vmatprep.mubr.f32.mxu0 0.0
    %266 = vmatmul.mubr.f32.gmra.mrb[0].mxu0 %v163
    %v267 = vpop.f32.mrb[0].mxu0
    %v268 = vadd.f32 %v129, %v267
    %v269 = vpop.f32.mrb[0].mxu0
    %v270 = vadd.f32 %v133, %v269
    %271 = vmatprep.mubr.f32.mxu0 0.0
    %272 = vmatmul.mubr.f32.gmra.mrb[0].mxu0 %v166
    %v273 = vpop.f32.mrb[0].mxu0
    %v274 = vadd.f32 %v129, %v273
    %v275 = vpop.f32.mrb[0].mxu0
    %v276 = vadd.f32 %v133, %v275
    %277 = vmatprep.mubr.f32.mxu0 0.0
    %278 = vmatmul.mubr.f32.gmra.mrb[0].mxu0 %v169
    %v279 = vpop.f32.mrb[0].mxu0
    %v280 = vadd.f32 %v129, %v279
    %v281 = vpop.f32.mrb[0].mxu0
    %v282 = vadd.f32 %v133, %v281
    %283 = vdwg.mxu0
    %284 = vmatprep.subr.mxu0 %v123
    %285 = vmatpush1.msra.mxu0 %v122
    %286 = vmatprep.subr.mxu0 0.0
    %287 = vmatpush1.msra.mxu0 0.0
    %288 = vmatprep.subr.mxu0 0.0
    %289 = vmatpush1.msra.mxu0 0.0
    %290 = vmatprep.subr.mxu0 0.0
    %291 = vmatpush1.msra.mxu0 0.0
    %292 = vmatprep.subr.mxu0 0.0
    %293 = vmatpush1.msra.mxu0 0.0
    %294 = vmatprep.subr.mxu0 0.0
    %295 = vmatpush1.msra.mxu0 0.0
    %296 = vmatprep.subr.mxu0 0.0
    %297 = vmatpush1.msra.mxu0 0.0
    %298 = vmatprep.subr.mxu0 0.0
    %299 = vmatpush1.msra.mxu0 0.0
    %300 = vmatprep.subr.mxu0 0.0
    %301 = vmatpush1.msra.mxu0 0.0
    %302 = vmatprep.subr.mxu0 0.0
    %303 = vmatpush1.msra.mxu0 0.0
    %304 = vmatprep.subr.mxu0 0.0
    %305 = vmatpush1.msra.mxu0 0.0
    %306 = vmatprep.subr.mxu0 0.0
    %307 = vmatpush1.msra.mxu0 0.0
    %308 = vmatprep.subr.mxu0 0.0
    %309 = vmatpush1.msra.mxu0 0.0
    %310 = vmatprep.subr.mxu0 0.0
    %311 = vmatpush1.msra.mxu0 0.0
    %312 = vmatprep.subr.mxu0 0.0
    %313 = vmatpush1.msra.mxu0 0.0
    %314 = vmatprep.subr.mxu0 0.0
    %315 = vmatpush1.msra.mxu0 0.0
    %316 = vmatprep.subr.mxu0 0.0
    %317 = vmatpush1.msra.mxu0 0.0
    %318 = vmatprep.subr.mxu0 0.0
    %319 = vmatpush1.msra.mxu0 0.0
    %320 = vmatprep.subr.mxu0 0.0
    %321 = vmatpush1.msra.mxu0 0.0
    %322 = vmatprep.subr.mxu0 0.0
    %323 = vmatpush1.msra.mxu0 0.0
    %324 = vmatprep.subr.mxu0 0.0
    %325 = vmatpush1.msra.mxu0 0.0
    %326 = vmatprep.subr.mxu0 0.0
    %327 = vmatpush1.msra.mxu0 0.0
    %328 = vmatprep.subr.mxu0 0.0
    %329 = vmatpush1.msra.mxu0 0.0
    %330 = vmatprep.subr.mxu0 0.0
    %331 = vmatpush1.msra.mxu0 0.0
    %332 = vmatprep.subr.mxu0 0.0
    %333 = vmatpush1.msra.mxu0 0.0
    %334 = vmatprep.subr.mxu0 0.0
    %335 = vmatpush1.msra.mxu0 0.0
    %336 = vmatprep.subr.mxu0 0.0
    %337 = vmatpush1.msra.mxu0 0.0
    %338 = vmatprep.subr.mxu0 0.0
    %339 = vmatpush1.msra.mxu0 0.0
    %340 = vmatprep.subr.mxu0 0.0
    %341 = vmatpush1.msra.mxu0 0.0
    %342 = vmatprep.subr.mxu0 0.0
    %343 = vmatpush1.msra.mxu0 0.0
    %344 = vmatprep.subr.mxu0 0.0
    %345 = vmatpush1.msra.mxu0 0.0
    %346 = vmatprep.subr.mxu0 0.0
    %347 = vmatpush1.msra.mxu0 0.0
    %348 = vmatprep.mubr.f32.mxu0 0.0
    %349 = vmatmul.mubr.f32.gmra.mrb[0].mxu0 %v148
    %v350 = vpop.f32.mrb[0].mxu0
    %v351 = vadd.f32 %v137, %v350
    %v352 = vpop.f32.mrb[0].mxu0
    %v353 = vadd.f32 %v141, %v352
    %354 = vmatprep.mubr.f32.mxu0 0.0
    %355 = vmatmul.mubr.f32.gmra.mrb[0].mxu0 %v151
    %v356 = vpop.f32.mrb[0].mxu0
    %v357 = vadd.f32 %v137, %v356
    %v358 = vpop.f32.mrb[0].mxu0
    %v359 = vadd.f32 %v141, %v358
    %360 = vmatprep.mubr.f32.mxu0 0.0
    %361 = vmatmul.mubr.f32.gmra.mrb[0].mxu0 %v154
    %v362 = vpop.f32.mrb[0].mxu0
    %v363 = vadd.f32 %v137, %v362
    %v364 = vpop.f32.mrb[0].mxu0
    %v365 = vadd.f32 %v141, %v364
    %366 = vmatprep.mubr.f32.mxu0 0.0
    %367 = vmatmul.mubr.f32.gmra.mrb[0].mxu0 %v157
    %v368 = vpop.f32.mrb[0].mxu0
    %v369 = vadd.f32 %v137, %v368
    %v370 = vpop.f32.mrb[0].mxu0
    %v371 = vadd.f32 %v141, %v370
    %372 = vmatprep.mubr.f32.mxu0 0.0
    %373 = vmatmul.mubr.f32.gmra.mrb[0].mxu0 %v160
    %v374 = vpop.f32.mrb[0].mxu0
    %v375 = vadd.f32 %v137, %v374
    %v376 = vpop.f32.mrb[0].mxu0
    %v377 = vadd.f32 %v141, %v376
    %378 = vmatprep.mubr.f32.mxu0 0.0
    %379 = vmatmul.mubr.f32.gmra.mrb[0].mxu0 %v163
    %v380 = vpop.f32.mrb[0].mxu0
    %v381 = vadd.f32 %v137, %v380
    %v382 = vpop.f32.mrb[0].mxu0
    %v383 = vadd.f32 %v141, %v382
    %384 = vmatprep.mubr.f32.mxu0 0.0
    %385 = vmatmul.mubr.f32.gmra.mrb[0].mxu0 %v166
    %v386 = vpop.f32.mrb[0].mxu0
    %v387 = vadd.f32 %v137, %v386
    %v388 = vpop.f32.mrb[0].mxu0
    %v389 = vadd.f32 %v141, %v388
    %390 = vmatprep.mubr.f32.mxu0 0.0
    %391 = vmatmul.mubr.f32.gmra.mrb[0].mxu0 %v169
    %v392 = vpop.f32.mrb[0].mxu0
    %v393 = vadd.f32 %v137, %v392
    %v394 = vpop.f32.mrb[0].mxu0
    %v395 = vadd.f32 %v141, %v394
    %396 = vdwg.mxu0
    %397 = vst [vmem:[#allocation2] sm:$0xff] %v238
    %398 = vst [vmem:[#allocation2 + $0x8] sm:$0xff] %v240
    %399 = vst [vmem:[#allocation2 + $0x10] sm:$0xff] %v351
    %400 = vst [vmem:[#allocation2 + $0x18] sm:$0xff] %v353
    %401 = vst [vmem:[#allocation2 + $0x20] sm:$0xff] %v244
    %402 = vst [vmem:[#allocation2 + $0x28] sm:$0xff] %v246
    %403 = vst [vmem:[#allocation2 + $0x30] sm:$0xff] %v357
    %404 = vst [vmem:[#allocation2 + $0x38] sm:$0xff] %v359
    %405 = vst [vmem:[#allocation2 + $0x40] sm:$0xff] %v250
    %406 = vst [vmem:[#allocation2 + $0x48] sm:$0xff] %v252
    %407 = vst [vmem:[#allocation2 + $0x50] sm:$0xff] %v363
    %408 = vst [vmem:[#allocation2 + $0x58] sm:$0xff] %v365
    %409 = vst [vmem:[#allocation2 + $0x60] sm:$0xff] %v256
    %410 = vst [vmem:[#allocation2 + $0x68] sm:$0xff] %v258
    %411 = vst [vmem:[#allocation2 + $0x70] sm:$0xff] %v369
    %412 = vst [vmem:[#allocation2 + $0x78] sm:$0xff] %v371
    %413 = vst [vmem:[#allocation2 + $0x80] sm:$0xff] %v262
    %414 = vst [vmem:[#allocation2 + $0x88] sm:$0xff] %v264
    %415 = vst [vmem:[#allocation2 + $0x90] sm:$0xff] %v375
    %416 = vst [vmem:[#allocation2 + $0x98] sm:$0xff] %v377
    %417 = vst [vmem:[#allocation2 + $0xa0] sm:$0xff] %v268
    %418 = vst [vmem:[#allocation2 + $0xa8] sm:$0xff] %v270
    %419 = vst [vmem:[#allocation2 + $0xb0] sm:$0xff] %v381
    %420 = vst [vmem:[#allocation2 + $0xb8] sm:$0xff] %v383
    %421 = vst [vmem:[#allocation2 + $0xc0] sm:$0xff] %v274
    %422 = vst [vmem:[#allocation2 + $0xc8] sm:$0xff] %v276
    %423 = vst [vmem:[#allocation2 + $0xd0] sm:$0xff] %v387
    %424 = vst [vmem:[#allocation2 + $0xd8] sm:$0xff] %v389
    %425 = vst [vmem:[#allocation2 + $0xe0] sm:$0xff] %v280
    %426 = vst [vmem:[#allocation2 + $0xe8] sm:$0xff] %v282
    %427 = vst [vmem:[#allocation2 + $0xf0] sm:$0xff] %v393
    %428 = vst [vmem:[#allocation2 + $0xf8] sm:$0xff] %v395
    %v429 = vld [vmem:[%s2] sm:$0xff]
    %v430 = vld [vmem:[%s2 + $0x8] sm:$0xff]
    %v431 = vld [vmem:[%s2 + $0x10] sm:$0xff]
    %v432 = vld [vmem:[%s2 + $0x18] sm:$0xff]
    %v433 = vld [vmem:[%s2 + $0x20] sm:$0xff]
    %v434 = vld [vmem:[%s2 + $0x28] sm:$0xff]
    %v435 = vld [vmem:[%s2 + $0x30] sm:$0xff]
    %v436 = vld [vmem:[%s2 + $0x38] sm:$0xff]
    %v437 = vld [vmem:[%s2 + $0x40] sm:$0xff]
    %v438 = vld [vmem:[%s2 + $0x48] sm:$0xff]
    %v439 = vld [vmem:[%s2 + $0x50] sm:$0xff]
    %v440 = vld [vmem:[%s2 + $0x58] sm:$0xff]
    %v441 = vld [vmem:[%s2 + $0x60] sm:$0xff]
    %v442 = vld [vmem:[%s2 + $0x68] sm:$0xff]
    %v443 = vld [vmem:[%s2 + $0x70] sm:$0xff]
    %v444 = vld [vmem:[%s2 + $0x78] sm:$0xff]
    %v445 = vld [vmem:[#allocation2] sm:$0xff]
    %v446 = vld [vmem:[#allocation2 + $0x8] sm:$0xff]
    %v447 = vld [vmem:[#allocation2 + $0xf0] sm:$0xff]
    %v448 = vld [vmem:[#allocation2 + $0xf8] sm:$0xff]
    %v449 = vadd.f32 %v445, %v447
    %v450 = vadd.f32 %v446, %v448
    %vm451 = vcmask 523264
    %v453 = vsel %vm451, 0.0, 0
    %455 = vmatprep.subr.mxu0 %v430
    %456 = vmatpush1.msra.mxu0 %v429
    %457 = vmatprep.subr.mxu0 %v432
    %458 = vmatpush1.msra.mxu0 %v431
    %459 = vmatprep.subr.mxu0 %v434
    %460 = vmatpush1.msra.mxu0 %v433
    %461 = vmatprep.subr.mxu0 %v436
    %462 = vmatpush1.msra.mxu0 %v435
    %463 = vmatprep.subr.mxu0 %v438
    %464 = vmatpush1.msra.mxu0 %v437
    %465 = vmatprep.subr.mxu0 %v440
    %466 = vmatpush1.msra.mxu0 %v439
    %467 = vmatprep.subr.mxu0 %v442
    %468 = vmatpush1.msra.mxu0 %v441
    %469 = vmatprep.subr.mxu0 %v444
    %470 = vmatpush1.msra.mxu0 %v443
    %471 = vmatprep.subr.mxu0 0.0
    %472 = vmatpush1.msra.mxu0 0.0
    %473 = vmatprep.subr.mxu0 0.0
    %474 = vmatpush1.msra.mxu0 0.0
    %475 = vmatprep.subr.mxu0 0.0
    %476 = vmatpush1.msra.mxu0 0.0
    %477 = vmatprep.subr.mxu0 0.0
    %478 = vmatpush1.msra.mxu0 0.0
    %479 = vmatprep.subr.mxu0 0.0
    %480 = vmatpush1.msra.mxu0 0.0
    %481 = vmatprep.subr.mxu0 0.0
    %482 = vmatpush1.msra.mxu0 0.0
    %483 = vmatprep.subr.mxu0 0.0
    %484 = vmatpush1.msra.mxu0 0.0
    %485 = vmatprep.subr.mxu0 0.0
    %486 = vmatpush1.msra.mxu0 0.0
    %487 = vmatprep.subr.mxu0 0.0
    %488 = vmatpush1.msra.mxu0 0.0
    %489 = vmatprep.subr.mxu0 0.0
    %490 = vmatpush1.msra.mxu0 0.0
    %491 = vmatprep.subr.mxu0 0.0
    %492 = vmatpush1.msra.mxu0 0.0
    %493 = vmatprep.subr.mxu0 0.0
    %494 = vmatpush1.msra.mxu0 0.0
    %495 = vmatprep.subr.mxu0 0.0
    %496 = vmatpush1.msra.mxu0 0.0
    %497 = vmatprep.subr.mxu0 0.0
    %498 = vmatpush1.msra.mxu0 0.0
    %499 = vmatprep.subr.mxu0 0.0
    %500 = vmatpush1.msra.mxu0 0.0
    %501 = vmatprep.subr.mxu0 0.0
    %502 = vmatpush1.msra.mxu0 0.0
    %503 = vmatprep.subr.mxu0 0.0
    %504 = vmatpush1.msra.mxu0 0.0
    %505 = vmatprep.subr.mxu0 0.0
    %506 = vmatpush1.msra.mxu0 0.0
    %507 = vmatprep.subr.mxu0 0.0
    %508 = vmatpush1.msra.mxu0 0.0
    %509 = vmatprep.subr.mxu0 0.0
    %510 = vmatpush1.msra.mxu0 0.0
    %511 = vmatprep.subr.mxu0 0.0
    %512 = vmatpush1.msra.mxu0 0.0
    %513 = vmatprep.subr.mxu0 0.0
    %514 = vmatpush1.msra.mxu0 0.0
    %515 = vmatprep.subr.mxu0 0.0
    %516 = vmatpush1.msra.mxu0 0.0
    %517 = vmatprep.subr.mxu0 0.0
    %518 = vmatpush1.msra.mxu0 0.0
    %519 = vmatprep.mubr.f32.mxu0 0.0
    %520 = vmatmul.mubr.f32.gmra.mrb[0].mxu0 %v453
    %v521 = vpop.f32.mrb[0].mxu0
    %v522 = vadd.f32 0.0, %v521
    %v523 = vpop.f32.mrb[0].mxu0
    %v524 = vadd.f32 0.0, %v523
    %525 = vdwg.mxu0
    %v526 = vadd.f32 %v449, %v522
    %v527 = vadd.f32 %v450, %v524
    %v528 = vxor.u32 %v526, 2147483648
    %v529 = vxor.u32 %v527, 2147483648
    %v530 = vmul.f32 %v528, 1.442695
    %v531 = vpow.pop %v530
    %v532 = vmul.f32 %v529, 1.442695
    %v533 = vpow.pop %v532
    %v534 = vadd.f32 %v531, 1.0
    %v535 = vadd.f32 %v533, 1.0
    %v536 = vrcp.pop %v534
    %v537 = vmul.f32 1.0, %v536
    %v538 = vrcp.pop %v535
    %v539 = vmul.f32 1.0, %v538
    %v540 = vtanh.pop %v527
    %v541 = vmul.f32 %v537, 0.0
    %543 = vrot.lane.b32.xlu0 %v540, 64
    %v544 = vpop.permute.xlu0 %543
    %v546 = vmul.f32 %v537, %v544
    %548 = vrot.lane.b32.xlu0 %v546, 64
    %v549 = vpop.permute.xlu0 %548
    %v551 = vadd.f32 %v541, %v549
    %v552 = vtanh.pop %v551
    %554 = vrot.lane.b32.xlu0 %v552, 64
    %v555 = vpop.permute.xlu0 %554
    %v557 = vmul.f32 %v539, %v555
    %vm558 = vcmask 261120
    %559 = vst.msk [vmem:[#allocation3] sm:$0xff] %vm558, %v557
    %561 = vrot.lane.b32.xlu0 %v557, 96
    %v562 = vpop.permute.xlu0 %561
    %564 = vst.msk [vmem:[#allocation4 + $0x38] sm:$0xff] %vm558, %v562
    %v565 = vld [vmem:[#allocation2 + $0x20] sm:$0xff]
    %v566 = vld [vmem:[#allocation2 + $0x28] sm:$0xff]
    %v567 = vld [vmem:[#allocation2 + $0xd0] sm:$0xff]
    %v568 = vld [vmem:[#allocation2 + $0xd8] sm:$0xff]
    %v569 = vadd.f32 %v565, %v567
    %v570 = vadd.f32 %v566, %v568
    %v571 = vsel %vm451, %v557, 0
    %573 = vmatprep.subr.mxu0 %v430
    %574 = vmatpush1.msra.mxu0 %v429
    %575 = vmatprep.subr.mxu0 %v432
    %576 = vmatpush1.msra.mxu0 %v431
    %577 = vmatprep.subr.mxu0 %v434
    %578 = vmatpush1.msra.mxu0 %v433
    %579 = vmatprep.subr.mxu0 %v436
    %580 = vmatpush1.msra.mxu0 %v435
    %581 = vmatprep.subr.mxu0 %v438
    %582 = vmatpush1.msra.mxu0 %v437
    %583 = vmatprep.subr.mxu0 %v440
    %584 = vmatpush1.msra.mxu0 %v439
    %585 = vmatprep.subr.mxu0 %v442
    %586 = vmatpush1.msra.mxu0 %v441
    %587 = vmatprep.subr.mxu0 %v444
    %588 = vmatpush1.msra.mxu0 %v443
    %589 = vmatprep.subr.mxu0 0.0
    %590 = vmatpush1.msra.mxu0 0.0
    %591 = vmatprep.subr.mxu0 0.0
    %592 = vmatpush1.msra.mxu0 0.0
    %593 = vmatprep.subr.mxu0 0.0
    %594 = vmatpush1.msra.mxu0 0.0
    %595 = vmatprep.subr.mxu0 0.0
    %596 = vmatpush1.msra.mxu0 0.0
    %597 = vmatprep.subr.mxu0 0.0
    %598 = vmatpush1.msra.mxu0 0.0
    %599 = vmatprep.subr.mxu0 0.0
    %600 = vmatpush1.msra.mxu0 0.0
    %601 = vmatprep.subr.mxu0 0.0
    %602 = vmatpush1.msra.mxu0 0.0
    %603 = vmatprep.subr.mxu0 0.0
    %604 = vmatpush1.msra.mxu0 0.0
    %605 = vmatprep.subr.mxu0 0.0
    %606 = vmatpush1.msra.mxu0 0.0
    %607 = vmatprep.subr.mxu0 0.0
    %608 = vmatpush1.msra.mxu0 0.0
    %609 = vmatprep.subr.mxu0 0.0
    %610 = vmatpush1.msra.mxu0 0.0
    %611 = vmatprep.subr.mxu0 0.0
    %612 = vmatpush1.msra.mxu0 0.0
    %613 = vmatprep.subr.mxu0 0.0
    %614 = vmatpush1.msra.mxu0 0.0
    %615 = vmatprep.subr.mxu0 0.0
    %616 = vmatpush1.msra.mxu0 0.0
    %617 = vmatprep.subr.mxu0 0.0
    %618 = vmatpush1.msra.mxu0 0.0
    %619 = vmatprep.subr.mxu0 0.0
    %620 = vmatpush1.msra.mxu0 0.0
    %621 = vmatprep.subr.mxu0 0.0
    %622 = vmatpush1.msra.mxu0 0.0
    %623 = vmatprep.subr.mxu0 0.0
    %624 = vmatpush1.msra.mxu0 0.0
    %625 = vmatprep.subr.mxu0 0.0
    %626 = vmatpush1.msra.mxu0 0.0
    %627 = vmatprep.subr.mxu0 0.0
    %628 = vmatpush1.msra.mxu0 0.0
    %629 = vmatprep.subr.mxu0 0.0
    %630 = vmatpush1.msra.mxu0 0.0
    %631 = vmatprep.subr.mxu0 0.0
    %632 = vmatpush1.msra.mxu0 0.0
    %633 = vmatprep.subr.mxu0 0.0
    %634 = vmatpush1.msra.mxu0 0.0
    %635 = vmatprep.subr.mxu0 0.0
    %636 = vmatpush1.msra.mxu0 0.0
    %637 = vmatprep.mubr.f32.mxu0 0.0
    %638 = vmatmul.mubr.f32.gmra.mrb[0].mxu0 %v571
    %v639 = vpop.f32.mrb[0].mxu0
    %v640 = vadd.f32 0.0, %v639
    %v641 = vpop.f32.mrb[0].mxu0
    %v642 = vadd.f32 0.0, %v641
    %643 = vdwg.mxu0
    %v644 = vadd.f32 %v569, %v640
    %v645 = vadd.f32 %v570, %v642
    %v646 = vxor.u32 %v644, 2147483648
    %v647 = vxor.u32 %v645, 2147483648
    %v648 = vmul.f32 %v646, 1.442695
    %v649 = vpow.pop %v648
    %v650 = vmul.f32 %v647, 1.442695
    %v651 = vpow.pop %v650
    %v652 = vadd.f32 %v649, 1.0
    %v653 = vadd.f32 %v651, 1.0
    %v654 = vrcp.pop %v652
    %v655 = vmul.f32 1.0, %v654
    %v656 = vrcp.pop %v653
    %v657 = vmul.f32 1.0, %v656
    %v658 = vtanh.pop %v645
    %v659 = vmul.f32 %v655, %v551
    %661 = vrot.lane.b32.xlu0 %v658, 64
    %v662 = vpop.permute.xlu0 %661
    %v664 = vmul.f32 %v655, %v662
    %666 = vrot.lane.b32.xlu0 %v664, 64
    %v667 = vpop.permute.xlu0 %666
    %v669 = vadd.f32 %v659, %v667
    %v670 = vtanh.pop %v669
    %672 = vrot.lane.b32.xlu0 %v670, 64
    %v673 = vpop.permute.xlu0 %672
    %v675 = vmul.f32 %v657, %v673
    %676 = vst.msk [vmem:[#allocation3 + $0x8] sm:$0xff] %vm558, %v675
    %678 = vrot.lane.b32.xlu0 %v675, 96
    %v679 = vpop.permute.xlu0 %678
    %681 = vst.msk [vmem:[#allocation4 + $0x30] sm:$0xff] %vm558, %v679
    %v682 = vld [vmem:[#allocation2 + $0x40] sm:$0xff]
    %v683 = vld [vmem:[#allocation2 + $0x48] sm:$0xff]
    %v684 = vld [vmem:[#allocation2 + $0xb0] sm:$0xff]
    %v685 = vld [vmem:[#allocation2 + $0xb8] sm:$0xff]
    %v686 = vadd.f32 %v682, %v684
    %v687 = vadd.f32 %v683, %v685
    %v688 = vsel %vm451, %v675, 0
    %690 = vmatprep.subr.mxu0 %v430
    %691 = vmatpush1.msra.mxu0 %v429
    %692 = vmatprep.subr.mxu0 %v432
    %693 = vmatpush1.msra.mxu0 %v431
    %694 = vmatprep.subr.mxu0 %v434
    %695 = vmatpush1.msra.mxu0 %v433
    %696 = vmatprep.subr.mxu0 %v436
    %697 = vmatpush1.msra.mxu0 %v435
    %698 = vmatprep.subr.mxu0 %v438
    %699 = vmatpush1.msra.mxu0 %v437
    %700 = vmatprep.subr.mxu0 %v440
    %701 = vmatpush1.msra.mxu0 %v439
    %702 = vmatprep.subr.mxu0 %v442
    %703 = vmatpush1.msra.mxu0 %v441
    %704 = vmatprep.subr.mxu0 %v444
    %705 = vmatpush1.msra.mxu0 %v443
    %706 = vmatprep.subr.mxu0 0.0
    %707 = vmatpush1.msra.mxu0 0.0
    %708 = vmatprep.subr.mxu0 0.0
    %709 = vmatpush1.msra.mxu0 0.0
    %710 = vmatprep.subr.mxu0 0.0
    %711 = vmatpush1.msra.mxu0 0.0
    %712 = vmatprep.subr.mxu0 0.0
    %713 = vmatpush1.msra.mxu0 0.0
    %714 = vmatprep.subr.mxu0 0.0
    %715 = vmatpush1.msra.mxu0 0.0
    %716 = vmatprep.subr.mxu0 0.0
    %717 = vmatpush1.msra.mxu0 0.0
    %718 = vmatprep.subr.mxu0 0.0
    %719 = vmatpush1.msra.mxu0 0.0
    %720 = vmatprep.subr.mxu0 0.0
    %721 = vmatpush1.msra.mxu0 0.0
    %722 = vmatprep.subr.mxu0 0.0
    %723 = vmatpush1.msra.mxu0 0.0
    %724 = vmatprep.subr.mxu0 0.0
    %725 = vmatpush1.msra.mxu0 0.0
    %726 = vmatprep.subr.mxu0 0.0
    %727 = vmatpush1.msra.mxu0 0.0
    %728 = vmatprep.subr.mxu0 0.0
    %729 = vmatpush1.msra.mxu0 0.0
    %730 = vmatprep.subr.mxu0 0.0
    %731 = vmatpush1.msra.mxu0 0.0
    %732 = vmatprep.subr.mxu0 0.0
    %733 = vmatpush1.msra.mxu0 0.0
    %734 = vmatprep.subr.mxu0 0.0
    %735 = vmatpush1.msra.mxu0 0.0
    %736 = vmatprep.subr.mxu0 0.0
    %737 = vmatpush1.msra.mxu0 0.0
    %738 = vmatprep.subr.mxu0 0.0
    %739 = vmatpush1.msra.mxu0 0.0
    %740 = vmatprep.subr.mxu0 0.0
    %741 = vmatpush1.msra.mxu0 0.0
    %742 = vmatprep.subr.mxu0 0.0
    %743 = vmatpush1.msra.mxu0 0.0
    %744 = vmatprep.subr.mxu0 0.0
    %745 = vmatpush1.msra.mxu0 0.0
    %746 = vmatprep.subr.mxu0 0.0
    %747 = vmatpush1.msra.mxu0 0.0
    %748 = vmatprep.subr.mxu0 0.0
    %749 = vmatpush1.msra.mxu0 0.0
    %750 = vmatprep.subr.mxu0 0.0
    %751 = vmatpush1.msra.mxu0 0.0
    %752 = vmatprep.subr.mxu0 0.0
    %753 = vmatpush1.msra.mxu0 0.0
    %754 = vmatprep.mubr.f32.mxu0 0.0
    %755 = vmatmul.mubr.f32.gmra.mrb[0].mxu0 %v688
    %v756 = vpop.f32.mrb[0].mxu0
    %v757 = vadd.f32 0.0, %v756
    %v758 = vpop.f32.mrb[0].mxu0
    %v759 = vadd.f32 0.0, %v758
    %760 = vdwg.mxu0
    %v761 = vadd.f32 %v686, %v757
    %v762 = vadd.f32 %v687, %v759
    %v763 = vxor.u32 %v761, 2147483648
    %v764 = vxor.u32 %v762, 2147483648
    %v765 = vmul.f32 %v763, 1.442695
    %v766 = vpow.pop %v765
    %v767 = vmul.f32 %v764, 1.442695
    %v768 = vpow.pop %v767
    %v769 = vadd.f32 %v766, 1.0
    %v770 = vadd.f32 %v768, 1.0
    %v771 = vrcp.pop %v769
    %v772 = vmul.f32 1.0, %v771
    %v773 = vrcp.pop %v770
    %v774 = vmul.f32 1.0, %v773
    %v775 = vtanh.pop %v762
    %v776 = vmul.f32 %v772, %v669
    %778 = vrot.lane.b32.xlu0 %v775, 64
    %v779 = vpop.permute.xlu0 %778
    %v781 = vmul.f32 %v772, %v779
    %783 = vrot.lane.b32.xlu0 %v781, 64
    %v784 = vpop.permute.xlu0 %783
    %v786 = vadd.f32 %v776, %v784
    %v787 = vtanh.pop %v786
    %789 = vrot.lane.b32.xlu0 %v787, 64
    %v790 = vpop.permute.xlu0 %789
    %v792 = vmul.f32 %v774, %v790
    %793 = vst.msk [vmem:[#allocation3 + $0x10] sm:$0xff] %vm558, %v792
    %795 = vrot.lane.b32.xlu0 %v792, 96
    %v796 = vpop.permute.xlu0 %795
    %798 = vst.msk [vmem:[#allocation4 + $0x28] sm:$0xff] %vm558, %v796
    %v799 = vld [vmem:[#allocation2 + $0x60] sm:$0xff]
    %v800 = vld [vmem:[#allocation2 + $0x68] sm:$0xff]
    %v801 = vld [vmem:[#allocation2 + $0x90] sm:$0xff]
    %v802 = vld [vmem:[#allocation2 + $0x98] sm:$0xff]
    %v803 = vadd.f32 %v799, %v801
    %v804 = vadd.f32 %v800, %v802
    %v805 = vsel %vm451, %v792, 0
    %807 = vmatprep.subr.mxu0 %v430
    %808 = vmatpush1.msra.mxu0 %v429
    %809 = vmatprep.subr.mxu0 %v432
    %810 = vmatpush1.msra.mxu0 %v431
    %811 = vmatprep.subr.mxu0 %v434
    %812 = vmatpush1.msra.mxu0 %v433
    %813 = vmatprep.subr.mxu0 %v436
    %814 = vmatpush1.msra.mxu0 %v435
    %815 = vmatprep.subr.mxu0 %v438
    %816 = vmatpush1.msra.mxu0 %v437
    %817 = vmatprep.subr.mxu0 %v440
    %818 = vmatpush1.msra.mxu0 %v439
    %819 = vmatprep.subr.mxu0 %v442
    %820 = vmatpush1.msra.mxu0 %v441
    %821 = vmatprep.subr.mxu0 %v444
    %822 = vmatpush1.msra.mxu0 %v443
    %823 = vmatprep.subr.mxu0 0.0
    %824 = vmatpush1.msra.mxu0 0.0
    %825 = vmatprep.subr.mxu0 0.0
    %826 = vmatpush1.msra.mxu0 0.0
    %827 = vmatprep.subr.mxu0 0.0
    %828 = vmatpush1.msra.mxu0 0.0
    %829 = vmatprep.subr.mxu0 0.0
    %830 = vmatpush1.msra.mxu0 0.0
    %831 = vmatprep.subr.mxu0 0.0
    %832 = vmatpush1.msra.mxu0 0.0
    %833 = vmatprep.subr.mxu0 0.0
    %834 = vmatpush1.msra.mxu0 0.0
    %835 = vmatprep.subr.mxu0 0.0
    %836 = vmatpush1.msra.mxu0 0.0
    %837 = vmatprep.subr.mxu0 0.0
    %838 = vmatpush1.msra.mxu0 0.0
    %839 = vmatprep.subr.mxu0 0.0
    %840 = vmatpush1.msra.mxu0 0.0
    %841 = vmatprep.subr.mxu0 0.0
    %842 = vmatpush1.msra.mxu0 0.0
    %843 = vmatprep.subr.mxu0 0.0
    %844 = vmatpush1.msra.mxu0 0.0
    %845 = vmatprep.subr.mxu0 0.0
    %846 = vmatpush1.msra.mxu0 0.0
    %847 = vmatprep.subr.mxu0 0.0
    %848 = vmatpush1.msra.mxu0 0.0
    %849 = vmatprep.subr.mxu0 0.0
    %850 = vmatpush1.msra.mxu0 0.0
    %851 = vmatprep.subr.mxu0 0.0
    %852 = vmatpush1.msra.mxu0 0.0
    %853 = vmatprep.subr.mxu0 0.0
    %854 = vmatpush1.msra.mxu0 0.0
    %855 = vmatprep.subr.mxu0 0.0
    %856 = vmatpush1.msra.mxu0 0.0
    %857 = vmatprep.subr.mxu0 0.0
    %858 = vmatpush1.msra.mxu0 0.0
    %859 = vmatprep.subr.mxu0 0.0
    %860 = vmatpush1.msra.mxu0 0.0
    %861 = vmatprep.subr.mxu0 0.0
    %862 = vmatpush1.msra.mxu0 0.0
    %863 = vmatprep.subr.mxu0 0.0
    %864 = vmatpush1.msra.mxu0 0.0
    %865 = vmatprep.subr.mxu0 0.0
    %866 = vmatpush1.msra.mxu0 0.0
    %867 = vmatprep.subr.mxu0 0.0
    %868 = vmatpush1.msra.mxu0 0.0
    %869 = vmatprep.subr.mxu0 0.0
    %870 = vmatpush1.msra.mxu0 0.0
    %871 = vmatprep.mubr.f32.mxu0 0.0
    %872 = vmatmul.mubr.f32.gmra.mrb[0].mxu0 %v805
    %v873 = vpop.f32.mrb[0].mxu0
    %v874 = vadd.f32 0.0, %v873
    %v875 = vpop.f32.mrb[0].mxu0
    %v876 = vadd.f32 0.0, %v875
    %877 = vdwg.mxu0
    %v878 = vadd.f32 %v803, %v874
    %v879 = vadd.f32 %v804, %v876
    %v880 = vxor.u32 %v878, 2147483648
    %v881 = vxor.u32 %v879, 2147483648
    %v882 = vmul.f32 %v880, 1.442695
    %v883 = vpow.pop %v882
    %v884 = vmul.f32 %v881, 1.442695
    %v885 = vpow.pop %v884
    %v886 = vadd.f32 %v883, 1.0
    %v887 = vadd.f32 %v885, 1.0
    %v888 = vrcp.pop %v886
    %v889 = vmul.f32 1.0, %v888
    %v890 = vrcp.pop %v887
    %v891 = vmul.f32 1.0, %v890
    %v892 = vtanh.pop %v879
    %v893 = vmul.f32 %v889, %v786
    %895 = vrot.lane.b32.xlu0 %v892, 64
    %v896 = vpop.permute.xlu0 %895
    %v898 = vmul.f32 %v889, %v896
    %900 = vrot.lane.b32.xlu0 %v898, 64
    %v901 = vpop.permute.xlu0 %900
    %v903 = vadd.f32 %v893, %v901
    %v904 = vtanh.pop %v903
    %906 = vrot.lane.b32.xlu0 %v904, 64
    %v907 = vpop.permute.xlu0 %906
    %v909 = vmul.f32 %v891, %v907
    %910 = vst.msk [vmem:[#allocation3 + $0x18] sm:$0xff] %vm558, %v909
    %912 = vrot.lane.b32.xlu0 %v909, 96
    %v913 = vpop.permute.xlu0 %912
    %915 = vst.msk [vmem:[#allocation4 + $0x20] sm:$0xff] %vm558, %v913
    %v916 = vld [vmem:[#allocation2 + $0x80] sm:$0xff]
    %v917 = vld [vmem:[#allocation2 + $0x88] sm:$0xff]
    %v918 = vld [vmem:[#allocation2 + $0x70] sm:$0xff]
    %v919 = vld [vmem:[#allocation2 + $0x78] sm:$0xff]
    %v920 = vadd.f32 %v916, %v918
    %v921 = vadd.f32 %v917, %v919
    %v922 = vsel %vm451, %v909, 0
    %924 = vmatprep.subr.mxu0 %v430
    %925 = vmatpush1.msra.mxu0 %v429
    %926 = vmatprep.subr.mxu0 %v432
    %927 = vmatpush1.msra.mxu0 %v431
    %928 = vmatprep.subr.mxu0 %v434
    %929 = vmatpush1.msra.mxu0 %v433
    %930 = vmatprep.subr.mxu0 %v436
    %931 = vmatpush1.msra.mxu0 %v435
    %932 = vmatprep.subr.mxu0 %v438
    %933 = vmatpush1.msra.mxu0 %v437
    %934 = vmatprep.subr.mxu0 %v440
    %935 = vmatpush1.msra.mxu0 %v439
    %936 = vmatprep.subr.mxu0 %v442
    %937 = vmatpush1.msra.mxu0 %v441
    %938 = vmatprep.subr.mxu0 %v444
    %939 = vmatpush1.msra.mxu0 %v443
    %940 = vmatprep.subr.mxu0 0.0
    %941 = vmatpush1.msra.mxu0 0.0
    %942 = vmatprep.subr.mxu0 0.0
    %943 = vmatpush1.msra.mxu0 0.0
    %944 = vmatprep.subr.mxu0 0.0
    %945 = vmatpush1.msra.mxu0 0.0
    %946 = vmatprep.subr.mxu0 0.0
    %947 = vmatpush1.msra.mxu0 0.0
    %948 = vmatprep.subr.mxu0 0.0
    %949 = vmatpush1.msra.mxu0 0.0
    %950 = vmatprep.subr.mxu0 0.0
    %951 = vmatpush1.msra.mxu0 0.0
    %952 = vmatprep.subr.mxu0 0.0
    %953 = vmatpush1.msra.mxu0 0.0
    %954 = vmatprep.subr.mxu0 0.0
    %955 = vmatpush1.msra.mxu0 0.0
    %956 = vmatprep.subr.mxu0 0.0
    %957 = vmatpush1.msra.mxu0 0.0
    %958 = vmatprep.subr.mxu0 0.0
    %959 = vmatpush1.msra.mxu0 0.0
    %960 = vmatprep.subr.mxu0 0.0
    %961 = vmatpush1.msra.mxu0 0.0
    %962 = vmatprep.subr.mxu0 0.0
    %963 = vmatpush1.msra.mxu0 0.0
    %964 = vmatprep.subr.mxu0 0.0
    %965 = vmatpush1.msra.mxu0 0.0
    %966 = vmatprep.subr.mxu0 0.0
    %967 = vmatpush1.msra.mxu0 0.0
    %968 = vmatprep.subr.mxu0 0.0
    %969 = vmatpush1.msra.mxu0 0.0
    %970 = vmatprep.subr.mxu0 0.0
    %971 = vmatpush1.msra.mxu0 0.0
    %972 = vmatprep.subr.mxu0 0.0
    %973 = vmatpush1.msra.mxu0 0.0
    %974 = vmatprep.subr.mxu0 0.0
    %975 = vmatpush1.msra.mxu0 0.0
    %976 = vmatprep.subr.mxu0 0.0
    %977 = vmatpush1.msra.mxu0 0.0
    %978 = vmatprep.subr.mxu0 0.0
    %979 = vmatpush1.msra.mxu0 0.0
    %980 = vmatprep.subr.mxu0 0.0
    %981 = vmatpush1.msra.mxu0 0.0
    %982 = vmatprep.subr.mxu0 0.0
    %983 = vmatpush1.msra.mxu0 0.0
    %984 = vmatprep.subr.mxu0 0.0
    %985 = vmatpush1.msra.mxu0 0.0
    %986 = vmatprep.subr.mxu0 0.0
    %987 = vmatpush1.msra.mxu0 0.0
    %988 = vmatprep.mubr.f32.mxu0 0.0
    %989 = vmatmul.mubr.f32.gmra.mrb[0].mxu0 %v922
    %v990 = vpop.f32.mrb[0].mxu0
    %v991 = vadd.f32 0.0, %v990
    %v992 = vpop.f32.mrb[0].mxu0
    %v993 = vadd.f32 0.0, %v992
    %994 = vdwg.mxu0
    %v995 = vadd.f32 %v920, %v991
    %v996 = vadd.f32 %v921, %v993
    %v997 = vxor.u32 %v995, 2147483648
    %v998 = vxor.u32 %v996, 2147483648
    %v999 = vmul.f32 %v997, 1.442695
    %v1000 = vpow.pop %v999
    %v1001 = vmul.f32 %v998, 1.442695
    %v1002 = vpow.pop %v1001
    %v1003 = vadd.f32 %v1000, 1.0
    %v1004 = vadd.f32 %v1002, 1.0
    %v1005 = vrcp.pop %v1003
    %v1006 = vmul.f32 1.0, %v1005
    %v1007 = vrcp.pop %v1004
    %v1008 = vmul.f32 1.0, %v1007
    %v1009 = vtanh.pop %v996
    %v1010 = vmul.f32 %v1006, %v903
    %1012 = vrot.lane.b32.xlu0 %v1009, 64
    %v1013 = vpop.permute.xlu0 %1012
    %v1015 = vmul.f32 %v1006, %v1013
    %1017 = vrot.lane.b32.xlu0 %v1015, 64
    %v1018 = vpop.permute.xlu0 %1017
    %v1020 = vadd.f32 %v1010, %v1018
    %v1021 = vtanh.pop %v1020
    %1023 = vrot.lane.b32.xlu0 %v1021, 64
    %v1024 = vpop.permute.xlu0 %1023
    %v1026 = vmul.f32 %v1008, %v1024
    %1027 = vst.msk [vmem:[#allocation3 + $0x20] sm:$0xff] %vm558, %v1026
    %1029 = vrot.lane.b32.xlu0 %v1026, 96
    %v1030 = vpop.permute.xlu0 %1029
    %1032 = vst.msk [vmem:[#allocation4 + $0x18] sm:$0xff] %vm558, %v1030
    %v1033 = vld [vmem:[#allocation2 + $0xa0] sm:$0xff]
    %v1034 = vld [vmem:[#allocation2 + $0xa8] sm:$0xff]
    %v1035 = vld [vmem:[#allocation2 + $0x50] sm:$0xff]
    %v1036 = vld [vmem:[#allocation2 + $0x58] sm:$0xff]
    %v1037 = vadd.f32 %v1033, %v1035
    %v1038 = vadd.f32 %v1034, %v1036
    %v1039 = vsel %vm451, %v1026, 0
    %1041 = vmatprep.subr.mxu0 %v430
    %1042 = vmatpush1.msra.mxu0 %v429
    %1043 = vmatprep.subr.mxu0 %v432
    %1044 = vmatpush1.msra.mxu0 %v431
    %1045 = vmatprep.subr.mxu0 %v434
    %1046 = vmatpush1.msra.mxu0 %v433
    %1047 = vmatprep.subr.mxu0 %v436
    %1048 = vmatpush1.msra.mxu0 %v435
    %1049 = vmatprep.subr.mxu0 %v438
    %1050 = vmatpush1.msra.mxu0 %v437
    %1051 = vmatprep.subr.mxu0 %v440
    %1052 = vmatpush1.msra.mxu0 %v439
    %1053 = vmatprep.subr.mxu0 %v442
    %1054 = vmatpush1.msra.mxu0 %v441
    %1055 = vmatprep.subr.mxu0 %v444
    %1056 = vmatpush1.msra.mxu0 %v443
    %1057 = vmatprep.subr.mxu0 0.0
    %1058 = vmatpush1.msra.mxu0 0.0
    %1059 = vmatprep.subr.mxu0 0.0
    %1060 = vmatpush1.msra.mxu0 0.0
    %1061 = vmatprep.subr.mxu0 0.0
    %1062 = vmatpush1.msra.mxu0 0.0
    %1063 = vmatprep.subr.mxu0 0.0
    %1064 = vmatpush1.msra.mxu0 0.0
    %1065 = vmatprep.subr.mxu0 0.0
    %1066 = vmatpush1.msra.mxu0 0.0
    %1067 = vmatprep.subr.mxu0 0.0
    %1068 = vmatpush1.msra.mxu0 0.0
    %1069 = vmatprep.subr.mxu0 0.0
    %1070 = vmatpush1.msra.mxu0 0.0
    %1071 = vmatprep.subr.mxu0 0.0
    %1072 = vmatpush1.msra.mxu0 0.0
    %1073 = vmatprep.subr.mxu0 0.0
    %1074 = vmatpush1.msra.mxu0 0.0
    %1075 = vmatprep.subr.mxu0 0.0
    %1076 = vmatpush1.msra.mxu0 0.0
    %1077 = vmatprep.subr.mxu0 0.0
    %1078 = vmatpush1.msra.mxu0 0.0
    %1079 = vmatprep.subr.mxu0 0.0
    %1080 = vmatpush1.msra.mxu0 0.0
    %1081 = vmatprep.subr.mxu0 0.0
    %1082 = vmatpush1.msra.mxu0 0.0
    %1083 = vmatprep.subr.mxu0 0.0
    %1084 = vmatpush1.msra.mxu0 0.0
    %1085 = vmatprep.subr.mxu0 0.0
    %1086 = vmatpush1.msra.mxu0 0.0
    %1087 = vmatprep.subr.mxu0 0.0
    %1088 = vmatpush1.msra.mxu0 0.0
    %1089 = vmatprep.subr.mxu0 0.0
    %1090 = vmatpush1.msra.mxu0 0.0
    %1091 = vmatprep.subr.mxu0 0.0
    %1092 = vmatpush1.msra.mxu0 0.0
    %1093 = vmatprep.subr.mxu0 0.0
    %1094 = vmatpush1.msra.mxu0 0.0
    %1095 = vmatprep.subr.mxu0 0.0
    %1096 = vmatpush1.msra.mxu0 0.0
    %1097 = vmatprep.subr.mxu0 0.0
    %1098 = vmatpush1.msra.mxu0 0.0
    %1099 = vmatprep.subr.mxu0 0.0
    %1100 = vmatpush1.msra.mxu0 0.0
    %1101 = vmatprep.subr.mxu0 0.0
    %1102 = vmatpush1.msra.mxu0 0.0
    %1103 = vmatprep.subr.mxu0 0.0
    %1104 = vmatpush1.msra.mxu0 0.0
    %1105 = vmatprep.mubr.f32.mxu0 0.0
    %1106 = vmatmul.mubr.f32.gmra.mrb[0].mxu0 %v1039
    %v1107 = vpop.f32.mrb[0].mxu0
    %v1108 = vadd.f32 0.0, %v1107
    %v1109 = vpop.f32.mrb[0].mxu0
    %v1110 = vadd.f32 0.0, %v1109
    %1111 = vdwg.mxu0
    %v1112 = vadd.f32 %v1037, %v1108
    %v1113 = vadd.f32 %v1038, %v1110
    %v1114 = vxor.u32 %v1112, 2147483648
    %v1115 = vxor.u32 %v1113, 2147483648
    %v1116 = vmul.f32 %v1114, 1.442695
    %v1117 = vpow.pop %v1116
    %v1118 = vmul.f32 %v1115, 1.442695
    %v1119 = vpow.pop %v1118
    %v1120 = vadd.f32 %v1117, 1.0
    %v1121 = vadd.f32 %v1119, 1.0
    %v1122 = vrcp.pop %v1120
    %v1123 = vmul.f32 1.0, %v1122
    %v1124 = vrcp.pop %v1121
    %v1125 = vmul.f32 1.0, %v1124
    %v1126 = vtanh.pop %v1113
    %v1127 = vmul.f32 %v1123, %v1020
    %1129 = vrot.lane.b32.xlu0 %v1126, 64
    %v1130 = vpop.permute.xlu0 %1129
    %v1132 = vmul.f32 %v1123, %v1130
    %1134 = vrot.lane.b32.xlu0 %v1132, 64
    %v1135 = vpop.permute.xlu0 %1134
    %v1137 = vadd.f32 %v1127, %v1135
    %v1138 = vtanh.pop %v1137
    %1140 = vrot.lane.b32.xlu0 %v1138, 64
    %v1141 = vpop.permute.xlu0 %1140
    %v1143 = vmul.f32 %v1125, %v1141
    %1144 = vst.msk [vmem:[#allocation3 + $0x28] sm:$0xff] %vm558, %v1143
    %1146 = vrot.lane.b32.xlu0 %v1143, 96
    %v1147 = vpop.permute.xlu0 %1146
    %1149 = vst.msk [vmem:[#allocation4 + $0x10] sm:$0xff] %vm558, %v1147
    %v1150 = vld [vmem:[#allocation2 + $0xc0] sm:$0xff]
    %v1151 = vld [vmem:[#allocation2 + $0xc8] sm:$0xff]
    %v1152 = vld [vmem:[#allocation2 + $0x30] sm:$0xff]
    %v1153 = vld [vmem:[#allocation2 + $0x38] sm:$0xff]
    %v1154 = vadd.f32 %v1150, %v1152
    %v1155 = vadd.f32 %v1151, %v1153
    %v1156 = vsel %vm451, %v1143, 0
    %1158 = vmatprep.subr.mxu0 %v430
    %1159 = vmatpush1.msra.mxu0 %v429
    %1160 = vmatprep.subr.mxu0 %v432
    %1161 = vmatpush1.msra.mxu0 %v431
    %1162 = vmatprep.subr.mxu0 %v434
    %1163 = vmatpush1.msra.mxu0 %v433
    %1164 = vmatprep.subr.mxu0 %v436
    %1165 = vmatpush1.msra.mxu0 %v435
    %1166 = vmatprep.subr.mxu0 %v438
    %1167 = vmatpush1.msra.mxu0 %v437
    %1168 = vmatprep.subr.mxu0 %v440
    %1169 = vmatpush1.msra.mxu0 %v439
    %1170 = vmatprep.subr.mxu0 %v442
    %1171 = vmatpush1.msra.mxu0 %v441
    %1172 = vmatprep.subr.mxu0 %v444
    %1173 = vmatpush1.msra.mxu0 %v443
    %1174 = vmatprep.subr.mxu0 0.0
    %1175 = vmatpush1.msra.mxu0 0.0
    %1176 = vmatprep.subr.mxu0 0.0
    %1177 = vmatpush1.msra.mxu0 0.0
    %1178 = vmatprep.subr.mxu0 0.0
    %1179 = vmatpush1.msra.mxu0 0.0
    %1180 = vmatprep.subr.mxu0 0.0
    %1181 = vmatpush1.msra.mxu0 0.0
    %1182 = vmatprep.subr.mxu0 0.0
    %1183 = vmatpush1.msra.mxu0 0.0
    %1184 = vmatprep.subr.mxu0 0.0
    %1185 = vmatpush1.msra.mxu0 0.0
    %1186 = vmatprep.subr.mxu0 0.0
    %1187 = vmatpush1.msra.mxu0 0.0
    %1188 = vmatprep.subr.mxu0 0.0
    %1189 = vmatpush1.msra.mxu0 0.0
    %1190 = vmatprep.subr.mxu0 0.0
    %1191 = vmatpush1.msra.mxu0 0.0
    %1192 = vmatprep.subr.mxu0 0.0
    %1193 = vmatpush1.msra.mxu0 0.0
    %1194 = vmatprep.subr.mxu0 0.0
    %1195 = vmatpush1.msra.mxu0 0.0
    %1196 = vmatprep.subr.mxu0 0.0
    %1197 = vmatpush1.msra.mxu0 0.0
    %1198 = vmatprep.subr.mxu0 0.0
    %1199 = vmatpush1.msra.mxu0 0.0
    %1200 = vmatprep.subr.mxu0 0.0
    %1201 = vmatpush1.msra.mxu0 0.0
    %1202 = vmatprep.subr.mxu0 0.0
    %1203 = vmatpush1.msra.mxu0 0.0
    %1204 = vmatprep.subr.mxu0 0.0
    %1205 = vmatpush1.msra.mxu0 0.0
    %1206 = vmatprep.subr.mxu0 0.0
    %1207 = vmatpush1.msra.mxu0 0.0
    %1208 = vmatprep.subr.mxu0 0.0
    %1209 = vmatpush1.msra.mxu0 0.0
    %1210 = vmatprep.subr.mxu0 0.0
    %1211 = vmatpush1.msra.mxu0 0.0
    %1212 = vmatprep.subr.mxu0 0.0
    %1213 = vmatpush1.msra.mxu0 0.0
    %1214 = vmatprep.subr.mxu0 0.0
    %1215 = vmatpush1.msra.mxu0 0.0
    %1216 = vmatprep.subr.mxu0 0.0
    %1217 = vmatpush1.msra.mxu0 0.0
    %1218 = vmatprep.subr.mxu0 0.0
    %1219 = vmatpush1.msra.mxu0 0.0
    %1220 = vmatprep.subr.mxu0 0.0
    %1221 = vmatpush1.msra.mxu0 0.0
    %1222 = vmatprep.mubr.f32.mxu0 0.0
    %1223 = vmatmul.mubr.f32.gmra.mrb[0].mxu0 %v1156
    %v1224 = vpop.f32.mrb[0].mxu0
    %v1225 = vadd.f32 0.0, %v1224
    %v1226 = vpop.f32.mrb[0].mxu0
    %v1227 = vadd.f32 0.0, %v1226
    %1228 = vdwg.mxu0
    %v1229 = vadd.f32 %v1154, %v1225
    %v1230 = vadd.f32 %v1155, %v1227
    %v1231 = vxor.u32 %v1229, 2147483648
    %v1232 = vxor.u32 %v1230, 2147483648
    %v1233 = vmul.f32 %v1231, 1.442695
    %v1234 = vpow.pop %v1233
    %v1235 = vmul.f32 %v1232, 1.442695
    %v1236 = vpow.pop %v1235
    %v1237 = vadd.f32 %v1234, 1.0
    %v1238 = vadd.f32 %v1236, 1.0
    %v1239 = vrcp.pop %v1237
    %v1240 = vmul.f32 1.0, %v1239
    %v1241 = vrcp.pop %v1238
    %v1242 = vmul.f32 1.0, %v1241
    %v1243 = vtanh.pop %v1230
    %v1244 = vmul.f32 %v1240, %v1137
    %1246 = vrot.lane.b32.xlu0 %v1243, 64
    %v1247 = vpop.permute.xlu0 %1246
    %v1249 = vmul.f32 %v1240, %v1247
    %1251 = vrot.lane.b32.xlu0 %v1249, 64
    %v1252 = vpop.permute.xlu0 %1251
    %v1254 = vadd.f32 %v1244, %v1252
    %v1255 = vtanh.pop %v1254
    %1257 = vrot.lane.b32.xlu0 %v1255, 64
    %v1258 = vpop.permute.xlu0 %1257
    %v1260 = vmul.f32 %v1242, %v1258
    %1261 = vst.msk [vmem:[#allocation3 + $0x30] sm:$0xff] %vm558, %v1260
    %1263 = vrot.lane.b32.xlu0 %v1260, 96
    %v1264 = vpop.permute.xlu0 %1263
    %1266 = vst.msk [vmem:[#allocation4 + $0x8] sm:$0xff] %vm558, %v1264
    %v1267 = vld [vmem:[#allocation2 + $0xe0] sm:$0xff]
    %v1268 = vld [vmem:[#allocation2 + $0xe8] sm:$0xff]
    %v1269 = vld [vmem:[#allocation2 + $0x10] sm:$0xff]
    %v1270 = vld [vmem:[#allocation2 + $0x18] sm:$0xff]
    %v1271 = vadd.f32 %v1267, %v1269
    %v1272 = vadd.f32 %v1268, %v1270
    %v1273 = vsel %vm451, %v1260, 0
    %1275 = vmatprep.subr.mxu0 %v430
    %1276 = vmatpush1.msra.mxu0 %v429
    %1277 = vmatprep.subr.mxu0 %v432
    %1278 = vmatpush1.msra.mxu0 %v431
    %1279 = vmatprep.subr.mxu0 %v434
    %1280 = vmatpush1.msra.mxu0 %v433
    %1281 = vmatprep.subr.mxu0 %v436
    %1282 = vmatpush1.msra.mxu0 %v435
    %1283 = vmatprep.subr.mxu0 %v438
    %1284 = vmatpush1.msra.mxu0 %v437
    %1285 = vmatprep.subr.mxu0 %v440
    %1286 = vmatpush1.msra.mxu0 %v439
    %1287 = vmatprep.subr.mxu0 %v442
    %1288 = vmatpush1.msra.mxu0 %v441
    %1289 = vmatprep.subr.mxu0 %v444
    %1290 = vmatpush1.msra.mxu0 %v443
    %1291 = vmatprep.subr.mxu0 0.0
    %1292 = vmatpush1.msra.mxu0 0.0
    %1293 = vmatprep.subr.mxu0 0.0
    %1294 = vmatpush1.msra.mxu0 0.0
    %1295 = vmatprep.subr.mxu0 0.0
    %1296 = vmatpush1.msra.mxu0 0.0
    %1297 = vmatprep.subr.mxu0 0.0
    %1298 = vmatpush1.msra.mxu0 0.0
    %1299 = vmatprep.subr.mxu0 0.0
    %1300 = vmatpush1.msra.mxu0 0.0
    %1301 = vmatprep.subr.mxu0 0.0
    %1302 = vmatpush1.msra.mxu0 0.0
    %1303 = vmatprep.subr.mxu0 0.0
    %1304 = vmatpush1.msra.mxu0 0.0
    %1305 = vmatprep.subr.mxu0 0.0
    %1306 = vmatpush1.msra.mxu0 0.0
    %1307 = vmatprep.subr.mxu0 0.0
    %1308 = vmatpush1.msra.mxu0 0.0
    %1309 = vmatprep.subr.mxu0 0.0
    %1310 = vmatpush1.msra.mxu0 0.0
    %1311 = vmatprep.subr.mxu0 0.0
    %1312 = vmatpush1.msra.mxu0 0.0
    %1313 = vmatprep.subr.mxu0 0.0
    %1314 = vmatpush1.msra.mxu0 0.0
    %1315 = vmatprep.subr.mxu0 0.0
    %1316 = vmatpush1.msra.mxu0 0.0
    %1317 = vmatprep.subr.mxu0 0.0
    %1318 = vmatpush1.msra.mxu0 0.0
    %1319 = vmatprep.subr.mxu0 0.0
    %1320 = vmatpush1.msra.mxu0 0.0
    %1321 = vmatprep.subr.mxu0 0.0
    %1322 = vmatpush1.msra.mxu0 0.0
    %1323 = vmatprep.subr.mxu0 0.0
    %1324 = vmatpush1.msra.mxu0 0.0
    %1325 = vmatprep.subr.mxu0 0.0
    %1326 = vmatpush1.msra.mxu0 0.0
    %1327 = vmatprep.subr.mxu0 0.0
    %1328 = vmatpush1.msra.mxu0 0.0
    %1329 = vmatprep.subr.mxu0 0.0
    %1330 = vmatpush1.msra.mxu0 0.0
    %1331 = vmatprep.subr.mxu0 0.0
    %1332 = vmatpush1.msra.mxu0 0.0
    %1333 = vmatprep.subr.mxu0 0.0
    %1334 = vmatpush1.msra.mxu0 0.0
    %1335 = vmatprep.subr.mxu0 0.0
    %1336 = vmatpush1.msra.mxu0 0.0
    %1337 = vmatprep.subr.mxu0 0.0
    %1338 = vmatpush1.msra.mxu0 0.0
    %1339 = vmatprep.mubr.f32.mxu0 0.0
    %1340 = vmatmul.mubr.f32.gmra.mrb[0].mxu0 %v1273
    %v1341 = vpop.f32.mrb[0].mxu0
    %v1342 = vadd.f32 0.0, %v1341
    %v1343 = vpop.f32.mrb[0].mxu0
    %v1344 = vadd.f32 0.0, %v1343
    %1345 = vdwg.mxu0
    %v1346 = vadd.f32 %v1271, %v1342
    %v1347 = vadd.f32 %v1272, %v1344
    %v1348 = vxor.u32 %v1346, 2147483648
    %v1349 = vxor.u32 %v1347, 2147483648
    %v1350 = vmul.f32 %v1348, 1.442695
    %v1351 = vpow.pop %v1350
    %v1352 = vmul.f32 %v1349, 1.442695
    %v1353 = vpow.pop %v1352
    %v1354 = vadd.f32 %v1351, 1.0
    %v1355 = vadd.f32 %v1353, 1.0
    %v1356 = vrcp.pop %v1354
    %v1357 = vmul.f32 1.0, %v1356
    %v1358 = vrcp.pop %v1355
    %v1359 = vmul.f32 1.0, %v1358
    %v1360 = vtanh.pop %v1347
    %v1361 = vmul.f32 %v1357, %v1254
    %1363 = vrot.lane.b32.xlu0 %v1360, 64
    %v1364 = vpop.permute.xlu0 %1363
    %v1366 = vmul.f32 %v1357, %v1364
    %1368 = vrot.lane.b32.xlu0 %v1366, 64
    %v1369 = vpop.permute.xlu0 %1368
    %v1371 = vadd.f32 %v1361, %v1369
    %v1372 = vtanh.pop %v1371
    %1374 = vrot.lane.b32.xlu0 %v1372, 64
    %v1375 = vpop.permute.xlu0 %1374
    %v1377 = vmul.f32 %v1359, %v1375
    %1378 = vst.msk [vmem:[#allocation3 + $0x38] sm:$0xff] %vm558, %v1377
    %1380 = vrot.lane.b32.xlu0 %v1377, 96
    %v1381 = vpop.permute.xlu0 %1380
    %1383 = vst.msk [vmem:[#allocation4] sm:$0xff] %vm558, %v1381
    %v1384 = vld [vmem:[#allocation3] sm:$0xff]
    %v1385 = vld [vmem:[#allocation3 + $0x8] sm:$0xff]
    %v1386 = vld [vmem:[#allocation3 + $0x10] sm:$0xff]
    %v1387 = vld [vmem:[#allocation3 + $0x18] sm:$0xff]
    %v1388 = vld [vmem:[#allocation3 + $0x20] sm:$0xff]
    %v1389 = vld [vmem:[#allocation3 + $0x28] sm:$0xff]
    %v1390 = vld [vmem:[#allocation3 + $0x30] sm:$0xff]
    %v1391 = vld [vmem:[#allocation3 + $0x38] sm:$0xff]
    %v1392 = vld [vmem:[#allocation7] sm:$0xff]
    %v1393 = vld [vmem:[#allocation7 + $0x8] sm:$0xff]
    %v1394 = vld [vmem:[#allocation7 + $0x10] sm:$0xff]
    %v1395 = vld [vmem:[#allocation7 + $0x18] sm:$0xff]
    %v1396 = vld [vmem:[#allocation7 + $0x20] sm:$0xff]
    %v1397 = vld [vmem:[#allocation7 + $0x28] sm:$0xff]
    %v1398 = vld [vmem:[#allocation7 + $0x30] sm:$0xff]
    %v1399 = vld [vmem:[#allocation7 + $0x38] sm:$0xff]
    %v1400 = vld [vmem:[#allocation7 + $0x40] sm:$0xff]
    %v1401 = vld [vmem:[#allocation7 + $0x48] sm:$0xff]
    %v1402 = vld [vmem:[#allocation7 + $0x50] sm:$0xff]
    %v1403 = vld [vmem:[#allocation7 + $0x58] sm:$0xff]
    %v1404 = vld [vmem:[#allocation7 + $0x60] sm:$0xff]
    %v1405 = vld [vmem:[#allocation7 + $0x68] sm:$0xff]
    %v1406 = vld [vmem:[#allocation7 + $0x70] sm:$0xff]
    %v1407 = vld [vmem:[#allocation7 + $0x78] sm:$0xff]
    %v1408 = vld [vmem:[#allocation4] sm:$0xff]
    %v1409 = vld [vmem:[#allocation4 + $0x8] sm:$0xff]
    %v1410 = vld [vmem:[#allocation4 + $0x10] sm:$0xff]
    %v1411 = vld [vmem:[#allocation4 + $0x18] sm:$0xff]
    %v1412 = vld [vmem:[#allocation4 + $0x20] sm:$0xff]
    %v1413 = vld [vmem:[#allocation4 + $0x28] sm:$0xff]
    %v1414 = vld [vmem:[#allocation4 + $0x30] sm:$0xff]
    %v1415 = vld [vmem:[#allocation4 + $0x38] sm:$0xff]
    %v1416 = vld [vmem:[#allocation9] sm:$0xff]
    %v1417 = vld [vmem:[#allocation9 + $0x8] sm:$0xff]
    %v1418 = vld [vmem:[#allocation9 + $0x10] sm:$0xff]
    %v1419 = vld [vmem:[#allocation9 + $0x18] sm:$0xff]
    %v1420 = vld [vmem:[#allocation9 + $0x20] sm:$0xff]
    %v1421 = vld [vmem:[#allocation9 + $0x28] sm:$0xff]
    %v1422 = vld [vmem:[#allocation9 + $0x30] sm:$0xff]
    %v1423 = vld [vmem:[#allocation9 + $0x38] sm:$0xff]
    %v1424 = vld [vmem:[#allocation9 + $0x40] sm:$0xff]
    %v1425 = vld [vmem:[#allocation9 + $0x48] sm:$0xff]
    %v1426 = vld [vmem:[#allocation9 + $0x50] sm:$0xff]
    %v1427 = vld [vmem:[#allocation9 + $0x58] sm:$0xff]
    %v1428 = vld [vmem:[#allocation9 + $0x60] sm:$0xff]
    %v1429 = vld [vmem:[#allocation9 + $0x68] sm:$0xff]
    %v1430 = vld [vmem:[#allocation9 + $0x70] sm:$0xff]
    %v1431 = vld [vmem:[#allocation9 + $0x78] sm:$0xff]
    %v1433 = vsel %vm558, %v1408, 0
    %v1436 = vsel %vm558, %v1409, 0
    %v1439 = vsel %vm558, %v1410, 0
    %v1442 = vsel %vm558, %v1411, 0
    %v1445 = vsel %vm558, %v1412, 0
    %v1448 = vsel %vm558, %v1413, 0
    %v1451 = vsel %vm558, %v1414, 0
    %v1454 = vsel %vm558, %v1415, 0
    %1456 = vmatprep.subr.mxu0 %v1417
    %1457 = vmatpush1.msra.mxu0 %v1416
    %1458 = vmatprep.subr.mxu0 %v1421
    %1459 = vmatpush1.msra.mxu0 %v1420
    %1460 = vmatprep.subr.mxu0 %v1425
    %1461 = vmatpush1.msra.mxu0 %v1424
    %1462 = vmatprep.subr.mxu0 %v1429
    %1463 = vmatpush1.msra.mxu0 %v1428
    %1464 = vmatprep.subr.mxu0 0.0
    %1465 = vmatpush1.msra.mxu0 0.0
    %1466 = vmatprep.subr.mxu0 0.0
    %1467 = vmatpush1.msra.mxu0 0.0
    %1468 = vmatprep.subr.mxu0 0.0
    %1469 = vmatpush1.msra.mxu0 0.0
    %1470 = vmatprep.subr.mxu0 0.0
    %1471 = vmatpush1.msra.mxu0 0.0
    %1472 = vmatprep.subr.mxu0 0.0
    %1473 = vmatpush1.msra.mxu0 0.0
    %1474 = vmatprep.subr.mxu0 0.0
    %1475 = vmatpush1.msra.mxu0 0.0
    %1476 = vmatprep.subr.mxu0 0.0
    %1477 = vmatpush1.msra.mxu0 0.0
    %1478 = vmatprep.subr.mxu0 0.0
    %1479 = vmatpush1.msra.mxu0 0.0
    %1480 = vmatprep.subr.mxu0 0.0
    %1481 = vmatpush1.msra.mxu0 0.0
    %1482 = vmatprep.subr.mxu0 0.0
    %1483 = vmatpush1.msra.mxu0 0.0
    %1484 = vmatprep.subr.mxu0 0.0
    %1485 = vmatpush1.msra.mxu0 0.0
    %1486 = vmatprep.subr.mxu0 0.0
    %1487 = vmatpush1.msra.mxu0 0.0
    %1488 = vmatprep.subr.mxu0 0.0
    %1489 = vmatpush1.msra.mxu0 0.0
    %1490 = vmatprep.subr.mxu0 0.0
    %1491 = vmatpush1.msra.mxu0 0.0
    %1492 = vmatprep.subr.mxu0 0.0
    %1493 = vmatpush1.msra.mxu0 0.0
    %1494 = vmatprep.subr.mxu0 0.0
    %1495 = vmatpush1.msra.mxu0 0.0
    %1496 = vmatprep.subr.mxu0 0.0
    %1497 = vmatpush1.msra.mxu0 0.0
    %1498 = vmatprep.subr.mxu0 0.0
    %1499 = vmatpush1.msra.mxu0 0.0
    %1500 = vmatprep.subr.mxu0 0.0
    %1501 = vmatpush1.msra.mxu0 0.0
    %1502 = vmatprep.subr.mxu0 0.0
    %1503 = vmatpush1.msra.mxu0 0.0
    %1504 = vmatprep.subr.mxu0 0.0
    %1505 = vmatpush1.msra.mxu0 0.0
    %1506 = vmatprep.subr.mxu0 0.0
    %1507 = vmatpush1.msra.mxu0 0.0
    %1508 = vmatprep.subr.mxu0 0.0
    %1509 = vmatpush1.msra.mxu0 0.0
    %1510 = vmatprep.subr.mxu0 0.0
    %1511 = vmatpush1.msra.mxu0 0.0
    %1512 = vmatprep.subr.mxu0 0.0
    %1513 = vmatpush1.msra.mxu0 0.0
    %1514 = vmatprep.subr.mxu0 0.0
    %1515 = vmatpush1.msra.mxu0 0.0
    %1516 = vmatprep.subr.mxu0 0.0
    %1517 = vmatpush1.msra.mxu0 0.0
    %1518 = vmatprep.subr.mxu0 0.0
    %1519 = vmatpush1.msra.mxu0 0.0
    %1520 = vmatprep.mubr.f32.mxu0 0.0
    %1521 = vmatmul.mubr.f32.gmra.mrb[0].mxu0 %v1433
    %v1522 = vpop.f32.mrb[0].mxu0
    %v1523 = vadd.f32 0.0, %v1522
    %v1524 = vpop.f32.mrb[0].mxu0
    %v1525 = vadd.f32 0.0, %v1524
    %1526 = vmatprep.mubr.f32.mxu0 0.0
    %1527 = vmatmul.mubr.f32.gmra.mrb[0].mxu0 %v1436
    %v1528 = vpop.f32.mrb[0].mxu0
    %v1529 = vadd.f32 0.0, %v1528
    %v1530 = vpop.f32.mrb[0].mxu0
    %v1531 = vadd.f32 0.0, %v1530
    %1532 = vmatprep.mubr.f32.mxu0 0.0
    %1533 = vmatmul.mubr.f32.gmra.mrb[0].mxu0 %v1439
    %v1534 = vpop.f32.mrb[0].mxu0
    %v1535 = vadd.f32 0.0, %v1534
    %v1536 = vpop.f32.mrb[0].mxu0
    %v1537 = vadd.f32 0.0, %v1536
    %1538 = vmatprep.mubr.f32.mxu0 0.0
    %1539 = vmatmul.mubr.f32.gmra.mrb[0].mxu0 %v1442
    %v1540 = vpop.f32.mrb[0].mxu0
    %v1541 = vadd.f32 0.0, %v1540
    %v1542 = vpop.f32.mrb[0].mxu0
    %v1543 = vadd.f32 0.0, %v1542
    %1544 = vmatprep.mubr.f32.mxu0 0.0
    %1545 = vmatmul.mubr.f32.gmra.mrb[0].mxu0 %v1445
    %v1546 = vpop.f32.mrb[0].mxu0
    %v1547 = vadd.f32 0.0, %v1546
    %v1548 = vpop.f32.mrb[0].mxu0
    %v1549 = vadd.f32 0.0, %v1548
    %1550 = vmatprep.mubr.f32.mxu0 0.0
    %1551 = vmatmul.mubr.f32.gmra.mrb[0].mxu0 %v1448
    %v1552 = vpop.f32.mrb[0].mxu0
    %v1553 = vadd.f32 0.0, %v1552
    %v1554 = vpop.f32.mrb[0].mxu0
    %v1555 = vadd.f32 0.0, %v1554
    %1556 = vmatprep.mubr.f32.mxu0 0.0
    %1557 = vmatmul.mubr.f32.gmra.mrb[0].mxu0 %v1451
    %v1558 = vpop.f32.mrb[0].mxu0
    %v1559 = vadd.f32 0.0, %v1558
    %v1560 = vpop.f32.mrb[0].mxu0
    %v1561 = vadd.f32 0.0, %v1560
    %1562 = vmatprep.mubr.f32.mxu0 0.0
    %1563 = vmatmul.mubr.f32.gmra.mrb[0].mxu0 %v1454
    %v1564 = vpop.f32.mrb[0].mxu0
    %v1565 = vadd.f32 0.0, %v1564
    %v1566 = vpop.f32.mrb[0].mxu0
    %v1567 = vadd.f32 0.0, %v1566
    %1568 = vdwg.mxu0
    %1569 = vmatprep.subr.mxu0 %v1419
    %1570 = vmatpush1.msra.mxu0 %v1418
    %1571 = vmatprep.subr.mxu0 %v1423
    %1572 = vmatpush1.msra.mxu0 %v1422
    %1573 = vmatprep.subr.mxu0 %v1427
    %1574 = vmatpush1.msra.mxu0 %v1426
    %1575 = vmatprep.subr.mxu0 %v1431
    %1576 = vmatpush1.msra.mxu0 %v1430
    %1577 = vmatprep.subr.mxu0 0.0
    %1578 = vmatpush1.msra.mxu0 0.0
    %1579 = vmatprep.subr.mxu0 0.0
    %1580 = vmatpush1.msra.mxu0 0.0
    %1581 = vmatprep.subr.mxu0 0.0
    %1582 = vmatpush1.msra.mxu0 0.0
    %1583 = vmatprep.subr.mxu0 0.0
    %1584 = vmatpush1.msra.mxu0 0.0
    %1585 = vmatprep.subr.mxu0 0.0
    %1586 = vmatpush1.msra.mxu0 0.0
    %1587 = vmatprep.subr.mxu0 0.0
    %1588 = vmatpush1.msra.mxu0 0.0
    %1589 = vmatprep.subr.mxu0 0.0
    %1590 = vmatpush1.msra.mxu0 0.0
    %1591 = vmatprep.subr.mxu0 0.0
    %1592 = vmatpush1.msra.mxu0 0.0
    %1593 = vmatprep.subr.mxu0 0.0
    %1594 = vmatpush1.msra.mxu0 0.0
    %1595 = vmatprep.subr.mxu0 0.0
    %1596 = vmatpush1.msra.mxu0 0.0
    %1597 = vmatprep.subr.mxu0 0.0
    %1598 = vmatpush1.msra.mxu0 0.0
    %1599 = vmatprep.subr.mxu0 0.0
    %1600 = vmatpush1.msra.mxu0 0.0
    %1601 = vmatprep.subr.mxu0 0.0
    %1602 = vmatpush1.msra.mxu0 0.0
    %1603 = vmatprep.subr.mxu0 0.0
    %1604 = vmatpush1.msra.mxu0 0.0
    %1605 = vmatprep.subr.mxu0 0.0
    %1606 = vmatpush1.msra.mxu0 0.0
    %1607 = vmatprep.subr.mxu0 0.0
    %1608 = vmatpush1.msra.mxu0 0.0
    %1609 = vmatprep.subr.mxu0 0.0
    %1610 = vmatpush1.msra.mxu0 0.0
    %1611 = vmatprep.subr.mxu0 0.0
    %1612 = vmatpush1.msra.mxu0 0.0
    %1613 = vmatprep.subr.mxu0 0.0
    %1614 = vmatpush1.msra.mxu0 0.0
    %1615 = vmatprep.subr.mxu0 0.0
    %1616 = vmatpush1.msra.mxu0 0.0
    %1617 = vmatprep.subr.mxu0 0.0
    %1618 = vmatpush1.msra.mxu0 0.0
    %1619 = vmatprep.subr.mxu0 0.0
    %1620 = vmatpush1.msra.mxu0 0.0
    %1621 = vmatprep.subr.mxu0 0.0
    %1622 = vmatpush1.msra.mxu0 0.0
    %1623 = vmatprep.subr.mxu0 0.0
    %1624 = vmatpush1.msra.mxu0 0.0
    %1625 = vmatprep.subr.mxu0 0.0
    %1626 = vmatpush1.msra.mxu0 0.0
    %1627 = vmatprep.subr.mxu0 0.0
    %1628 = vmatpush1.msra.mxu0 0.0
    %1629 = vmatprep.subr.mxu0 0.0
    %1630 = vmatpush1.msra.mxu0 0.0
    %1631 = vmatprep.subr.mxu0 0.0
    %1632 = vmatpush1.msra.mxu0 0.0
    %1633 = vmatprep.mubr.f32.mxu0 0.0
    %1634 = vmatmul.mubr.f32.gmra.mrb[0].mxu0 %v1433
    %v1635 = vpop.f32.mrb[0].mxu0
    %v1636 = vadd.f32 0.0, %v1635
    %v1637 = vpop.f32.mrb[0].mxu0
    %v1638 = vadd.f32 0.0, %v1637
    %1639 = vmatprep.mubr.f32.mxu0 0.0
    %1640 = vmatmul.mubr.f32.gmra.mrb[0].mxu0 %v1436
    %v1641 = vpop.f32.mrb[0].mxu0
    %v1642 = vadd.f32 0.0, %v1641
    %v1643 = vpop.f32.mrb[0].mxu0
    %v1644 = vadd.f32 0.0, %v1643
    %1645 = vmatprep.mubr.f32.mxu0 0.0
    %1646 = vmatmul.mubr.f32.gmra.mrb[0].mxu0 %v1439
    %v1647 = vpop.f32.mrb[0].mxu0
    %v1648 = vadd.f32 0.0, %v1647
    %v1649 = vpop.f32.mrb[0].mxu0
    %v1650 = vadd.f32 0.0, %v1649
    %1651 = vmatprep.mubr.f32.mxu0 0.0
    %1652 = vmatmul.mubr.f32.gmra.mrb[0].mxu0 %v1442
    %v1653 = vpop.f32.mrb[0].mxu0
    %v1654 = vadd.f32 0.0, %v1653
    %v1655 = vpop.f32.mrb[0].mxu0
    %v1656 = vadd.f32 0.0, %v1655
    %1657 = vmatprep.mubr.f32.mxu0 0.0
    %1658 = vmatmul.mubr.f32.gmra.mrb[0].mxu0 %v1445
    %v1659 = vpop.f32.mrb[0].mxu0
    %v1660 = vadd.f32 0.0, %v1659
    %v1661 = vpop.f32.mrb[0].mxu0
    %v1662 = vadd.f32 0.0, %v1661
    %1663 = vmatprep.mubr.f32.mxu0 0.0
    %1664 = vmatmul.mubr.f32.gmra.mrb[0].mxu0 %v1448
    %v1665 = vpop.f32.mrb[0].mxu0
    %v1666 = vadd.f32 0.0, %v1665
    %v1667 = vpop.f32.mrb[0].mxu0
    %v1668 = vadd.f32 0.0, %v1667
    %1669 = vmatprep.mubr.f32.mxu0 0.0
    %1670 = vmatmul.mubr.f32.gmra.mrb[0].mxu0 %v1451
    %v1671 = vpop.f32.mrb[0].mxu0
    %v1672 = vadd.f32 0.0, %v1671
    %v1673 = vpop.f32.mrb[0].mxu0
    %v1674 = vadd.f32 0.0, %v1673
    %1675 = vmatprep.mubr.f32.mxu0 0.0
    %1676 = vmatmul.mubr.f32.gmra.mrb[0].mxu0 %v1454
    %v1677 = vpop.f32.mrb[0].mxu0
    %v1678 = vadd.f32 0.0, %v1677
    %v1679 = vpop.f32.mrb[0].mxu0
    %v1680 = vadd.f32 0.0, %v1679
    %1681 = vdwg.mxu0
    %v1683 = vsel %vm558, %v1384, 0
    %v1686 = vsel %vm558, %v1385, 0
    %v1689 = vsel %vm558, %v1386, 0
    %v1692 = vsel %vm558, %v1387, 0
    %v1695 = vsel %vm558, %v1388, 0
    %v1698 = vsel %vm558, %v1389, 0
    %v1701 = vsel %vm558, %v1390, 0
    %v1704 = vsel %vm558, %v1391, 0
    %1706 = vmatprep.subr.mxu0 %v1393
    %1707 = vmatpush1.msra.mxu0 %v1392
    %1708 = vmatprep.subr.mxu0 %v1397
    %1709 = vmatpush1.msra.mxu0 %v1396
    %1710 = vmatprep.subr.mxu0 %v1401
    %1711 = vmatpush1.msra.mxu0 %v1400
    %1712 = vmatprep.subr.mxu0 %v1405
    %1713 = vmatpush1.msra.mxu0 %v1404
    %1714 = vmatprep.subr.mxu0 0.0
    %1715 = vmatpush1.msra.mxu0 0.0
    %1716 = vmatprep.subr.mxu0 0.0
    %1717 = vmatpush1.msra.mxu0 0.0
    %1718 = vmatprep.subr.mxu0 0.0
    %1719 = vmatpush1.msra.mxu0 0.0
    %1720 = vmatprep.subr.mxu0 0.0
    %1721 = vmatpush1.msra.mxu0 0.0
    %1722 = vmatprep.subr.mxu0 0.0
    %1723 = vmatpush1.msra.mxu0 0.0
    %1724 = vmatprep.subr.mxu0 0.0
    %1725 = vmatpush1.msra.mxu0 0.0
    %1726 = vmatprep.subr.mxu0 0.0
    %1727 = vmatpush1.msra.mxu0 0.0
    %1728 = vmatprep.subr.mxu0 0.0
    %1729 = vmatpush1.msra.mxu0 0.0
    %1730 = vmatprep.subr.mxu0 0.0
    %1731 = vmatpush1.msra.mxu0 0.0
    %1732 = vmatprep.subr.mxu0 0.0
    %1733 = vmatpush1.msra.mxu0 0.0
    %1734 = vmatprep.subr.mxu0 0.0
    %1735 = vmatpush1.msra.mxu0 0.0
    %1736 = vmatprep.subr.mxu0 0.0
    %1737 = vmatpush1.msra.mxu0 0.0
    %1738 = vmatprep.subr.mxu0 0.0
    %1739 = vmatpush1.msra.mxu0 0.0
    %1740 = vmatprep.subr.mxu0 0.0
    %1741 = vmatpush1.msra.mxu0 0.0
    %1742 = vmatprep.subr.mxu0 0.0
    %1743 = vmatpush1.msra.mxu0 0.0
    %1744 = vmatprep.subr.mxu0 0.0
    %1745 = vmatpush1.msra.mxu0 0.0
    %1746 = vmatprep.subr.mxu0 0.0
    %1747 = vmatpush1.msra.mxu0 0.0
    %1748 = vmatprep.subr.mxu0 0.0
    %1749 = vmatpush1.msra.mxu0 0.0
    %1750 = vmatprep.subr.mxu0 0.0
    %1751 = vmatpush1.msra.mxu0 0.0
    %1752 = vmatprep.subr.mxu0 0.0
    %1753 = vmatpush1.msra.mxu0 0.0
    %1754 = vmatprep.subr.mxu0 0.0
    %1755 = vmatpush1.msra.mxu0 0.0
    %1756 = vmatprep.subr.mxu0 0.0
    %1757 = vmatpush1.msra.mxu0 0.0
    %1758 = vmatprep.subr.mxu0 0.0
    %1759 = vmatpush1.msra.mxu0 0.0
    %1760 = vmatprep.subr.mxu0 0.0
    %1761 = vmatpush1.msra.mxu0 0.0
    %1762 = vmatprep.subr.mxu0 0.0
    %1763 = vmatpush1.msra.mxu0 0.0
    %1764 = vmatprep.subr.mxu0 0.0
    %1765 = vmatpush1.msra.mxu0 0.0
    %1766 = vmatprep.subr.mxu0 0.0
    %1767 = vmatpush1.msra.mxu0 0.0
    %1768 = vmatprep.subr.mxu0 0.0
    %1769 = vmatpush1.msra.mxu0 0.0
    %1770 = vmatprep.mubr.f32.mxu0 0.0
    %1771 = vmatmul.mubr.f32.gmra.mrb[0].mxu0 %v1683
    %v1772 = vpop.f32.mrb[0].mxu0
    %v1773 = vadd.f32 %v1523, %v1772
    %v1774 = vpop.f32.mrb[0].mxu0
    %v1775 = vadd.f32 %v1525, %v1774
    %1776 = vmatprep.mubr.f32.mxu0 0.0
    %1777 = vmatmul.mubr.f32.gmra.mrb[0].mxu0 %v1686
    %v1778 = vpop.f32.mrb[0].mxu0
    %v1779 = vadd.f32 %v1529, %v1778
    %v1780 = vpop.f32.mrb[0].mxu0
    %v1781 = vadd.f32 %v1531, %v1780
    %1782 = vmatprep.mubr.f32.mxu0 0.0
    %1783 = vmatmul.mubr.f32.gmra.mrb[0].mxu0 %v1689
    %v1784 = vpop.f32.mrb[0].mxu0
    %v1785 = vadd.f32 %v1535, %v1784
    %v1786 = vpop.f32.mrb[0].mxu0
    %v1787 = vadd.f32 %v1537, %v1786
    %1788 = vmatprep.mubr.f32.mxu0 0.0
    %1789 = vmatmul.mubr.f32.gmra.mrb[0].mxu0 %v1692
    %v1790 = vpop.f32.mrb[0].mxu0
    %v1791 = vadd.f32 %v1541, %v1790
    %v1792 = vpop.f32.mrb[0].mxu0
    %v1793 = vadd.f32 %v1543, %v1792
    %1794 = vmatprep.mubr.f32.mxu0 0.0
    %1795 = vmatmul.mubr.f32.gmra.mrb[0].mxu0 %v1695
    %v1796 = vpop.f32.mrb[0].mxu0
    %v1797 = vadd.f32 %v1547, %v1796
    %v1798 = vpop.f32.mrb[0].mxu0
    %v1799 = vadd.f32 %v1549, %v1798
    %1800 = vmatprep.mubr.f32.mxu0 0.0
    %1801 = vmatmul.mubr.f32.gmra.mrb[0].mxu0 %v1698
    %v1802 = vpop.f32.mrb[0].mxu0
    %v1803 = vadd.f32 %v1553, %v1802
    %v1804 = vpop.f32.mrb[0].mxu0
    %v1805 = vadd.f32 %v1555, %v1804
    %1806 = vmatprep.mubr.f32.mxu0 0.0
    %1807 = vmatmul.mubr.f32.gmra.mrb[0].mxu0 %v1701
    %v1808 = vpop.f32.mrb[0].mxu0
    %v1809 = vadd.f32 %v1559, %v1808
    %v1810 = vpop.f32.mrb[0].mxu0
    %v1811 = vadd.f32 %v1561, %v1810
    %1812 = vmatprep.mubr.f32.mxu0 0.0
    %1813 = vmatmul.mubr.f32.gmra.mrb[0].mxu0 %v1704
    %v1814 = vpop.f32.mrb[0].mxu0
    %v1815 = vadd.f32 %v1565, %v1814
    %v1816 = vpop.f32.mrb[0].mxu0
    %v1817 = vadd.f32 %v1567, %v1816
    %1818 = vdwg.mxu0
    %1819 = vmatprep.subr.mxu0 %v1395
    %1820 = vmatpush1.msra.mxu0 %v1394
    %1821 = vmatprep.subr.mxu0 %v1399
    %1822 = vmatpush1.msra.mxu0 %v1398
    %1823 = vmatprep.subr.mxu0 %v1403
    %1824 = vmatpush1.msra.mxu0 %v1402
    %1825 = vmatprep.subr.mxu0 %v1407
    %1826 = vmatpush1.msra.mxu0 %v1406
    %1827 = vmatprep.subr.mxu0 0.0
    %1828 = vmatpush1.msra.mxu0 0.0
    %1829 = vmatprep.subr.mxu0 0.0
    %1830 = vmatpush1.msra.mxu0 0.0
    %1831 = vmatprep.subr.mxu0 0.0
    %1832 = vmatpush1.msra.mxu0 0.0
    %1833 = vmatprep.subr.mxu0 0.0
    %1834 = vmatpush1.msra.mxu0 0.0
    %1835 = vmatprep.subr.mxu0 0.0
    %1836 = vmatpush1.msra.mxu0 0.0
    %1837 = vmatprep.subr.mxu0 0.0
    %1838 = vmatpush1.msra.mxu0 0.0
    %1839 = vmatprep.subr.mxu0 0.0
    %1840 = vmatpush1.msra.mxu0 0.0
    %1841 = vmatprep.subr.mxu0 0.0
    %1842 = vmatpush1.msra.mxu0 0.0
    %1843 = vmatprep.subr.mxu0 0.0
    %1844 = vmatpush1.msra.mxu0 0.0
    %1845 = vmatprep.subr.mxu0 0.0
    %1846 = vmatpush1.msra.mxu0 0.0
    %1847 = vmatprep.subr.mxu0 0.0
    %1848 = vmatpush1.msra.mxu0 0.0
    %1849 = vmatprep.subr.mxu0 0.0
    %1850 = vmatpush1.msra.mxu0 0.0
    %1851 = vmatprep.subr.mxu0 0.0
    %1852 = vmatpush1.msra.mxu0 0.0
    %1853 = vmatprep.subr.mxu0 0.0
    %1854 = vmatpush1.msra.mxu0 0.0
    %1855 = vmatprep.subr.mxu0 0.0
    %1856 = vmatpush1.msra.mxu0 0.0
    %1857 = vmatprep.subr.mxu0 0.0
    %1858 = vmatpush1.msra.mxu0 0.0
    %1859 = vmatprep.subr.mxu0 0.0
    %1860 = vmatpush1.msra.mxu0 0.0
    %1861 = vmatprep.subr.mxu0 0.0
    %1862 = vmatpush1.msra.mxu0 0.0
    %1863 = vmatprep.subr.mxu0 0.0
    %1864 = vmatpush1.msra.mxu0 0.0
    %1865 = vmatprep.subr.mxu0 0.0
    %1866 = vmatpush1.msra.mxu0 0.0
    %1867 = vmatprep.subr.mxu0 0.0
    %1868 = vmatpush1.msra.mxu0 0.0
    %1869 = vmatprep.subr.mxu0 0.0
    %1870 = vmatpush1.msra.mxu0 0.0
    %1871 = vmatprep.subr.mxu0 0.0
    %1872 = vmatpush1.msra.mxu0 0.0
    %1873 = vmatprep.subr.mxu0 0.0
    %1874 = vmatpush1.msra.mxu0 0.0
    %1875 = vmatprep.subr.mxu0 0.0
    %1876 = vmatpush1.msra.mxu0 0.0
    %1877 = vmatprep.subr.mxu0 0.0
    %1878 = vmatpush1.msra.mxu0 0.0
    %1879 = vmatprep.subr.mxu0 0.0
    %1880 = vmatpush1.msra.mxu0 0.0
    %1881 = vmatprep.subr.mxu0 0.0
    %1882 = vmatpush1.msra.mxu0 0.0
    %1883 = vmatprep.mubr.f32.mxu0 0.0
    %1884 = vmatmul.mubr.f32.gmra.mrb[0].mxu0 %v1683
    %v1885 = vpop.f32.mrb[0].mxu0
    %v1886 = vadd.f32 %v1636, %v1885
    %v1887 = vpop.f32.mrb[0].mxu0
    %v1888 = vadd.f32 %v1638, %v1887
    %1889 = vmatprep.mubr.f32.mxu0 0.0
    %1890 = vmatmul.mubr.f32.gmra.mrb[0].mxu0 %v1686
    %v1891 = vpop.f32.mrb[0].mxu0
    %v1892 = vadd.f32 %v1642, %v1891
    %v1893 = vpop.f32.mrb[0].mxu0
    %v1894 = vadd.f32 %v1644, %v1893
    %1895 = vmatprep.mubr.f32.mxu0 0.0
    %1896 = vmatmul.mubr.f32.gmra.mrb[0].mxu0 %v1689
    %v1897 = vpop.f32.mrb[0].mxu0
    %v1898 = vadd.f32 %v1648, %v1897
    %v1899 = vpop.f32.mrb[0].mxu0
    %v1900 = vadd.f32 %v1650, %v1899
    %1901 = vmatprep.mubr.f32.mxu0 0.0
    %1902 = vmatmul.mubr.f32.gmra.mrb[0].mxu0 %v1692
    %v1903 = vpop.f32.mrb[0].mxu0
    %v1904 = vadd.f32 %v1654, %v1903
    %v1905 = vpop.f32.mrb[0].mxu0
    %v1906 = vadd.f32 %v1656, %v1905
    %1907 = vmatprep.mubr.f32.mxu0 0.0
    %1908 = vmatmul.mubr.f32.gmra.mrb[0].mxu0 %v1695
    %v1909 = vpop.f32.mrb[0].mxu0
    %v1910 = vadd.f32 %v1660, %v1909
    %v1911 = vpop.f32.mrb[0].mxu0
    %v1912 = vadd.f32 %v1662, %v1911
    %1913 = vmatprep.mubr.f32.mxu0 0.0
    %1914 = vmatmul.mubr.f32.gmra.mrb[0].mxu0 %v1698
    %v1915 = vpop.f32.mrb[0].mxu0
    %v1916 = vadd.f32 %v1666, %v1915
    %v1917 = vpop.f32.mrb[0].mxu0
    %v1918 = vadd.f32 %v1668, %v1917
    %1919 = vmatprep.mubr.f32.mxu0 0.0
    %1920 = vmatmul.mubr.f32.gmra.mrb[0].mxu0 %v1701
    %v1921 = vpop.f32.mrb[0].mxu0
    %v1922 = vadd.f32 %v1672, %v1921
    %v1923 = vpop.f32.mrb[0].mxu0
    %v1924 = vadd.f32 %v1674, %v1923
    %1925 = vmatprep.mubr.f32.mxu0 0.0
    %1926 = vmatmul.mubr.f32.gmra.mrb[0].mxu0 %v1704
    %v1927 = vpop.f32.mrb[0].mxu0
    %v1928 = vadd.f32 %v1678, %v1927
    %v1929 = vpop.f32.mrb[0].mxu0
    %v1930 = vadd.f32 %v1680, %v1929
    %1931 = vdwg.mxu0
    %v1932 = vld [vmem:[%s7] sm:$0xf]
    %v1934 = vlaneseq
    %v1935 = vshrl.u32 %v1934, 7
    %v1936 = vsub.s32 0, %v1935
    %v1937 = vrot.slane %v1932, %v1936
    %v1938 = vlaneseq
    %v1939 = vshrl.u32 %v1938, 7
    %v1940 = vsub.s32 1, %v1939
    %v1941 = vrot.slane %v1932, %v1940
    %v1942 = vlaneseq
    %v1943 = vshrl.u32 %v1942, 7
    %v1944 = vsub.s32 2, %v1943
    %v1945 = vrot.slane %v1932, %v1944
    %v1946 = vlaneseq
    %v1947 = vshrl.u32 %v1946, 7
    %v1948 = vsub.s32 3, %v1947
    %v1949 = vrot.slane %v1932, %v1948
    %v1954 = vadd.f32 %v1773, %v1937
    %v1955 = vadd.f32 %v1775, %v1941
    %v1956 = vadd.f32 %v1886, %v1945
    %v1957 = vadd.f32 %v1888, %v1949
    %v1958 = vadd.f32 %v1779, %v1937
    %v1959 = vadd.f32 %v1781, %v1941
    %v1960 = vadd.f32 %v1892, %v1945
    %v1961 = vadd.f32 %v1894, %v1949
    %v1962 = vadd.f32 %v1785, %v1937
    %v1963 = vadd.f32 %v1787, %v1941
    %v1964 = vadd.f32 %v1898, %v1945
    %v1965 = vadd.f32 %v1900, %v1949
    %v1966 = vadd.f32 %v1791, %v1937
    %v1967 = vadd.f32 %v1793, %v1941
    %v1968 = vadd.f32 %v1904, %v1945
    %v1969 = vadd.f32 %v1906, %v1949
    %v1970 = vadd.f32 %v1797, %v1937
    %v1971 = vadd.f32 %v1799, %v1941
    %v1972 = vadd.f32 %v1910, %v1945
    %v1973 = vadd.f32 %v1912, %v1949
    %v1974 = vadd.f32 %v1803, %v1937
    %v1975 = vadd.f32 %v1805, %v1941
    %v1976 = vadd.f32 %v1916, %v1945
    %v1977 = vadd.f32 %v1918, %v1949
    %v1978 = vadd.f32 %v1809, %v1937
    %v1979 = vadd.f32 %v1811, %v1941
    %v1980 = vadd.f32 %v1922, %v1945
    %v1981 = vadd.f32 %v1924, %v1949
    %v1982 = vadd.f32 %v1815, %v1937
    %v1983 = vadd.f32 %v1817, %v1941
    %v1984 = vadd.f32 %v1928, %v1945
    %v1985 = vadd.f32 %v1930, %v1949
    %1986 = vst [vmem:[#allocation2] sm:$0xff] %v1954
    %1987 = vst [vmem:[#allocation2 + $0x8] sm:$0xff] %v1955
    %1988 = vst [vmem:[#allocation2 + $0x10] sm:$0xff] %v1956
    %1989 = vst [vmem:[#allocation2 + $0x18] sm:$0xff] %v1957
    %1990 = vst [vmem:[#allocation2 + $0x20] sm:$0xff] %v1958
    %1991 = vst [vmem:[#allocation2 + $0x28] sm:$0xff] %v1959
    %1992 = vst [vmem:[#allocation2 + $0x30] sm:$0xff] %v1960
    %1993 = vst [vmem:[#allocation2 + $0x38] sm:$0xff] %v1961
    %1994 = vst [vmem:[#allocation2 + $0x40] sm:$0xff] %v1962
    %1995 = vst [vmem:[#allocation2 + $0x48] sm:$0xff] %v1963
    %1996 = vst [vmem:[#allocation2 + $0x50] sm:$0xff] %v1964
    %1997 = vst [vmem:[#allocation2 + $0x58] sm:$0xff] %v1965
    %1998 = vst [vmem:[#allocation2 + $0x60] sm:$0xff] %v1966
    %1999 = vst [vmem:[#allocation2 + $0x68] sm:$0xff] %v1967
    %2000 = vst [vmem:[#allocation2 + $0x70] sm:$0xff] %v1968
    %2001 = vst [vmem:[#allocation2 + $0x78] sm:$0xff] %v1969
    %2002 = vst [vmem:[#allocation2 + $0x80] sm:$0xff] %v1970
    %2003 = vst [vmem:[#allocation2 + $0x88] sm:$0xff] %v1971
    %2004 = vst [vmem:[#allocation2 + $0x90] sm:$0xff] %v1972
    %2005 = vst [vmem:[#allocation2 + $0x98] sm:$0xff] %v1973
    %2006 = vst [vmem:[#allocation2 + $0xa0] sm:$0xff] %v1974
    %2007 = vst [vmem:[#allocation2 + $0xa8] sm:$0xff] %v1975
    %2008 = vst [vmem:[#allocation2 + $0xb0] sm:$0xff] %v1976
    %2009 = vst [vmem:[#allocation2 + $0xb8] sm:$0xff] %v1977
    %2010 = vst [vmem:[#allocation2 + $0xc0] sm:$0xff] %v1978
    %2011 = vst [vmem:[#allocation2 + $0xc8] sm:$0xff] %v1979
    %2012 = vst [vmem:[#allocation2 + $0xd0] sm:$0xff] %v1980
    %2013 = vst [vmem:[#allocation2 + $0xd8] sm:$0xff] %v1981
    %2014 = vst [vmem:[#allocation2 + $0xe0] sm:$0xff] %v1982
    %2015 = vst [vmem:[#allocation2 + $0xe8] sm:$0xff] %v1983
    %2016 = vst [vmem:[#allocation2 + $0xf0] sm:$0xff] %v1984
    %2017 = vst [vmem:[#allocation2 + $0xf8] sm:$0xff] %v1985
    %v2018 = vld [vmem:[#allocation11] sm:$0xff]
    %v2019 = vld [vmem:[#allocation11 + $0x8] sm:$0xff]
    %v2020 = vld [vmem:[#allocation11 + $0x10] sm:$0xff]
    %v2021 = vld [vmem:[#allocation11 + $0x18] sm:$0xff]
    %v2022 = vld [vmem:[#allocation11 + $0x20] sm:$0xff]
    %v2023 = vld [vmem:[#allocation11 + $0x28] sm:$0xff]
    %v2024 = vld [vmem:[#allocation11 + $0x30] sm:$0xff]
    %v2025 = vld [vmem:[#allocation11 + $0x38] sm:$0xff]
    %v2026 = vld [vmem:[#allocation11 + $0x40] sm:$0xff]
    %v2027 = vld [vmem:[#allocation11 + $0x48] sm:$0xff]
    %v2028 = vld [vmem:[#allocation11 + $0x50] sm:$0xff]
    %v2029 = vld [vmem:[#allocation11 + $0x58] sm:$0xff]
    %v2030 = vld [vmem:[#allocation11 + $0x60] sm:$0xff]
    %v2031 = vld [vmem:[#allocation11 + $0x68] sm:$0xff]
    %v2032 = vld [vmem:[#allocation11 + $0x70] sm:$0xff]
    %v2033 = vld [vmem:[#allocation11 + $0x78] sm:$0xff]
    %v2034 = vld [vmem:[#allocation2] sm:$0xff]
    %v2035 = vld [vmem:[#allocation2 + $0x8] sm:$0xff]
    %v2036 = vld [vmem:[#allocation2 + $0xf0] sm:$0xff]
    %v2037 = vld [vmem:[#allocation2 + $0xf8] sm:$0xff]
    %v2038 = vadd.f32 %v2034, %v2036
    %v2039 = vadd.f32 %v2035, %v2037
    %2040 = vmatprep.subr.mxu0 %v2019
    %2041 = vmatpush1.msra.mxu0 %v2018
    %2042 = vmatprep.subr.mxu0 %v2021
    %2043 = vmatpush1.msra.mxu0 %v2020
    %2044 = vmatprep.subr.mxu0 %v2023
    %2045 = vmatpush1.msra.mxu0 %v2022
    %2046 = vmatprep.subr.mxu0 %v2025
    %2047 = vmatpush1.msra.mxu0 %v2024
    %2048 = vmatprep.subr.mxu0 %v2027
    %2049 = vmatpush1.msra.mxu0 %v2026
    %2050 = vmatprep.subr.mxu0 %v2029
    %2051 = vmatpush1.msra.mxu0 %v2028
    %2052 = vmatprep.subr.mxu0 %v2031
    %2053 = vmatpush1.msra.mxu0 %v2030
    %2054 = vmatprep.subr.mxu0 %v2033
    %2055 = vmatpush1.msra.mxu0 %v2032
    %2056 = vmatprep.subr.mxu0 0.0
    %2057 = vmatpush1.msra.mxu0 0.0
    %2058 = vmatprep.subr.mxu0 0.0
    %2059 = vmatpush1.msra.mxu0 0.0
    %2060 = vmatprep.subr.mxu0 0.0
    %2061 = vmatpush1.msra.mxu0 0.0
    %2062 = vmatprep.subr.mxu0 0.0
    %2063 = vmatpush1.msra.mxu0 0.0
    %2064 = vmatprep.subr.mxu0 0.0
    %2065 = vmatpush1.msra.mxu0 0.0
    %2066 = vmatprep.subr.mxu0 0.0
    %2067 = vmatpush1.msra.mxu0 0.0
    %2068 = vmatprep.subr.mxu0 0.0
    %2069 = vmatpush1.msra.mxu0 0.0
    %2070 = vmatprep.subr.mxu0 0.0
    %2071 = vmatpush1.msra.mxu0 0.0
    %2072 = vmatprep.subr.mxu0 0.0
    %2073 = vmatpush1.msra.mxu0 0.0
    %2074 = vmatprep.subr.mxu0 0.0
    %2075 = vmatpush1.msra.mxu0 0.0
    %2076 = vmatprep.subr.mxu0 0.0
    %2077 = vmatpush1.msra.mxu0 0.0
    %2078 = vmatprep.subr.mxu0 0.0
    %2079 = vmatpush1.msra.mxu0 0.0
    %2080 = vmatprep.subr.mxu0 0.0
    %2081 = vmatpush1.msra.mxu0 0.0
    %2082 = vmatprep.subr.mxu0 0.0
    %2083 = vmatpush1.msra.mxu0 0.0
    %2084 = vmatprep.subr.mxu0 0.0
    %2085 = vmatpush1.msra.mxu0 0.0
    %2086 = vmatprep.subr.mxu0 0.0
    %2087 = vmatpush1.msra.mxu0 0.0
    %2088 = vmatprep.subr.mxu0 0.0
    %2089 = vmatpush1.msra.mxu0 0.0
    %2090 = vmatprep.subr.mxu0 0.0
    %2091 = vmatpush1.msra.mxu0 0.0
    %2092 = vmatprep.subr.mxu0 0.0
    %2093 = vmatpush1.msra.mxu0 0.0
    %2094 = vmatprep.subr.mxu0 0.0
    %2095 = vmatpush1.msra.mxu0 0.0
    %2096 = vmatprep.subr.mxu0 0.0
    %2097 = vmatpush1.msra.mxu0 0.0
    %2098 = vmatprep.subr.mxu0 0.0
    %2099 = vmatpush1.msra.mxu0 0.0
    %2100 = vmatprep.subr.mxu0 0.0
    %2101 = vmatpush1.msra.mxu0 0.0
    %2102 = vmatprep.subr.mxu0 0.0
    %2103 = vmatpush1.msra.mxu0 0.0
    %2104 = vmatprep.mubr.f32.mxu0 0.0
    %2105 = vmatmul.mubr.f32.gmra.mrb[0].mxu0 %v453
    %v2106 = vpop.f32.mrb[0].mxu0
    %v2107 = vadd.f32 0.0, %v2106
    %v2108 = vpop.f32.mrb[0].mxu0
    %v2109 = vadd.f32 0.0, %v2108
    %2110 = vdwg.mxu0
    %v2111 = vadd.f32 %v2038, %v2107
    %v2112 = vadd.f32 %v2039, %v2109
    %v2113 = vxor.u32 %v2111, 2147483648
    %v2114 = vxor.u32 %v2112, 2147483648
    %v2115 = vmul.f32 %v2113, 1.442695
    %v2116 = vpow.pop %v2115
    %v2117 = vmul.f32 %v2114, 1.442695
    %v2118 = vpow.pop %v2117
    %v2119 = vadd.f32 %v2116, 1.0
    %v2120 = vadd.f32 %v2118, 1.0
    %v2121 = vrcp.pop %v2119
    %v2122 = vmul.f32 1.0, %v2121
    %v2123 = vrcp.pop %v2120
    %v2124 = vmul.f32 1.0, %v2123
    %v2125 = vtanh.pop %v2112
    %v2126 = vmul.f32 %v2122, 0.0
    %2128 = vrot.lane.b32.xlu0 %v2125, 64
    %v2129 = vpop.permute.xlu0 %2128
    %v2131 = vmul.f32 %v2122, %v2129
    %2133 = vrot.lane.b32.xlu0 %v2131, 64
    %v2134 = vpop.permute.xlu0 %2133
    %v2136 = vadd.f32 %v2126, %v2134
    %v2137 = vtanh.pop %v2136
    %2139 = vrot.lane.b32.xlu0 %v2137, 64
    %v2140 = vpop.permute.xlu0 %2139
    %v2142 = vmul.f32 %v2124, %v2140
    %2143 = vst.msk [vmem:[#allocation3] sm:$0xff] %vm558, %v2142
    %2145 = vrot.lane.b32.xlu0 %v2142, 96
    %v2146 = vpop.permute.xlu0 %2145
    %2148 = vst.msk [vmem:[#allocation4 + $0x38] sm:$0xff] %vm558, %v2146
    %v2149 = vld [vmem:[#allocation2 + $0x20] sm:$0xff]
    %v2150 = vld [vmem:[#allocation2 + $0x28] sm:$0xff]
    %v2151 = vld [vmem:[#allocation2 + $0xd0] sm:$0xff]
    %v2152 = vld [vmem:[#allocation2 + $0xd8] sm:$0xff]
    %v2153 = vadd.f32 %v2149, %v2151
    %v2154 = vadd.f32 %v2150, %v2152
    %v2155 = vsel %vm451, %v2142, 0
    %2157 = vmatprep.subr.mxu0 %v2019
    %2158 = vmatpush1.msra.mxu0 %v2018
    %2159 = vmatprep.subr.mxu0 %v2021
    %2160 = vmatpush1.msra.mxu0 %v2020
    %2161 = vmatprep.subr.mxu0 %v2023
    %2162 = vmatpush1.msra.mxu0 %v2022
    %2163 = vmatprep.subr.mxu0 %v2025
    %2164 = vmatpush1.msra.mxu0 %v2024
    %2165 = vmatprep.subr.mxu0 %v2027
    %2166 = vmatpush1.msra.mxu0 %v2026
    %2167 = vmatprep.subr.mxu0 %v2029
    %2168 = vmatpush1.msra.mxu0 %v2028
    %2169 = vmatprep.subr.mxu0 %v2031
    %2170 = vmatpush1.msra.mxu0 %v2030
    %2171 = vmatprep.subr.mxu0 %v2033
    %2172 = vmatpush1.msra.mxu0 %v2032
    %2173 = vmatprep.subr.mxu0 0.0
    %2174 = vmatpush1.msra.mxu0 0.0
    %2175 = vmatprep.subr.mxu0 0.0
    %2176 = vmatpush1.msra.mxu0 0.0
    %2177 = vmatprep.subr.mxu0 0.0
    %2178 = vmatpush1.msra.mxu0 0.0
    %2179 = vmatprep.subr.mxu0 0.0
    %2180 = vmatpush1.msra.mxu0 0.0
    %2181 = vmatprep.subr.mxu0 0.0
    %2182 = vmatpush1.msra.mxu0 0.0
    %2183 = vmatprep.subr.mxu0 0.0
    %2184 = vmatpush1.msra.mxu0 0.0
    %2185 = vmatprep.subr.mxu0 0.0
    %2186 = vmatpush1.msra.mxu0 0.0
    %2187 = vmatprep.subr.mxu0 0.0
    %2188 = vmatpush1.msra.mxu0 0.0
    %2189 = vmatprep.subr.mxu0 0.0
    %2190 = vmatpush1.msra.mxu0 0.0
    %2191 = vmatprep.subr.mxu0 0.0
    %2192 = vmatpush1.msra.mxu0 0.0
    %2193 = vmatprep.subr.mxu0 0.0
    %2194 = vmatpush1.msra.mxu0 0.0
    %2195 = vmatprep.subr.mxu0 0.0
    %2196 = vmatpush1.msra.mxu0 0.0
    %2197 = vmatprep.subr.mxu0 0.0
    %2198 = vmatpush1.msra.mxu0 0.0
    %2199 = vmatprep.subr.mxu0 0.0
    %2200 = vmatpush1.msra.mxu0 0.0
    %2201 = vmatprep.subr.mxu0 0.0
    %2202 = vmatpush1.msra.mxu0 0.0
    %2203 = vmatprep.subr.mxu0 0.0
    %2204 = vmatpush1.msra.mxu0 0.0
    %2205 = vmatprep.subr.mxu0 0.0
    %2206 = vmatpush1.msra.mxu0 0.0
    %2207 = vmatprep.subr.mxu0 0.0
    %2208 = vmatpush1.msra.mxu0 0.0
    %2209 = vmatprep.subr.mxu0 0.0
    %2210 = vmatpush1.msra.mxu0 0.0
    %2211 = vmatprep.subr.mxu0 0.0
    %2212 = vmatpush1.msra.mxu0 0.0
    %2213 = vmatprep.subr.mxu0 0.0
    %2214 = vmatpush1.msra.mxu0 0.0
    %2215 = vmatprep.subr.mxu0 0.0
    %2216 = vmatpush1.msra.mxu0 0.0
    %2217 = vmatprep.subr.mxu0 0.0
    %2218 = vmatpush1.msra.mxu0 0.0
    %2219 = vmatprep.subr.mxu0 0.0
    %2220 = vmatpush1.msra.mxu0 0.0
    %2221 = vmatprep.mubr.f32.mxu0 0.0
    %2222 = vmatmul.mubr.f32.gmra.mrb[0].mxu0 %v2155
    %v2223 = vpop.f32.mrb[0].mxu0
    %v2224 = vadd.f32 0.0, %v2223
    %v2225 = vpop.f32.mrb[0].mxu0
    %v2226 = vadd.f32 0.0, %v2225
    %2227 = vdwg.mxu0
    %v2228 = vadd.f32 %v2153, %v2224
    %v2229 = vadd.f32 %v2154, %v2226
    %v2230 = vxor.u32 %v2228, 2147483648
    %v2231 = vxor.u32 %v2229, 2147483648
    %v2232 = vmul.f32 %v2230, 1.442695
    %v2233 = vpow.pop %v2232
    %v2234 = vmul.f32 %v2231, 1.442695
    %v2235 = vpow.pop %v2234
    %v2236 = vadd.f32 %v2233, 1.0
    %v2237 = vadd.f32 %v2235, 1.0
    %v2238 = vrcp.pop %v2236
    %v2239 = vmul.f32 1.0, %v2238
    %v2240 = vrcp.pop %v2237
    %v2241 = vmul.f32 1.0, %v2240
    %v2242 = vtanh.pop %v2229
    %v2243 = vmul.f32 %v2239, %v2136
    %2245 = vrot.lane.b32.xlu0 %v2242, 64
    %v2246 = vpop.permute.xlu0 %2245
    %v2248 = vmul.f32 %v2239, %v2246
    %2250 = vrot.lane.b32.xlu0 %v2248, 64
    %v2251 = vpop.permute.xlu0 %2250
    %v2253 = vadd.f32 %v2243, %v2251
    %v2254 = vtanh.pop %v2253
    %2256 = vrot.lane.b32.xlu0 %v2254, 64
    %v2257 = vpop.permute.xlu0 %2256
    %v2259 = vmul.f32 %v2241, %v2257
    %2260 = vst.msk [vmem:[#allocation3 + $0x8] sm:$0xff] %vm558, %v2259
    %2262 = vrot.lane.b32.xlu0 %v2259, 96
    %v2263 = vpop.permute.xlu0 %2262
    %2265 = vst.msk [vmem:[#allocation4 + $0x30] sm:$0xff] %vm558, %v2263
    %v2266 = vld [vmem:[#allocation2 + $0x40] sm:$0xff]
    %v2267 = vld [vmem:[#allocation2 + $0x48] sm:$0xff]
    %v2268 = vld [vmem:[#allocation2 + $0xb0] sm:$0xff]
    %v2269 = vld [vmem:[#allocation2 + $0xb8] sm:$0xff]
    %v2270 = vadd.f32 %v2266, %v2268
    %v2271 = vadd.f32 %v2267, %v2269
    %v2272 = vsel %vm451, %v2259, 0
    %2274 = vmatprep.subr.mxu0 %v2019
    %2275 = vmatpush1.msra.mxu0 %v2018
    %2276 = vmatprep.subr.mxu0 %v2021
    %2277 = vmatpush1.msra.mxu0 %v2020
    %2278 = vmatprep.subr.mxu0 %v2023
    %2279 = vmatpush1.msra.mxu0 %v2022
    %2280 = vmatprep.subr.mxu0 %v2025
    %2281 = vmatpush1.msra.mxu0 %v2024
    %2282 = vmatprep.subr.mxu0 %v2027
    %2283 = vmatpush1.msra.mxu0 %v2026
    %2284 = vmatprep.subr.mxu0 %v2029
    %2285 = vmatpush1.msra.mxu0 %v2028
    %2286 = vmatprep.subr.mxu0 %v2031
    %2287 = vmatpush1.msra.mxu0 %v2030
    %2288 = vmatprep.subr.mxu0 %v2033
    %2289 = vmatpush1.msra.mxu0 %v2032
    %2290 = vmatprep.subr.mxu0 0.0
    %2291 = vmatpush1.msra.mxu0 0.0
    %2292 = vmatprep.subr.mxu0 0.0
    %2293 = vmatpush1.msra.mxu0 0.0
    %2294 = vmatprep.subr.mxu0 0.0
    %2295 = vmatpush1.msra.mxu0 0.0
    %2296 = vmatprep.subr.mxu0 0.0
    %2297 = vmatpush1.msra.mxu0 0.0
    %2298 = vmatprep.subr.mxu0 0.0
    %2299 = vmatpush1.msra.mxu0 0.0
    %2300 = vmatprep.subr.mxu0 0.0
    %2301 = vmatpush1.msra.mxu0 0.0
    %2302 = vmatprep.subr.mxu0 0.0
    %2303 = vmatpush1.msra.mxu0 0.0
    %2304 = vmatprep.subr.mxu0 0.0
    %2305 = vmatpush1.msra.mxu0 0.0
    %2306 = vmatprep.subr.mxu0 0.0
    %2307 = vmatpush1.msra.mxu0 0.0
    %2308 = vmatprep.subr.mxu0 0.0
    %2309 = vmatpush1.msra.mxu0 0.0
    %2310 = vmatprep.subr.mxu0 0.0
    %2311 = vmatpush1.msra.mxu0 0.0
    %2312 = vmatprep.subr.mxu0 0.0
    %2313 = vmatpush1.msra.mxu0 0.0
    %2314 = vmatprep.subr.mxu0 0.0
    %2315 = vmatpush1.msra.mxu0 0.0
    %2316 = vmatprep.subr.mxu0 0.0
    %2317 = vmatpush1.msra.mxu0 0.0
    %2318 = vmatprep.subr.mxu0 0.0
    %2319 = vmatpush1.msra.mxu0 0.0
    %2320 = vmatprep.subr.mxu0 0.0
    %2321 = vmatpush1.msra.mxu0 0.0
    %2322 = vmatprep.subr.mxu0 0.0
    %2323 = vmatpush1.msra.mxu0 0.0
    %2324 = vmatprep.subr.mxu0 0.0
    %2325 = vmatpush1.msra.mxu0 0.0
    %2326 = vmatprep.subr.mxu0 0.0
    %2327 = vmatpush1.msra.mxu0 0.0
    %2328 = vmatprep.subr.mxu0 0.0
    %2329 = vmatpush1.msra.mxu0 0.0
    %2330 = vmatprep.subr.mxu0 0.0
    %2331 = vmatpush1.msra.mxu0 0.0
    %2332 = vmatprep.subr.mxu0 0.0
    %2333 = vmatpush1.msra.mxu0 0.0
    %2334 = vmatprep.subr.mxu0 0.0
    %2335 = vmatpush1.msra.mxu0 0.0
    %2336 = vmatprep.subr.mxu0 0.0
    %2337 = vmatpush1.msra.mxu0 0.0
    %2338 = vmatprep.mubr.f32.mxu0 0.0
    %2339 = vmatmul.mubr.f32.gmra.mrb[0].mxu0 %v2272
    %v2340 = vpop.f32.mrb[0].mxu0
    %v2341 = vadd.f32 0.0, %v2340
    %v2342 = vpop.f32.mrb[0].mxu0
    %v2343 = vadd.f32 0.0, %v2342
    %2344 = vdwg.mxu0
    %v2345 = vadd.f32 %v2270, %v2341
    %v2346 = vadd.f32 %v2271, %v2343
    %v2347 = vxor.u32 %v2345, 2147483648
    %v2348 = vxor.u32 %v2346, 2147483648
    %v2349 = vmul.f32 %v2347, 1.442695
    %v2350 = vpow.pop %v2349
    %v2351 = vmul.f32 %v2348, 1.442695
    %v2352 = vpow.pop %v2351
    %v2353 = vadd.f32 %v2350, 1.0
    %v2354 = vadd.f32 %v2352, 1.0
    %v2355 = vrcp.pop %v2353
    %v2356 = vmul.f32 1.0, %v2355
    %v2357 = vrcp.pop %v2354
    %v2358 = vmul.f32 1.0, %v2357
    %v2359 = vtanh.pop %v2346
    %v2360 = vmul.f32 %v2356, %v2253
    %2362 = vrot.lane.b32.xlu0 %v2359, 64
    %v2363 = vpop.permute.xlu0 %2362
    %v2365 = vmul.f32 %v2356, %v2363
    %2367 = vrot.lane.b32.xlu0 %v2365, 64
    %v2368 = vpop.permute.xlu0 %2367
    %v2370 = vadd.f32 %v2360, %v2368
    %v2371 = vtanh.pop %v2370
    %2373 = vrot.lane.b32.xlu0 %v2371, 64
    %v2374 = vpop.permute.xlu0 %2373
    %v2376 = vmul.f32 %v2358, %v2374
    %2377 = vst.msk [vmem:[#allocation3 + $0x10] sm:$0xff] %vm558, %v2376
    %2379 = vrot.lane.b32.xlu0 %v2376, 96
    %v2380 = vpop.permute.xlu0 %2379
    %2382 = vst.msk [vmem:[#allocation4 + $0x28] sm:$0xff] %vm558, %v2380
    %v2383 = vld [vmem:[#allocation2 + $0x60] sm:$0xff]
    %v2384 = vld [vmem:[#allocation2 + $0x68] sm:$0xff]
    %v2385 = vld [vmem:[#allocation2 + $0x90] sm:$0xff]
    %v2386 = vld [vmem:[#allocation2 + $0x98] sm:$0xff]
    %v2387 = vadd.f32 %v2383, %v2385
    %v2388 = vadd.f32 %v2384, %v2386
    %v2389 = vsel %vm451, %v2376, 0
    %2391 = vmatprep.subr.mxu0 %v2019
    %2392 = vmatpush1.msra.mxu0 %v2018
    %2393 = vmatprep.subr.mxu0 %v2021
    %2394 = vmatpush1.msra.mxu0 %v2020
    %2395 = vmatprep.subr.mxu0 %v2023
    %2396 = vmatpush1.msra.mxu0 %v2022
    %2397 = vmatprep.subr.mxu0 %v2025
    %2398 = vmatpush1.msra.mxu0 %v2024
    %2399 = vmatprep.subr.mxu0 %v2027
    %2400 = vmatpush1.msra.mxu0 %v2026
    %2401 = vmatprep.subr.mxu0 %v2029
    %2402 = vmatpush1.msra.mxu0 %v2028
    %2403 = vmatprep.subr.mxu0 %v2031
    %2404 = vmatpush1.msra.mxu0 %v2030
    %2405 = vmatprep.subr.mxu0 %v2033
    %2406 = vmatpush1.msra.mxu0 %v2032
    %2407 = vmatprep.subr.mxu0 0.0
    %2408 = vmatpush1.msra.mxu0 0.0
    %2409 = vmatprep.subr.mxu0 0.0
    %2410 = vmatpush1.msra.mxu0 0.0
    %2411 = vmatprep.subr.mxu0 0.0
    %2412 = vmatpush1.msra.mxu0 0.0
    %2413 = vmatprep.subr.mxu0 0.0
    %2414 = vmatpush1.msra.mxu0 0.0
    %2415 = vmatprep.subr.mxu0 0.0
    %2416 = vmatpush1.msra.mxu0 0.0
    %2417 = vmatprep.subr.mxu0 0.0
    %2418 = vmatpush1.msra.mxu0 0.0
    %2419 = vmatprep.subr.mxu0 0.0
    %2420 = vmatpush1.msra.mxu0 0.0
    %2421 = vmatprep.subr.mxu0 0.0
    %2422 = vmatpush1.msra.mxu0 0.0
    %2423 = vmatprep.subr.mxu0 0.0
    %2424 = vmatpush1.msra.mxu0 0.0
    %2425 = vmatprep.subr.mxu0 0.0
    %2426 = vmatpush1.msra.mxu0 0.0
    %2427 = vmatprep.subr.mxu0 0.0
    %2428 = vmatpush1.msra.mxu0 0.0
    %2429 = vmatprep.subr.mxu0 0.0
    %2430 = vmatpush1.msra.mxu0 0.0
    %2431 = vmatprep.subr.mxu0 0.0
    %2432 = vmatpush1.msra.mxu0 0.0
    %2433 = vmatprep.subr.mxu0 0.0
    %2434 = vmatpush1.msra.mxu0 0.0
    %2435 = vmatprep.subr.mxu0 0.0
    %2436 = vmatpush1.msra.mxu0 0.0
    %2437 = vmatprep.subr.mxu0 0.0
    %2438 = vmatpush1.msra.mxu0 0.0
    %2439 = vmatprep.subr.mxu0 0.0
    %2440 = vmatpush1.msra.mxu0 0.0
    %2441 = vmatprep.subr.mxu0 0.0
    %2442 = vmatpush1.msra.mxu0 0.0
    %2443 = vmatprep.subr.mxu0 0.0
    %2444 = vmatpush1.msra.mxu0 0.0
    %2445 = vmatprep.subr.mxu0 0.0
    %2446 = vmatpush1.msra.mxu0 0.0
    %2447 = vmatprep.subr.mxu0 0.0
    %2448 = vmatpush1.msra.mxu0 0.0
    %2449 = vmatprep.subr.mxu0 0.0
    %2450 = vmatpush1.msra.mxu0 0.0
    %2451 = vmatprep.subr.mxu0 0.0
    %2452 = vmatpush1.msra.mxu0 0.0
    %2453 = vmatprep.subr.mxu0 0.0
    %2454 = vmatpush1.msra.mxu0 0.0
    %2455 = vmatprep.mubr.f32.mxu0 0.0
    %2456 = vmatmul.mubr.f32.gmra.mrb[0].mxu0 %v2389
    %v2457 = vpop.f32.mrb[0].mxu0
    %v2458 = vadd.f32 0.0, %v2457
    %v2459 = vpop.f32.mrb[0].mxu0
    %v2460 = vadd.f32 0.0, %v2459
    %2461 = vdwg.mxu0
    %v2462 = vadd.f32 %v2387, %v2458
    %v2463 = vadd.f32 %v2388, %v2460
    %v2464 = vxor.u32 %v2462, 2147483648
    %v2465 = vxor.u32 %v2463, 2147483648
    %v2466 = vmul.f32 %v2464, 1.442695
    %v2467 = vpow.pop %v2466
    %v2468 = vmul.f32 %v2465, 1.442695
    %v2469 = vpow.pop %v2468
    %v2470 = vadd.f32 %v2467, 1.0
    %v2471 = vadd.f32 %v2469, 1.0
    %v2472 = vrcp.pop %v2470
    %v2473 = vmul.f32 1.0, %v2472
    %v2474 = vrcp.pop %v2471
    %v2475 = vmul.f32 1.0, %v2474
    %v2476 = vtanh.pop %v2463
    %v2477 = vmul.f32 %v2473, %v2370
    %2479 = vrot.lane.b32.xlu0 %v2476, 64
    %v2480 = vpop.permute.xlu0 %2479
    %v2482 = vmul.f32 %v2473, %v2480
    %2484 = vrot.lane.b32.xlu0 %v2482, 64
    %v2485 = vpop.permute.xlu0 %2484
    %v2487 = vadd.f32 %v2477, %v2485
    %v2488 = vtanh.pop %v2487
    %2490 = vrot.lane.b32.xlu0 %v2488, 64
    %v2491 = vpop.permute.xlu0 %2490
    %v2493 = vmul.f32 %v2475, %v2491
    %2494 = vst.msk [vmem:[#allocation3 + $0x18] sm:$0xff] %vm558, %v2493
    %2496 = vrot.lane.b32.xlu0 %v2493, 96
    %v2497 = vpop.permute.xlu0 %2496
    %2499 = vst.msk [vmem:[#allocation4 + $0x20] sm:$0xff] %vm558, %v2497
    %v2500 = vld [vmem:[#allocation2 + $0x80] sm:$0xff]
    %v2501 = vld [vmem:[#allocation2 + $0x88] sm:$0xff]
    %v2502 = vld [vmem:[#allocation2 + $0x70] sm:$0xff]
    %v2503 = vld [vmem:[#allocation2 + $0x78] sm:$0xff]
    %v2504 = vadd.f32 %v2500, %v2502
    %v2505 = vadd.f32 %v2501, %v2503
    %v2506 = vsel %vm451, %v2493, 0
    %2508 = vmatprep.subr.mxu0 %v2019
    %2509 = vmatpush1.msra.mxu0 %v2018
    %2510 = vmatprep.subr.mxu0 %v2021
    %2511 = vmatpush1.msra.mxu0 %v2020
    %2512 = vmatprep.subr.mxu0 %v2023
    %2513 = vmatpush1.msra.mxu0 %v2022
    %2514 = vmatprep.subr.mxu0 %v2025
    %2515 = vmatpush1.msra.mxu0 %v2024
    %2516 = vmatprep.subr.mxu0 %v2027
    %2517 = vmatpush1.msra.mxu0 %v2026
    %2518 = vmatprep.subr.mxu0 %v2029
    %2519 = vmatpush1.msra.mxu0 %v2028
    %2520 = vmatprep.subr.mxu0 %v2031
    %2521 = vmatpush1.msra.mxu0 %v2030
    %2522 = vmatprep.subr.mxu0 %v2033
    %2523 = vmatpush1.msra.mxu0 %v2032
    %2524 = vmatprep.subr.mxu0 0.0
    %2525 = vmatpush1.msra.mxu0 0.0
    %2526 = vmatprep.subr.mxu0 0.0
    %2527 = vmatpush1.msra.mxu0 0.0
    %2528 = vmatprep.subr.mxu0 0.0
    %2529 = vmatpush1.msra.mxu0 0.0
    %2530 = vmatprep.subr.mxu0 0.0
    %2531 = vmatpush1.msra.mxu0 0.0
    %2532 = vmatprep.subr.mxu0 0.0
    %2533 = vmatpush1.msra.mxu0 0.0
    %2534 = vmatprep.subr.mxu0 0.0
    %2535 = vmatpush1.msra.mxu0 0.0
    %2536 = vmatprep.subr.mxu0 0.0
    %2537 = vmatpush1.msra.mxu0 0.0
    %2538 = vmatprep.subr.mxu0 0.0
    %2539 = vmatpush1.msra.mxu0 0.0
    %2540 = vmatprep.subr.mxu0 0.0
    %2541 = vmatpush1.msra.mxu0 0.0
    %2542 = vmatprep.subr.mxu0 0.0
    %2543 = vmatpush1.msra.mxu0 0.0
    %2544 = vmatprep.subr.mxu0 0.0
    %2545 = vmatpush1.msra.mxu0 0.0
    %2546 = vmatprep.subr.mxu0 0.0
    %2547 = vmatpush1.msra.mxu0 0.0
    %2548 = vmatprep.subr.mxu0 0.0
    %2549 = vmatpush1.msra.mxu0 0.0
    %2550 = vmatprep.subr.mxu0 0.0
    %2551 = vmatpush1.msra.mxu0 0.0
    %2552 = vmatprep.subr.mxu0 0.0
    %2553 = vmatpush1.msra.mxu0 0.0
    %2554 = vmatprep.subr.mxu0 0.0
    %2555 = vmatpush1.msra.mxu0 0.0
    %2556 = vmatprep.subr.mxu0 0.0
    %2557 = vmatpush1.msra.mxu0 0.0
    %2558 = vmatprep.subr.mxu0 0.0
    %2559 = vmatpush1.msra.mxu0 0.0
    %2560 = vmatprep.subr.mxu0 0.0
    %2561 = vmatpush1.msra.mxu0 0.0
    %2562 = vmatprep.subr.mxu0 0.0
    %2563 = vmatpush1.msra.mxu0 0.0
    %2564 = vmatprep.subr.mxu0 0.0
    %2565 = vmatpush1.msra.mxu0 0.0
    %2566 = vmatprep.subr.mxu0 0.0
    %2567 = vmatpush1.msra.mxu0 0.0
    %2568 = vmatprep.subr.mxu0 0.0
    %2569 = vmatpush1.msra.mxu0 0.0
    %2570 = vmatprep.subr.mxu0 0.0
    %2571 = vmatpush1.msra.mxu0 0.0
    %2572 = vmatprep.mubr.f32.mxu0 0.0
    %2573 = vmatmul.mubr.f32.gmra.mrb[0].mxu0 %v2506
    %v2574 = vpop.f32.mrb[0].mxu0
    %v2575 = vadd.f32 0.0, %v2574
    %v2576 = vpop.f32.mrb[0].mxu0
    %v2577 = vadd.f32 0.0, %v2576
    %2578 = vdwg.mxu0
    %v2579 = vadd.f32 %v2504, %v2575
    %v2580 = vadd.f32 %v2505, %v2577
    %v2581 = vxor.u32 %v2579, 2147483648
    %v2582 = vxor.u32 %v2580, 2147483648
    %v2583 = vmul.f32 %v2581, 1.442695
    %v2584 = vpow.pop %v2583
    %v2585 = vmul.f32 %v2582, 1.442695
    %v2586 = vpow.pop %v2585
    %v2587 = vadd.f32 %v2584, 1.0
    %v2588 = vadd.f32 %v2586, 1.0
    %v2589 = vrcp.pop %v2587
    %v2590 = vmul.f32 1.0, %v2589
    %v2591 = vrcp.pop %v2588
    %v2592 = vmul.f32 1.0, %v2591
    %v2593 = vtanh.pop %v2580
    %v2594 = vmul.f32 %v2590, %v2487
    %2596 = vrot.lane.b32.xlu0 %v2593, 64
    %v2597 = vpop.permute.xlu0 %2596
    %v2599 = vmul.f32 %v2590, %v2597
    %2601 = vrot.lane.b32.xlu0 %v2599, 64
    %v2602 = vpop.permute.xlu0 %2601
    %v2604 = vadd.f32 %v2594, %v2602
    %v2605 = vtanh.pop %v2604
    %2607 = vrot.lane.b32.xlu0 %v2605, 64
    %v2608 = vpop.permute.xlu0 %2607
    %v2610 = vmul.f32 %v2592, %v2608
    %2611 = vst.msk [vmem:[#allocation3 + $0x20] sm:$0xff] %vm558, %v2610
    %2613 = vrot.lane.b32.xlu0 %v2610, 96
    %v2614 = vpop.permute.xlu0 %2613
    %2616 = vst.msk [vmem:[#allocation4 + $0x18] sm:$0xff] %vm558, %v2614
    %v2617 = vld [vmem:[#allocation2 + $0xa0] sm:$0xff]
    %v2618 = vld [vmem:[#allocation2 + $0xa8] sm:$0xff]
    %v2619 = vld [vmem:[#allocation2 + $0x50] sm:$0xff]
    %v2620 = vld [vmem:[#allocation2 + $0x58] sm:$0xff]
    %v2621 = vadd.f32 %v2617, %v2619
    %v2622 = vadd.f32 %v2618, %v2620
    %v2623 = vsel %vm451, %v2610, 0
    %2625 = vmatprep.subr.mxu0 %v2019
    %2626 = vmatpush1.msra.mxu0 %v2018
    %2627 = vmatprep.subr.mxu0 %v2021
    %2628 = vmatpush1.msra.mxu0 %v2020
    %2629 = vmatprep.subr.mxu0 %v2023
    %2630 = vmatpush1.msra.mxu0 %v2022
    %2631 = vmatprep.subr.mxu0 %v2025
    %2632 = vmatpush1.msra.mxu0 %v2024
    %2633 = vmatprep.subr.mxu0 %v2027
    %2634 = vmatpush1.msra.mxu0 %v2026
    %2635 = vmatprep.subr.mxu0 %v2029
    %2636 = vmatpush1.msra.mxu0 %v2028
    %2637 = vmatprep.subr.mxu0 %v2031
    %2638 = vmatpush1.msra.mxu0 %v2030
    %2639 = vmatprep.subr.mxu0 %v2033
    %2640 = vmatpush1.msra.mxu0 %v2032
    %2641 = vmatprep.subr.mxu0 0.0
    %2642 = vmatpush1.msra.mxu0 0.0
    %2643 = vmatprep.subr.mxu0 0.0
    %2644 = vmatpush1.msra.mxu0 0.0
    %2645 = vmatprep.subr.mxu0 0.0
    %2646 = vmatpush1.msra.mxu0 0.0
    %2647 = vmatprep.subr.mxu0 0.0
    %2648 = vmatpush1.msra.mxu0 0.0
    %2649 = vmatprep.subr.mxu0 0.0
    %2650 = vmatpush1.msra.mxu0 0.0
    %2651 = vmatprep.subr.mxu0 0.0
    %2652 = vmatpush1.msra.mxu0 0.0
    %2653 = vmatprep.subr.mxu0 0.0
    %2654 = vmatpush1.msra.mxu0 0.0
    %2655 = vmatprep.subr.mxu0 0.0
    %2656 = vmatpush1.msra.mxu0 0.0
    %2657 = vmatprep.subr.mxu0 0.0
    %2658 = vmatpush1.msra.mxu0 0.0
    %2659 = vmatprep.subr.mxu0 0.0
    %2660 = vmatpush1.msra.mxu0 0.0
    %2661 = vmatprep.subr.mxu0 0.0
    %2662 = vmatpush1.msra.mxu0 0.0
    %2663 = vmatprep.subr.mxu0 0.0
    %2664 = vmatpush1.msra.mxu0 0.0
    %2665 = vmatprep.subr.mxu0 0.0
    %2666 = vmatpush1.msra.mxu0 0.0
    %2667 = vmatprep.subr.mxu0 0.0
    %2668 = vmatpush1.msra.mxu0 0.0
    %2669 = vmatprep.subr.mxu0 0.0
    %2670 = vmatpush1.msra.mxu0 0.0
    %2671 = vmatprep.subr.mxu0 0.0
    %2672 = vmatpush1.msra.mxu0 0.0
    %2673 = vmatprep.subr.mxu0 0.0
    %2674 = vmatpush1.msra.mxu0 0.0
    %2675 = vmatprep.subr.mxu0 0.0
    %2676 = vmatpush1.msra.mxu0 0.0
    %2677 = vmatprep.subr.mxu0 0.0
    %2678 = vmatpush1.msra.mxu0 0.0
    %2679 = vmatprep.subr.mxu0 0.0
    %2680 = vmatpush1.msra.mxu0 0.0
    %2681 = vmatprep.subr.mxu0 0.0
    %2682 = vmatpush1.msra.mxu0 0.0
    %2683 = vmatprep.subr.mxu0 0.0
    %2684 = vmatpush1.msra.mxu0 0.0
    %2685 = vmatprep.subr.mxu0 0.0
    %2686 = vmatpush1.msra.mxu0 0.0
    %2687 = vmatprep.subr.mxu0 0.0
    %2688 = vmatpush1.msra.mxu0 0.0
    %2689 = vmatprep.mubr.f32.mxu0 0.0
    %2690 = vmatmul.mubr.f32.gmra.mrb[0].mxu0 %v2623
    %v2691 = vpop.f32.mrb[0].mxu0
    %v2692 = vadd.f32 0.0, %v2691
    %v2693 = vpop.f32.mrb[0].mxu0
    %v2694 = vadd.f32 0.0, %v2693
    %2695 = vdwg.mxu0
    %v2696 = vadd.f32 %v2621, %v2692
    %v2697 = vadd.f32 %v2622, %v2694
    %v2698 = vxor.u32 %v2696, 2147483648
    %v2699 = vxor.u32 %v2697, 2147483648
    %v2700 = vmul.f32 %v2698, 1.442695
    %v2701 = vpow.pop %v2700
    %v2702 = vmul.f32 %v2699, 1.442695
    %v2703 = vpow.pop %v2702
    %v2704 = vadd.f32 %v2701, 1.0
    %v2705 = vadd.f32 %v2703, 1.0
    %v2706 = vrcp.pop %v2704
    %v2707 = vmul.f32 1.0, %v2706
    %v2708 = vrcp.pop %v2705
    %v2709 = vmul.f32 1.0, %v2708
    %v2710 = vtanh.pop %v2697
    %v2711 = vmul.f32 %v2707, %v2604
    %2713 = vrot.lane.b32.xlu0 %v2710, 64
    %v2714 = vpop.permute.xlu0 %2713
    %v2716 = vmul.f32 %v2707, %v2714
    %2718 = vrot.lane.b32.xlu0 %v2716, 64
    %v2719 = vpop.permute.xlu0 %2718
    %v2721 = vadd.f32 %v2711, %v2719
    %v2722 = vtanh.pop %v2721
    %2724 = vrot.lane.b32.xlu0 %v2722, 64
    %v2725 = vpop.permute.xlu0 %2724
    %v2727 = vmul.f32 %v2709, %v2725
    %2728 = vst.msk [vmem:[#allocation3 + $0x28] sm:$0xff] %vm558, %v2727
    %2730 = vrot.lane.b32.xlu0 %v2727, 96
    %v2731 = vpop.permute.xlu0 %2730
    %2733 = vst.msk [vmem:[#allocation4 + $0x10] sm:$0xff] %vm558, %v2731
    %v2734 = vld [vmem:[#allocation2 + $0xc0] sm:$0xff]
    %v2735 = vld [vmem:[#allocation2 + $0xc8] sm:$0xff]
    %v2736 = vld [vmem:[#allocation2 + $0x30] sm:$0xff]
    %v2737 = vld [vmem:[#allocation2 + $0x38] sm:$0xff]
    %v2738 = vadd.f32 %v2734, %v2736
    %v2739 = vadd.f32 %v2735, %v2737
    %v2740 = vsel %vm451, %v2727, 0
    %2742 = vmatprep.subr.mxu0 %v2019
    %2743 = vmatpush1.msra.mxu0 %v2018
    %2744 = vmatprep.subr.mxu0 %v2021
    %2745 = vmatpush1.msra.mxu0 %v2020
    %2746 = vmatprep.subr.mxu0 %v2023
    %2747 = vmatpush1.msra.mxu0 %v2022
    %2748 = vmatprep.subr.mxu0 %v2025
    %2749 = vmatpush1.msra.mxu0 %v2024
    %2750 = vmatprep.subr.mxu0 %v2027
    %2751 = vmatpush1.msra.mxu0 %v2026
    %2752 = vmatprep.subr.mxu0 %v2029
    %2753 = vmatpush1.msra.mxu0 %v2028
    %2754 = vmatprep.subr.mxu0 %v2031
    %2755 = vmatpush1.msra.mxu0 %v2030
    %2756 = vmatprep.subr.mxu0 %v2033
    %2757 = vmatpush1.msra.mxu0 %v2032
    %2758 = vmatprep.subr.mxu0 0.0
    %2759 = vmatpush1.msra.mxu0 0.0
    %2760 = vmatprep.subr.mxu0 0.0
    %2761 = vmatpush1.msra.mxu0 0.0
    %2762 = vmatprep.subr.mxu0 0.0
    %2763 = vmatpush1.msra.mxu0 0.0
    %2764 = vmatprep.subr.mxu0 0.0
    %2765 = vmatpush1.msra.mxu0 0.0
    %2766 = vmatprep.subr.mxu0 0.0
    %2767 = vmatpush1.msra.mxu0 0.0
    %2768 = vmatprep.subr.mxu0 0.0
    %2769 = vmatpush1.msra.mxu0 0.0
    %2770 = vmatprep.subr.mxu0 0.0
    %2771 = vmatpush1.msra.mxu0 0.0
    %2772 = vmatprep.subr.mxu0 0.0
    %2773 = vmatpush1.msra.mxu0 0.0
    %2774 = vmatprep.subr.mxu0 0.0
    %2775 = vmatpush1.msra.mxu0 0.0
    %2776 = vmatprep.subr.mxu0 0.0
    %2777 = vmatpush1.msra.mxu0 0.0
    %2778 = vmatprep.subr.mxu0 0.0
    %2779 = vmatpush1.msra.mxu0 0.0
    %2780 = vmatprep.subr.mxu0 0.0
    %2781 = vmatpush1.msra.mxu0 0.0
    %2782 = vmatprep.subr.mxu0 0.0
    %2783 = vmatpush1.msra.mxu0 0.0
    %2784 = vmatprep.subr.mxu0 0.0
    %2785 = vmatpush1.msra.mxu0 0.0
    %2786 = vmatprep.subr.mxu0 0.0
    %2787 = vmatpush1.msra.mxu0 0.0
    %2788 = vmatprep.subr.mxu0 0.0
    %2789 = vmatpush1.msra.mxu0 0.0
    %2790 = vmatprep.subr.mxu0 0.0
    %2791 = vmatpush1.msra.mxu0 0.0
    %2792 = vmatprep.subr.mxu0 0.0
    %2793 = vmatpush1.msra.mxu0 0.0
    %2794 = vmatprep.subr.mxu0 0.0
    %2795 = vmatpush1.msra.mxu0 0.0
    %2796 = vmatprep.subr.mxu0 0.0
    %2797 = vmatpush1.msra.mxu0 0.0
    %2798 = vmatprep.subr.mxu0 0.0
    %2799 = vmatpush1.msra.mxu0 0.0
    %2800 = vmatprep.subr.mxu0 0.0
    %2801 = vmatpush1.msra.mxu0 0.0
    %2802 = vmatprep.subr.mxu0 0.0
    %2803 = vmatpush1.msra.mxu0 0.0
    %2804 = vmatprep.subr.mxu0 0.0
    %2805 = vmatpush1.msra.mxu0 0.0
    %2806 = vmatprep.mubr.f32.mxu0 0.0
    %2807 = vmatmul.mubr.f32.gmra.mrb[0].mxu0 %v2740
    %v2808 = vpop.f32.mrb[0].mxu0
    %v2809 = vadd.f32 0.0, %v2808
    %v2810 = vpop.f32.mrb[0].mxu0
    %v2811 = vadd.f32 0.0, %v2810
    %2812 = vdwg.mxu0
    %v2813 = vadd.f32 %v2738, %v2809
    %v2814 = vadd.f32 %v2739, %v2811
    %v2815 = vxor.u32 %v2813, 2147483648
    %v2816 = vxor.u32 %v2814, 2147483648
    %v2817 = vmul.f32 %v2815, 1.442695
    %v2818 = vpow.pop %v2817
    %v2819 = vmul.f32 %v2816, 1.442695
    %v2820 = vpow.pop %v2819
    %v2821 = vadd.f32 %v2818, 1.0
    %v2822 = vadd.f32 %v2820, 1.0
    %v2823 = vrcp.pop %v2821
    %v2824 = vmul.f32 1.0, %v2823
    %v2825 = vrcp.pop %v2822
    %v2826 = vmul.f32 1.0, %v2825
    %v2827 = vtanh.pop %v2814
    %v2828 = vmul.f32 %v2824, %v2721
    %2830 = vrot.lane.b32.xlu0 %v2827, 64
    %v2831 = vpop.permute.xlu0 %2830
    %v2833 = vmul.f32 %v2824, %v2831
    %2835 = vrot.lane.b32.xlu0 %v2833, 64
    %v2836 = vpop.permute.xlu0 %2835
    %v2838 = vadd.f32 %v2828, %v2836
    %v2839 = vtanh.pop %v2838
    %2841 = vrot.lane.b32.xlu0 %v2839, 64
    %v2842 = vpop.permute.xlu0 %2841
    %v2844 = vmul.f32 %v2826, %v2842
    %2845 = vst.msk [vmem:[#allocation3 + $0x30] sm:$0xff] %vm558, %v2844
    %2847 = vrot.lane.b32.xlu0 %v2844, 96
    %v2848 = vpop.permute.xlu0 %2847
    %2850 = vst.msk [vmem:[#allocation4 + $0x8] sm:$0xff] %vm558, %v2848
    %v2851 = vld [vmem:[#allocation2 + $0xe0] sm:$0xff]
    %v2852 = vld [vmem:[#allocation2 + $0xe8] sm:$0xff]
    %v2853 = vld [vmem:[#allocation2 + $0x10] sm:$0xff]
    %v2854 = vld [vmem:[#allocation2 + $0x18] sm:$0xff]
    %v2855 = vadd.f32 %v2851, %v2853
    %v2856 = vadd.f32 %v2852, %v2854
    %v2857 = vsel %vm451, %v2844, 0
    %2859 = vmatprep.subr.mxu0 %v2019
    %2860 = vmatpush1.msra.mxu0 %v2018
    %2861 = vmatprep.subr.mxu0 %v2021
    %2862 = vmatpush1.msra.mxu0 %v2020
    %2863 = vmatprep.subr.mxu0 %v2023
    %2864 = vmatpush1.msra.mxu0 %v2022
    %2865 = vmatprep.subr.mxu0 %v2025
    %2866 = vmatpush1.msra.mxu0 %v2024
    %2867 = vmatprep.subr.mxu0 %v2027
    %2868 = vmatpush1.msra.mxu0 %v2026
    %2869 = vmatprep.subr.mxu0 %v2029
    %2870 = vmatpush1.msra.mxu0 %v2028
    %2871 = vmatprep.subr.mxu0 %v2031
    %2872 = vmatpush1.msra.mxu0 %v2030
    %2873 = vmatprep.subr.mxu0 %v2033
    %2874 = vmatpush1.msra.mxu0 %v2032
    %2875 = vmatprep.subr.mxu0 0.0
    %2876 = vmatpush1.msra.mxu0 0.0
    %2877 = vmatprep.subr.mxu0 0.0
    %2878 = vmatpush1.msra.mxu0 0.0
    %2879 = vmatprep.subr.mxu0 0.0
    %2880 = vmatpush1.msra.mxu0 0.0
    %2881 = vmatprep.subr.mxu0 0.0
    %2882 = vmatpush1.msra.mxu0 0.0
    %2883 = vmatprep.subr.mxu0 0.0
    %2884 = vmatpush1.msra.mxu0 0.0
    %2885 = vmatprep.subr.mxu0 0.0
    %2886 = vmatpush1.msra.mxu0 0.0
    %2887 = vmatprep.subr.mxu0 0.0
    %2888 = vmatpush1.msra.mxu0 0.0
    %2889 = vmatprep.subr.mxu0 0.0
    %2890 = vmatpush1.msra.mxu0 0.0
    %2891 = vmatprep.subr.mxu0 0.0
    %2892 = vmatpush1.msra.mxu0 0.0
    %2893 = vmatprep.subr.mxu0 0.0
    %2894 = vmatpush1.msra.mxu0 0.0
    %2895 = vmatprep.subr.mxu0 0.0
    %2896 = vmatpush1.msra.mxu0 0.0
    %2897 = vmatprep.subr.mxu0 0.0
    %2898 = vmatpush1.msra.mxu0 0.0
    %2899 = vmatprep.subr.mxu0 0.0
    %2900 = vmatpush1.msra.mxu0 0.0
    %2901 = vmatprep.subr.mxu0 0.0
    %2902 = vmatpush1.msra.mxu0 0.0
    %2903 = vmatprep.subr.mxu0 0.0
    %2904 = vmatpush1.msra.mxu0 0.0
    %2905 = vmatprep.subr.mxu0 0.0
    %2906 = vmatpush1.msra.mxu0 0.0
    %2907 = vmatprep.subr.mxu0 0.0
    %2908 = vmatpush1.msra.mxu0 0.0
    %2909 = vmatprep.subr.mxu0 0.0
    %2910 = vmatpush1.msra.mxu0 0.0
    %2911 = vmatprep.subr.mxu0 0.0
    %2912 = vmatpush1.msra.mxu0 0.0
    %2913 = vmatprep.subr.mxu0 0.0
    %2914 = vmatpush1.msra.mxu0 0.0
    %2915 = vmatprep.subr.mxu0 0.0
    %2916 = vmatpush1.msra.mxu0 0.0
    %2917 = vmatprep.subr.mxu0 0.0
    %2918 = vmatpush1.msra.mxu0 0.0
    %2919 = vmatprep.subr.mxu0 0.0
    %2920 = vmatpush1.msra.mxu0 0.0
    %2921 = vmatprep.subr.mxu0 0.0
    %2922 = vmatpush1.msra.mxu0 0.0
    %2923 = vmatprep.mubr.f32.mxu0 0.0
    %2924 = vmatmul.mubr.f32.gmra.mrb[0].mxu0 %v2857
    %v2925 = vpop.f32.mrb[0].mxu0
    %v2926 = vadd.f32 0.0, %v2925
    %v2927 = vpop.f32.mrb[0].mxu0
    %v2928 = vadd.f32 0.0, %v2927
    %2929 = vdwg.mxu0
    %v2930 = vadd.f32 %v2855, %v2926
    %v2931 = vadd.f32 %v2856, %v2928
    %v2932 = vxor.u32 %v2930, 2147483648
    %v2933 = vxor.u32 %v2931, 2147483648
    %v2934 = vmul.f32 %v2932, 1.442695
    %v2935 = vpow.pop %v2934
    %v2936 = vmul.f32 %v2933, 1.442695
    %v2937 = vpow.pop %v2936
    %v2938 = vadd.f32 %v2935, 1.0
    %v2939 = vadd.f32 %v2937, 1.0
    %v2940 = vrcp.pop %v2938
    %v2941 = vmul.f32 1.0, %v2940
    %v2942 = vrcp.pop %v2939
    %v2943 = vmul.f32 1.0, %v2942
    %v2944 = vtanh.pop %v2931
    %v2945 = vmul.f32 %v2941, %v2838
    %2947 = vrot.lane.b32.xlu0 %v2944, 64
    %v2948 = vpop.permute.xlu0 %2947
    %v2950 = vmul.f32 %v2941, %v2948
    %2952 = vrot.lane.b32.xlu0 %v2950, 64
    %v2953 = vpop.permute.xlu0 %2952
    %v2955 = vadd.f32 %v2945, %v2953
    %v2956 = vtanh.pop %v2955
    %2958 = vrot.lane.b32.xlu0 %v2956, 64
    %v2959 = vpop.permute.xlu0 %2958
    %v2961 = vmul.f32 %v2943, %v2959
    %2962 = vst.msk [vmem:[#allocation3 + $0x38] sm:$0xff] %vm558, %v2961
    %2964 = vrot.lane.b32.xlu0 %v2961, 96
    %v2965 = vpop.permute.xlu0 %2964
    %2967 = vst.msk [vmem:[#allocation4] sm:$0xff] %vm558, %v2965
    %v2968 = vld [vmem:[#allocation3] sm:$0xff]
    %v2969 = vld [vmem:[#allocation3 + $0x8] sm:$0xff]
    %v2970 = vld [vmem:[#allocation3 + $0x10] sm:$0xff]
    %v2971 = vld [vmem:[#allocation3 + $0x18] sm:$0xff]
    %v2972 = vld [vmem:[#allocation3 + $0x20] sm:$0xff]
    %v2973 = vld [vmem:[#allocation3 + $0x28] sm:$0xff]
    %v2974 = vld [vmem:[#allocation3 + $0x30] sm:$0xff]
    %v2975 = vld [vmem:[#allocation3 + $0x38] sm:$0xff]
    %v2976 = vld [vmem:[#allocation4] sm:$0xff]
    %v2977 = vld [vmem:[#allocation4 + $0x8] sm:$0xff]
    %v2978 = vld [vmem:[#allocation4 + $0x10] sm:$0xff]
    %v2979 = vld [vmem:[#allocation4 + $0x18] sm:$0xff]
    %v2980 = vld [vmem:[#allocation4 + $0x20] sm:$0xff]
    %v2981 = vld [vmem:[#allocation4 + $0x28] sm:$0xff]
    %v2982 = vld [vmem:[#allocation4 + $0x30] sm:$0xff]
    %v2983 = vld [vmem:[#allocation4 + $0x38] sm:$0xff]
    %v2984 = vld [vmem:[%s8] sm:$0xff]
    %v2985 = vld [vmem:[%s8 + $0x8] sm:$0xff]
    %v2986 = vld [vmem:[%s8 + $0x10] sm:$0xff]
    %v2987 = vld [vmem:[%s8 + $0x18] sm:$0xff]
    %v2988 = vld [vmem:[#allocation12] sm:$0xff]
    %v2989 = vld [vmem:[#allocation12 + $0x8] sm:$0xff]
    %v2990 = vld [vmem:[#allocation12 + $0x10] sm:$0xff]
    %v2991 = vld [vmem:[#allocation12 + $0x18] sm:$0xff]
    %v2993 = vsel %vm558, %v2976, 0
    %v2996 = vsel %vm558, %v2977, 0
    %v2999 = vsel %vm558, %v2978, 0
    %v3002 = vsel %vm558, %v2979, 0
    %v3005 = vsel %vm558, %v2980, 0
    %v3008 = vsel %vm558, %v2981, 0
    %v3011 = vsel %vm558, %v2982, 0
    %v3014 = vsel %vm558, %v2983, 0
    %3016 = vmatprep.subr.mxu0 0.0
    %3017 = vmatpush1.msra.mxu0 %v2988
    %3018 = vmatprep.subr.mxu0 0.0
    %3019 = vmatpush1.msra.mxu0 %v2989
    %3020 = vmatprep.subr.mxu0 0.0
    %3021 = vmatpush1.msra.mxu0 %v2990
    %3022 = vmatprep.subr.mxu0 0.0
    %3023 = vmatpush1.msra.mxu0 %v2991
    %3024 = vmatprep.subr.mxu0 0.0
    %3025 = vmatpush1.msra.mxu0 0.0
    %3026 = vmatprep.subr.mxu0 0.0
    %3027 = vmatpush1.msra.mxu0 0.0
    %3028 = vmatprep.subr.mxu0 0.0
    %3029 = vmatpush1.msra.mxu0 0.0
    %3030 = vmatprep.subr.mxu0 0.0
    %3031 = vmatpush1.msra.mxu0 0.0
    %3032 = vmatprep.subr.mxu0 0.0
    %3033 = vmatpush1.msra.mxu0 0.0
    %3034 = vmatprep.subr.mxu0 0.0
    %3035 = vmatpush1.msra.mxu0 0.0
    %3036 = vmatprep.subr.mxu0 0.0
    %3037 = vmatpush1.msra.mxu0 0.0
    %3038 = vmatprep.subr.mxu0 0.0
    %3039 = vmatpush1.msra.mxu0 0.0
    %3040 = vmatprep.subr.mxu0 0.0
    %3041 = vmatpush1.msra.mxu0 0.0
    %3042 = vmatprep.subr.mxu0 0.0
    %3043 = vmatpush1.msra.mxu0 0.0
    %3044 = vmatprep.subr.mxu0 0.0
    %3045 = vmatpush1.msra.mxu0 0.0
    %3046 = vmatprep.subr.mxu0 0.0
    %3047 = vmatpush1.msra.mxu0 0.0
    %3048 = vmatprep.subr.mxu0 0.0
    %3049 = vmatpush1.msra.mxu0 0.0
    %3050 = vmatprep.subr.mxu0 0.0
    %3051 = vmatpush1.msra.mxu0 0.0
    %3052 = vmatprep.subr.mxu0 0.0
    %3053 = vmatpush1.msra.mxu0 0.0
    %3054 = vmatprep.subr.mxu0 0.0
    %3055 = vmatpush1.msra.mxu0 0.0
    %3056 = vmatprep.subr.mxu0 0.0
    %3057 = vmatpush1.msra.mxu0 0.0
    %3058 = vmatprep.subr.mxu0 0.0
    %3059 = vmatpush1.msra.mxu0 0.0
    %3060 = vmatprep.subr.mxu0 0.0
    %3061 = vmatpush1.msra.mxu0 0.0
    %3062 = vmatprep.subr.mxu0 0.0
    %3063 = vmatpush1.msra.mxu0 0.0
    %3064 = vmatprep.subr.mxu0 0.0
    %3065 = vmatpush1.msra.mxu0 0.0
    %3066 = vmatprep.subr.mxu0 0.0
    %3067 = vmatpush1.msra.mxu0 0.0
    %3068 = vmatprep.subr.mxu0 0.0
    %3069 = vmatpush1.msra.mxu0 0.0
    %3070 = vmatprep.subr.mxu0 0.0
    %3071 = vmatpush1.msra.mxu0 0.0
    %3072 = vmatprep.subr.mxu0 0.0
    %3073 = vmatpush1.msra.mxu0 0.0
    %3074 = vmatprep.subr.mxu0 0.0
    %3075 = vmatpush1.msra.mxu0 0.0
    %3076 = vmatprep.subr.mxu0 0.0
    %3077 = vmatpush1.msra.mxu0 0.0
    %3078 = vmatprep.subr.mxu0 0.0
    %3079 = vmatpush1.msra.mxu0 0.0
    %3080 = vmatprep.mubr.f32.mxu0 0.0
    %3081 = vmatmul.mubr.f32.gmra.mrb[0].mxu0 %v2993
    %v3082 = vpop.f32.mrb[0].mxu0
    %v3083 = vadd.f32 0.0, %v3082
    %v3084 = vpop.f32.mrb[0].mxu0
    %3085 = vmatprep.mubr.f32.mxu0 0.0
    %3086 = vmatmul.mubr.f32.gmra.mrb[0].mxu0 %v2996
    %v3087 = vpop.f32.mrb[0].mxu0
    %v3088 = vadd.f32 0.0, %v3087
    %v3089 = vpop.f32.mrb[0].mxu0
    %3090 = vmatprep.mubr.f32.mxu0 0.0
    %3091 = vmatmul.mubr.f32.gmra.mrb[0].mxu0 %v2999
    %v3092 = vpop.f32.mrb[0].mxu0
    %v3093 = vadd.f32 0.0, %v3092
    %v3094 = vpop.f32.mrb[0].mxu0
    %3095 = vmatprep.mubr.f32.mxu0 0.0
    %3096 = vmatmul.mubr.f32.gmra.mrb[0].mxu0 %v3002
    %v3097 = vpop.f32.mrb[0].mxu0
    %v3098 = vadd.f32 0.0, %v3097
    %v3099 = vpop.f32.mrb[0].mxu0
    %3100 = vmatprep.mubr.f32.mxu0 0.0
    %3101 = vmatmul.mubr.f32.gmra.mrb[0].mxu0 %v3005
    %v3102 = vpop.f32.mrb[0].mxu0
    %v3103 = vadd.f32 0.0, %v3102
    %v3104 = vpop.f32.mrb[0].mxu0
    %3105 = vmatprep.mubr.f32.mxu0 0.0
    %3106 = vmatmul.mubr.f32.gmra.mrb[0].mxu0 %v3008
    %v3107 = vpop.f32.mrb[0].mxu0
    %v3108 = vadd.f32 0.0, %v3107
    %v3109 = vpop.f32.mrb[0].mxu0
    %3110 = vmatprep.mubr.f32.mxu0 0.0
    %3111 = vmatmul.mubr.f32.gmra.mrb[0].mxu0 %v3011
    %v3112 = vpop.f32.mrb[0].mxu0
    %v3113 = vadd.f32 0.0, %v3112
    %v3114 = vpop.f32.mrb[0].mxu0
    %3115 = vmatprep.mubr.f32.mxu0 0.0
    %3116 = vmatmul.mubr.f32.gmra.mrb[0].mxu0 %v3014
    %v3117 = vpop.f32.mrb[0].mxu0
    %v3118 = vadd.f32 0.0, %v3117
    %v3119 = vpop.f32.mrb[0].mxu0
    %3120 = vdwg.mxu0
    %v3122 = vsel %vm558, %v2968, 0
    %v3125 = vsel %vm558, %v2969, 0
    %v3128 = vsel %vm558, %v2970, 0
    %v3131 = vsel %vm558, %v2971, 0
    %v3134 = vsel %vm558, %v2972, 0
    %v3137 = vsel %vm558, %v2973, 0
    %v3140 = vsel %vm558, %v2974, 0
    %v3143 = vsel %vm558, %v2975, 0
    %3145 = vmatprep.subr.mxu0 0.0
    %3146 = vmatpush1.msra.mxu0 %v2984
    %3147 = vmatprep.subr.mxu0 0.0
    %3148 = vmatpush1.msra.mxu0 %v2985
    %3149 = vmatprep.subr.mxu0 0.0
    %3150 = vmatpush1.msra.mxu0 %v2986
    %3151 = vmatprep.subr.mxu0 0.0
    %3152 = vmatpush1.msra.mxu0 %v2987
    %3153 = vmatprep.subr.mxu0 0.0
    %3154 = vmatpush1.msra.mxu0 0.0
    %3155 = vmatprep.subr.mxu0 0.0
    %3156 = vmatpush1.msra.mxu0 0.0
    %3157 = vmatprep.subr.mxu0 0.0
    %3158 = vmatpush1.msra.mxu0 0.0
    %3159 = vmatprep.subr.mxu0 0.0
    %3160 = vmatpush1.msra.mxu0 0.0
    %3161 = vmatprep.subr.mxu0 0.0
    %3162 = vmatpush1.msra.mxu0 0.0
    %3163 = vmatprep.subr.mxu0 0.0
    %3164 = vmatpush1.msra.mxu0 0.0
    %3165 = vmatprep.subr.mxu0 0.0
    %3166 = vmatpush1.msra.mxu0 0.0
    %3167 = vmatprep.subr.mxu0 0.0
    %3168 = vmatpush1.msra.mxu0 0.0
    %3169 = vmatprep.subr.mxu0 0.0
    %3170 = vmatpush1.msra.mxu0 0.0
    %3171 = vmatprep.subr.mxu0 0.0
    %3172 = vmatpush1.msra.mxu0 0.0
    %3173 = vmatprep.subr.mxu0 0.0
    %3174 = vmatpush1.msra.mxu0 0.0
    %3175 = vmatprep.subr.mxu0 0.0
    %3176 = vmatpush1.msra.mxu0 0.0
    %3177 = vmatprep.subr.mxu0 0.0
    %3178 = vmatpush1.msra.mxu0 0.0
    %3179 = vmatprep.subr.mxu0 0.0
    %3180 = vmatpush1.msra.mxu0 0.0
    %3181 = vmatprep.subr.mxu0 0.0
    %3182 = vmatpush1.msra.mxu0 0.0
    %3183 = vmatprep.subr.mxu0 0.0
    %3184 = vmatpush1.msra.mxu0 0.0
    %3185 = vmatprep.subr.mxu0 0.0
    %3186 = vmatpush1.msra.mxu0 0.0
    %3187 = vmatprep.subr.mxu0 0.0
    %3188 = vmatpush1.msra.mxu0 0.0
    %3189 = vmatprep.subr.mxu0 0.0
    %3190 = vmatpush1.msra.mxu0 0.0
    %3191 = vmatprep.subr.mxu0 0.0
    %3192 = vmatpush1.msra.mxu0 0.0
    %3193 = vmatprep.subr.mxu0 0.0
    %3194 = vmatpush1.msra.mxu0 0.0
    %3195 = vmatprep.subr.mxu0 0.0
    %3196 = vmatpush1.msra.mxu0 0.0
    %3197 = vmatprep.subr.mxu0 0.0
    %3198 = vmatpush1.msra.mxu0 0.0
    %3199 = vmatprep.subr.mxu0 0.0
    %3200 = vmatpush1.msra.mxu0 0.0
    %3201 = vmatprep.subr.mxu0 0.0
    %3202 = vmatpush1.msra.mxu0 0.0
    %3203 = vmatprep.subr.mxu0 0.0
    %3204 = vmatpush1.msra.mxu0 0.0
    %3205 = vmatprep.subr.mxu0 0.0
    %3206 = vmatpush1.msra.mxu0 0.0
    %3207 = vmatprep.subr.mxu0 0.0
    %3208 = vmatpush1.msra.mxu0 0.0
    %3209 = vmatprep.mubr.f32.mxu0 0.0
    %3210 = vmatmul.mubr.f32.gmra.mrb[0].mxu0 %v3122
    %v3211 = vpop.f32.mrb[0].mxu0
    %v3212 = vadd.f32 %v3083, %v3211
    %v3213 = vpop.f32.mrb[0].mxu0
    %3214 = vmatprep.mubr.f32.mxu0 0.0
    %3215 = vmatmul.mubr.f32.gmra.mrb[0].mxu0 %v3125
    %v3216 = vpop.f32.mrb[0].mxu0
    %v3217 = vadd.f32 %v3088, %v3216
    %v3218 = vpop.f32.mrb[0].mxu0
    %3219 = vmatprep.mubr.f32.mxu0 0.0
    %3220 = vmatmul.mubr.f32.gmra.mrb[0].mxu0 %v3128
    %v3221 = vpop.f32.mrb[0].mxu0
    %v3222 = vadd.f32 %v3093, %v3221
    %v3223 = vpop.f32.mrb[0].mxu0
    %3224 = vmatprep.mubr.f32.mxu0 0.0
    %3225 = vmatmul.mubr.f32.gmra.mrb[0].mxu0 %v3131
    %v3226 = vpop.f32.mrb[0].mxu0
    %v3227 = vadd.f32 %v3098, %v3226
    %v3228 = vpop.f32.mrb[0].mxu0
    %3229 = vmatprep.mubr.f32.mxu0 0.0
    %3230 = vmatmul.mubr.f32.gmra.mrb[0].mxu0 %v3134
    %v3231 = vpop.f32.mrb[0].mxu0
    %v3232 = vadd.f32 %v3103, %v3231
    %v3233 = vpop.f32.mrb[0].mxu0
    %3234 = vmatprep.mubr.f32.mxu0 0.0
    %3235 = vmatmul.mubr.f32.gmra.mrb[0].mxu0 %v3137
    %v3236 = vpop.f32.mrb[0].mxu0
    %v3237 = vadd.f32 %v3108, %v3236
    %v3238 = vpop.f32.mrb[0].mxu0
    %3239 = vmatprep.mubr.f32.mxu0 0.0
    %3240 = vmatmul.mubr.f32.gmra.mrb[0].mxu0 %v3140
    %v3241 = vpop.f32.mrb[0].mxu0
    %v3242 = vadd.f32 %v3113, %v3241
    %v3243 = vpop.f32.mrb[0].mxu0
    %3244 = vmatprep.mubr.f32.mxu0 0.0
    %3245 = vmatmul.mubr.f32.gmra.mrb[0].mxu0 %v3143
    %v3246 = vpop.f32.mrb[0].mxu0
    %v3247 = vadd.f32 %v3118, %v3246
    %v3248 = vpop.f32.mrb[0].mxu0
    %3249 = vdwg.mxu0
    %v3250 = vld [vmem:[%s10] sm:$0x1]
    %v3252 = vlaneseq
    %v3253 = vshrl.u32 %v3252, 7
    %v3254 = vsub.s32 0, %v3253
    %v3255 = vrot.slane %v3250, %v3254
    %v3257 = vadd.f32 %v3212, %v3255
    %v3258 = vadd.f32 %v3217, %v3255
    %v3259 = vadd.f32 %v3222, %v3255
    %v3260 = vadd.f32 %v3227, %v3255
    %v3261 = vadd.f32 %v3232, %v3255
    %v3262 = vadd.f32 %v3237, %v3255
    %v3263 = vadd.f32 %v3242, %v3255
    %v3264 = vadd.f32 %v3247, %v3255
    %v3265 = vtanh.pop %v3257
    %v3266 = vtanh.pop %v3258
    %v3267 = vtanh.pop %v3259
    %v3268 = vtanh.pop %v3260
    %v3269 = vtanh.pop %v3261
    %v3270 = vtanh.pop %v3262
    %v3271 = vtanh.pop %v3263
    %v3272 = vtanh.pop %v3264
    %v3273 = vld [vmem:[%s11] sm:$0x1]
    %v3275 = vlaneseq
    %v3276 = vshrl.u32 %v3275, 7
    %v3277 = vsub.s32 0, %v3276
    %v3278 = vrot.slane %v3273, %v3277
    %v3280 = vmul.f32 %v3265, %v3278
    %v3281 = vmul.f32 %v3266, %v3278
    %v3282 = vmul.f32 %v3267, %v3278
    %v3283 = vmul.f32 %v3268, %v3278
    %v3284 = vmul.f32 %v3269, %v3278
    %v3285 = vmul.f32 %v3270, %v3278
    %v3286 = vmul.f32 %v3271, %v3278
    %v3287 = vmul.f32 %v3272, %v3278
    %v3288 = vsel %vm558, %v3280, 0.0
    %3289 = vadd.xlane.f32.xlu0 %v3288
    %v3290 = vpop.xlane.xlu0 %3289
    %v3291 = vsel %vm558, %v3281, 0.0
    %3292 = vadd.xlane.f32.xlu0 %v3291
    %v3293 = vpop.xlane.xlu0 %3292
    %v3294 = vsel %vm558, %v3282, 0.0
    %3295 = vadd.xlane.f32.xlu0 %v3294
    %v3296 = vpop.xlane.xlu0 %3295
    %v3297 = vsel %vm558, %v3283, 0.0
    %3298 = vadd.xlane.f32.xlu0 %v3297
    %v3299 = vpop.xlane.xlu0 %3298
    %v3300 = vsel %vm558, %v3284, 0.0
    %3301 = vadd.xlane.f32.xlu0 %v3300
    %v3302 = vpop.xlane.xlu0 %3301
    %v3303 = vsel %vm558, %v3285, 0.0
    %3304 = vadd.xlane.f32.xlu0 %v3303
    %v3305 = vpop.xlane.xlu0 %3304
    %v3306 = vsel %vm558, %v3286, 0.0
    %3307 = vadd.xlane.f32.xlu0 %v3306
    %v3308 = vpop.xlane.xlu0 %3307
    %v3309 = vsel %vm558, %v3287, 0.0
    %3310 = vadd.xlane.f32.xlu0 %v3309
    %v3311 = vpop.xlane.xlu0 %3310
    %v3312 = vld [vmem:[#allocation5] sm:$0x1]
    %v3314 = vlaneseq
    %v3315 = vshrl.u32 %v3314, 7
    %v3316 = vsub.s32 0, %v3315
    %v3317 = vrot.slane %v3312, %v3316
    %v3319 = vadd.f32 %v3290, %v3317
    %v3320 = vadd.f32 %v3293, %v3317
    %v3321 = vadd.f32 %v3296, %v3317
    %v3322 = vadd.f32 %v3299, %v3317
    %v3323 = vadd.f32 %v3302, %v3317
    %v3324 = vadd.f32 %v3305, %v3317
    %v3325 = vadd.f32 %v3308, %v3317
    %v3326 = vadd.f32 %v3311, %v3317
    %v3327 = vmax.f32 %v3319, %v3320
    %v3328 = vmax.f32 %v3327, %v3321
    %v3329 = vmax.f32 %v3328, %v3322
    %v3330 = vmax.f32 %v3329, %v3323
    %v3331 = vmax.f32 %v3330, %v3324
    %v3332 = vmax.f32 %v3331, %v3325
    %v3333 = vmax.f32 %v3332, %v3326
    %v3334 = vsub.f32 %v3319, %v3333
    %v3335 = vmul.f32 %v3334, 1.442695
    %v3336 = vpow.pop %v3335
    %v3337 = vsub.f32 %v3320, %v3333
    %v3338 = vmul.f32 %v3337, 1.442695
    %v3339 = vpow.pop %v3338
    %v3340 = vsub.f32 %v3321, %v3333
    %v3341 = vmul.f32 %v3340, 1.442695
    %v3342 = vpow.pop %v3341
    %v3343 = vsub.f32 %v3322, %v3333
    %v3344 = vmul.f32 %v3343, 1.442695
    %v3345 = vpow.pop %v3344
    %v3346 = vsub.f32 %v3323, %v3333
    %v3347 = vmul.f32 %v3346, 1.442695
    %v3348 = vpow.pop %v3347
    %v3349 = vsub.f32 %v3324, %v3333
    %v3350 = vmul.f32 %v3349, 1.442695
    %v3351 = vpow.pop %v3350
    %v3352 = vsub.f32 %v3325, %v3333
    %v3353 = vmul.f32 %v3352, 1.442695
    %v3354 = vpow.pop %v3353
    %v3355 = vsub.f32 %v3326, %v3333
    %v3356 = vmul.f32 %v3355, 1.442695
    %v3357 = vpow.pop %v3356
    %v3358 = vadd.f32 %v3336, %v3339
    %v3359 = vadd.f32 %v3358, %v3342
    %v3360 = vadd.f32 %v3359, %v3345
    %v3361 = vadd.f32 %v3360, %v3348
    %v3362 = vadd.f32 %v3361, %v3351
    %v3363 = vadd.f32 %v3362, %v3354
    %v3364 = vadd.f32 %v3363, %v3357
    %v3365 = vrcp.pop %v3364
    %v3366 = vmul.f32 %v3336, %v3365
    %3368 = vset.pattern.permute.xlu0 0
    %3369 = vperm.xlu0 %3368, %v3366
    %v3370 = vpop.permute.xlu0 %3369
    %v3372 = vmul.f32 %v2968, %v3370
    %v3373 = vadd.f32 %v3372, 0.0
    %v3374 = vmul.f32 %v2976, %v3370
    %v3375 = vadd.f32 %v3374, 0.0
    %v3376 = vmul.f32 %v3339, %v3365
    %3378 = vset.pattern.permute.xlu0 0
    %3379 = vperm.xlu0 %3378, %v3376
    %v3380 = vpop.permute.xlu0 %3379
    %v3382 = vmul.f32 %v2969, %v3380
    %v3383 = vadd.f32 %v3373, %v3382
    %v3384 = vmul.f32 %v2977, %v3380
    %v3385 = vadd.f32 %v3375, %v3384
    %v3386 = vmul.f32 %v3342, %v3365
    %3388 = vset.pattern.permute.xlu0 0
    %3389 = vperm.xlu0 %3388, %v3386
    %v3390 = vpop.permute.xlu0 %3389
    %v3392 = vmul.f32 %v2970, %v3390
    %v3393 = vadd.f32 %v3383, %v3392
    %v3394 = vmul.f32 %v2978, %v3390
    %v3395 = vadd.f32 %v3385, %v3394
    %v3396 = vmul.f32 %v3345, %v3365
    %3398 = vset.pattern.permute.xlu0 0
    %3399 = vperm.xlu0 %3398, %v3396
    %v3400 = vpop.permute.xlu0 %3399
    %v3402 = vmul.f32 %v2971, %v3400
    %v3403 = vadd.f32 %v3393, %v3402
    %v3404 = vmul.f32 %v2979, %v3400
    %v3405 = vadd.f32 %v3395, %v3404
    %v3406 = vmul.f32 %v3348, %v3365
    %3408 = vset.pattern.permute.xlu0 0
    %3409 = vperm.xlu0 %3408, %v3406
    %v3410 = vpop.permute.xlu0 %3409
    %v3412 = vmul.f32 %v2972, %v3410
    %v3413 = vadd.f32 %v3403, %v3412
    %v3414 = vmul.f32 %v2980, %v3410
    %v3415 = vadd.f32 %v3405, %v3414
    %v3416 = vmul.f32 %v3351, %v3365
    %3418 = vset.pattern.permute.xlu0 0
    %3419 = vperm.xlu0 %3418, %v3416
    %v3420 = vpop.permute.xlu0 %3419
    %v3422 = vmul.f32 %v2973, %v3420
    %v3423 = vadd.f32 %v3413, %v3422
    %v3424 = vmul.f32 %v2981, %v3420
    %v3425 = vadd.f32 %v3415, %v3424
    %v3426 = vmul.f32 %v3354, %v3365
    %3428 = vset.pattern.permute.xlu0 0
    %3429 = vperm.xlu0 %3428, %v3426
    %v3430 = vpop.permute.xlu0 %3429
    %v3432 = vmul.f32 %v2974, %v3430
    %v3433 = vadd.f32 %v3423, %v3432
    %v3434 = vmul.f32 %v2982, %v3430
    %v3435 = vadd.f32 %v3425, %v3434
    %v3436 = vmul.f32 %v3357, %v3365
    %3438 = vset.pattern.permute.xlu0 0
    %3439 = vperm.xlu0 %3438, %v3436
    %v3440 = vpop.permute.xlu0 %3439
    %v3442 = vmul.f32 %v2975, %v3440
    %v3443 = vadd.f32 %v3433, %v3442
    %v3444 = vmul.f32 %v2983, %v3440
    %v3445 = vadd.f32 %v3435, %v3444
    %v3446 = vld [vmem:[%s13] sm:$0xff]
    %v3447 = vld [vmem:[%s13 + $0x8] sm:$0xff]
    %v3448 = vld [vmem:[%s13 + $0x10] sm:$0xff]
    %v3449 = vld [vmem:[%s13 + $0x18] sm:$0xff]
    %v3450 = vld [vmem:[%s14] sm:$0xff]
    %v3451 = vld [vmem:[%s14 + $0x8] sm:$0xff]
    %v3452 = vld [vmem:[%s14 + $0x10] sm:$0xff]
    %v3453 = vld [vmem:[%s14 + $0x18] sm:$0xff]
    %v3455 = vsel %vm558, %v3445, 0
    %3457 = vmatprep.subr.mxu0 0.0
    %3458 = vmatpush1.msra.mxu0 %v3450
    %3459 = vmatprep.subr.mxu0 0.0
    %3460 = vmatpush1.msra.mxu0 %v3451
    %3461 = vmatprep.subr.mxu0 0.0
    %3462 = vmatpush1.msra.mxu0 %v3452
    %3463 = vmatprep.subr.mxu0 0.0
    %3464 = vmatpush1.msra.mxu0 %v3453
    %3465 = vmatprep.subr.mxu0 0.0
    %3466 = vmatpush1.msra.mxu0 0.0
    %3467 = vmatprep.subr.mxu0 0.0
    %3468 = vmatpush1.msra.mxu0 0.0
    %3469 = vmatprep.subr.mxu0 0.0
    %3470 = vmatpush1.msra.mxu0 0.0
    %3471 = vmatprep.subr.mxu0 0.0
    %3472 = vmatpush1.msra.mxu0 0.0
    %3473 = vmatprep.subr.mxu0 0.0
    %3474 = vmatpush1.msra.mxu0 0.0
    %3475 = vmatprep.subr.mxu0 0.0
    %3476 = vmatpush1.msra.mxu0 0.0
    %3477 = vmatprep.subr.mxu0 0.0
    %3478 = vmatpush1.msra.mxu0 0.0
    %3479 = vmatprep.subr.mxu0 0.0
    %3480 = vmatpush1.msra.mxu0 0.0
    %3481 = vmatprep.subr.mxu0 0.0
    %3482 = vmatpush1.msra.mxu0 0.0
    %3483 = vmatprep.subr.mxu0 0.0
    %3484 = vmatpush1.msra.mxu0 0.0
    %3485 = vmatprep.subr.mxu0 0.0
    %3486 = vmatpush1.msra.mxu0 0.0
    %3487 = vmatprep.subr.mxu0 0.0
    %3488 = vmatpush1.msra.mxu0 0.0
    %3489 = vmatprep.subr.mxu0 0.0
    %3490 = vmatpush1.msra.mxu0 0.0
    %3491 = vmatprep.subr.mxu0 0.0
    %3492 = vmatpush1.msra.mxu0 0.0
    %3493 = vmatprep.subr.mxu0 0.0
    %3494 = vmatpush1.msra.mxu0 0.0
    %3495 = vmatprep.subr.mxu0 0.0
    %3496 = vmatpush1.msra.mxu0 0.0
    %3497 = vmatprep.subr.mxu0 0.0
    %3498 = vmatpush1.msra.mxu0 0.0
    %3499 = vmatprep.subr.mxu0 0.0
    %3500 = vmatpush1.msra.mxu0 0.0
    %3501 = vmatprep.subr.mxu0 0.0
    %3502 = vmatpush1.msra.mxu0 0.0
    %3503 = vmatprep.subr.mxu0 0.0
    %3504 = vmatpush1.msra.mxu0 0.0
    %3505 = vmatprep.subr.mxu0 0.0
    %3506 = vmatpush1.msra.mxu0 0.0
    %3507 = vmatprep.subr.mxu0 0.0
    %3508 = vmatpush1.msra.mxu0 0.0
    %3509 = vmatprep.subr.mxu0 0.0
    %3510 = vmatpush1.msra.mxu0 0.0
    %3511 = vmatprep.subr.mxu0 0.0
    %3512 = vmatpush1.msra.mxu0 0.0
    %3513 = vmatprep.subr.mxu0 0.0
    %3514 = vmatpush1.msra.mxu0 0.0
    %3515 = vmatprep.subr.mxu0 0.0
    %3516 = vmatpush1.msra.mxu0 0.0
    %3517 = vmatprep.subr.mxu0 0.0
    %3518 = vmatpush1.msra.mxu0 0.0
    %3519 = vmatprep.subr.mxu0 0.0
    %3520 = vmatpush1.msra.mxu0 0.0
    %3521 = vmatprep.mubr.f32.mxu0 0.0
    %3522 = vmatmul.mubr.f32.gmra.mrb[0].mxu0 %v3455
    %v3523 = vpop.f32.mrb[0].mxu0
    %v3524 = vadd.f32 0.0, %v3523
    %v3525 = vpop.f32.mrb[0].mxu0
    %3526 = vdwg.mxu0
    %v3528 = vsel %vm558, %v3443, 0
    %3530 = vmatprep.subr.mxu0 0.0
    %3531 = vmatpush1.msra.mxu0 %v3446
    %3532 = vmatprep.subr.mxu0 0.0
    %3533 = vmatpush1.msra.mxu0 %v3447
    %3534 = vmatprep.subr.mxu0 0.0
    %3535 = vmatpush1.msra.mxu0 %v3448
    %3536 = vmatprep.subr.mxu0 0.0
    %3537 = vmatpush1.msra.mxu0 %v3449
    %3538 = vmatprep.subr.mxu0 0.0
    %3539 = vmatpush1.msra.mxu0 0.0
    %3540 = vmatprep.subr.mxu0 0.0
    %3541 = vmatpush1.msra.mxu0 0.0
    %3542 = vmatprep.subr.mxu0 0.0
    %3543 = vmatpush1.msra.mxu0 0.0
    %3544 = vmatprep.subr.mxu0 0.0
    %3545 = vmatpush1.msra.mxu0 0.0
    %3546 = vmatprep.subr.mxu0 0.0
    %3547 = vmatpush1.msra.mxu0 0.0
    %3548 = vmatprep.subr.mxu0 0.0
    %3549 = vmatpush1.msra.mxu0 0.0
    %3550 = vmatprep.subr.mxu0 0.0
    %3551 = vmatpush1.msra.mxu0 0.0
    %3552 = vmatprep.subr.mxu0 0.0
    %3553 = vmatpush1.msra.mxu0 0.0
    %3554 = vmatprep.subr.mxu0 0.0
    %3555 = vmatpush1.msra.mxu0 0.0
    %3556 = vmatprep.subr.mxu0 0.0
    %3557 = vmatpush1.msra.mxu0 0.0
    %3558 = vmatprep.subr.mxu0 0.0
    %3559 = vmatpush1.msra.mxu0 0.0
    %3560 = vmatprep.subr.mxu0 0.0
    %3561 = vmatpush1.msra.mxu0 0.0
    %3562 = vmatprep.subr.mxu0 0.0
    %3563 = vmatpush1.msra.mxu0 0.0
    %3564 = vmatprep.subr.mxu0 0.0
    %3565 = vmatpush1.msra.mxu0 0.0
    %3566 = vmatprep.subr.mxu0 0.0
    %3567 = vmatpush1.msra.mxu0 0.0
    %3568 = vmatprep.subr.mxu0 0.0
    %3569 = vmatpush1.msra.mxu0 0.0
    %3570 = vmatprep.subr.mxu0 0.0
    %3571 = vmatpush1.msra.mxu0 0.0
    %3572 = vmatprep.subr.mxu0 0.0
    %3573 = vmatpush1.msra.mxu0 0.0
    %3574 = vmatprep.subr.mxu0 0.0
    %3575 = vmatpush1.msra.mxu0 0.0
    %3576 = vmatprep.subr.mxu0 0.0
    %3577 = vmatpush1.msra.mxu0 0.0
    %3578 = vmatprep.subr.mxu0 0.0
    %3579 = vmatpush1.msra.mxu0 0.0
    %3580 = vmatprep.subr.mxu0 0.0
    %3581 = vmatpush1.msra.mxu0 0.0
    %3582 = vmatprep.subr.mxu0 0.0
    %3583 = vmatpush1.msra.mxu0 0.0
    %3584 = vmatprep.subr.mxu0 0.0
    %3585 = vmatpush1.msra.mxu0 0.0
    %3586 = vmatprep.subr.mxu0 0.0
    %3587 = vmatpush1.msra.mxu0 0.0
    %3588 = vmatprep.subr.mxu0 0.0
    %3589 = vmatpush1.msra.mxu0 0.0
    %3590 = vmatprep.subr.mxu0 0.0
    %3591 = vmatpush1.msra.mxu0 0.0
    %3592 = vmatprep.subr.mxu0 0.0
    %3593 = vmatpush1.msra.mxu0 0.0
    %3594 = vmatprep.mubr.f32.mxu0 0.0
    %3595 = vmatmul.mubr.f32.gmra.mrb[0].mxu0 %v3528
    %v3596 = vpop.f32.mrb[0].mxu0
    %v3597 = vadd.f32 %v3524, %v3596
    %v3598 = vpop.f32.mrb[0].mxu0
    %3599 = vdwg.mxu0
    %v3600 = vld [vmem:[#allocation6] sm:$0x1]
    %v3602 = vlaneseq
    %v3603 = vshrl.u32 %v3602, 7
    %v3604 = vsub.s32 0, %v3603
    %v3605 = vrot.slane %v3600, %v3604
    %v3607 = vadd.f32 %v3597, %v3605
    %vm3608 = vcmask 7168
    %3609 = vst.msk [vmem:[%s16] sm:$0xff] %vm3608, %v3607
    // Predicated region
    $region82: #{bilstm_forward.1} parent=1 // pred_check
      _
    $region83: #{bilstm_forward.1} parent=1 // pred_check_branch
      %3611 = sbr.rel (0) target = $region85
    $region84: #{bilstm_forward.1} parent=1 // pred_region
      _
    $region85: #{bilstm_forward.1} parent=1 // pred_fallthru
      _
    // Predicated region
    $region86: #{bilstm_forward.1} parent=1 // pred_check
      _
    $region87: #{bilstm_forward.1} parent=1 // pred_check_branch
      %3613 = sbr.rel (0) target = $region89
    $region88: #{bilstm_forward.1} parent=1 // pred_region
      _
    $region89: #{bilstm_forward.1} parent=1 // pred_fallthru
      _
    %3614 = vsyncpa [#allocation8], 1
    %3615 = vsyncpa [#allocation10], 1
    %3616 = vsyncpa [#allocation13], 1

</llo_original>
